<compile_context>
chip_gen: v6e
topology: v6e:2x2x1
jax: 0.10.0
libtpu: 0.0.40
codegen_flags: <defaults>
</compile_context>

<pallas_src>
import jax
import jax.numpy as jnp
from jax.experimental import pallas as pl
from jax.experimental.pallas import tpu as pltpu

LANE = 128           # TPU lane width; every GEMM output dim is padded to this.
K1_PAD = 128         # conv1 im2col K: 1*5*5 = 25  -> 128
K2_PAD = 256         # conv2 im2col K: 6*5*5 = 150 -> 256
FC_K = 25 * LANE     # fc1 K: conv2 pooled map = 5*5 spatial x 128 padded channels


def _round_up(x, m):
    return (x + m - 1) // m * m


# ----------------------------------------------------------------------------
# Pallas kernels
# ----------------------------------------------------------------------------
def _conv_relu_pool_kernel(q00_ref, q01_ref, q10_ref, q11_ref, w_ref, b_ref, o_ref):
    """Fused conv-as-GEMM + bias + ReLU + 2x2 max-pool for one image.

    q??_ref: (1, P, Kp) bf16 im2col patches of the four pooling quadrants,
             rows ordered by pooled output pixel (i * Wp + j).
    w_ref:   (Kp, 128) bf16 weight matrix (im2col layout, Cout zero-padded).
    b_ref:   (1, 128) f32 bias (zero-padded).
    o_ref:   (1, P, 128) bf16 pooled output feature map.
    """
    w = w_ref[...]
    b = b_ref[...]

    def branch(q_ref):
        acc = jnp.dot(q_ref[0], w, preferred_element_type=jnp.float32)  # MXU
        return jnp.maximum(acc + b, 0.0)                                # bias+ReLU, f32

    pooled = jnp.maximum(jnp.maximum(branch(q00_ref), branch(q01_ref)),
                         jnp.maximum(branch(q10_ref), branch(q11_ref)))
    o_ref[0] = pooled.astype(o_ref.dtype)


def _fc_fused_kernel(x_ref, w1_ref, b1_ref, w2_ref, b2_ref, w3_ref, b3_ref, o_ref):
    """fc1+ReLU -> fc2+ReLU -> fc3 for one batch tile; intermediates never leave VMEM."""
    h = jnp.dot(x_ref[...], w1_ref[...], preferred_element_type=jnp.float32)
    h = jnp.maximum(h + b1_ref[...], 0.0).astype(jnp.bfloat16)
    h = jnp.dot(h, w2_ref[...], preferred_element_type=jnp.float32)
    h = jnp.maximum(h + b2_ref[...], 0.0).astype(jnp.bfloat16)
    h = jnp.dot(h, w3_ref[...], preferred_element_type=jnp.float32)
    o_ref[...] = (h + b3_ref[...]).astype(o_ref.dtype)


# ----------------------------------------------------------------------------
# Pallas wrappers
# ----------------------------------------------------------------------------
def conv_relu_pool(quads, w, b):
    """quads: four (N, P, Kp) bf16 patch tensors -> (N, P, 128) bf16 pooled maps."""
    n, p, kp = quads[0].shape
    qspec = pl.BlockSpec((1, p, kp), lambda i: (i, 0, 0))
    return pl.pallas_call(
        _conv_relu_pool_kernel,
        out_shape=jax.ShapeDtypeStruct((n, p, LANE), jnp.bfloat16),
        grid=(n,),
        in_specs=[qspec, qspec, qspec, qspec,
                  pl.BlockSpec((kp, LANE), lambda i: (0, 0)),
                  pl.BlockSpec((1, LANE), lambda i: (0, 0))],
        out_specs=pl.BlockSpec((1, p, LANE), lambda i: (i, 0, 0)),
        compiler_params=pltpu.CompilerParams(dimension_semantics=("parallel",)),
    )(*quads, w, b)


def fc_fused(x, w1, b1, w2, b2, w3, b3, *, block_rows=128):
    """x: (N, FC_K) bf16 -> (N, 128) f32 logits (first 10 lanes valid)."""
    n, k = x.shape
    bt = min(block_rows, _round_up(n, 8))
    n_pad = _round_up(n, bt)
    if n_pad != n:
        x = jnp.pad(x, ((0, n_pad - n), (0, 0)))
    out = pl.pallas_call(
        _fc_fused_kernel,
        out_shape=jax.ShapeDtypeStruct((n_pad, LANE), jnp.float32),
        grid=(n_pad // bt,),
        in_specs=[
            pl.BlockSpec((bt, k), lambda i: (i, 0)),
            pl.BlockSpec((k, LANE), lambda i: (0, 0)),
            pl.BlockSpec((1, LANE), lambda i: (0, 0)),
            pl.BlockSpec((LANE, LANE), lambda i: (0, 0)),
            pl.BlockSpec((1, LANE), lambda i: (0, 0)),
            pl.BlockSpec((LANE, LANE), lambda i: (0, 0)),
            pl.BlockSpec((1, LANE), lambda i: (0, 0)),
        ],
        out_specs=pl.BlockSpec((bt, LANE), lambda i: (i, 0)),
        compiler_params=pltpu.CompilerParams(dimension_semantics=("parallel",)),
    )(x, w1, b1, w2, b2, w3, b3)
    return out[:n]


# ----------------------------------------------------------------------------
# Glue: quadrant im2col (single XLA op per quadrant, no Python slice loops)
# ----------------------------------------------------------------------------
def _quadrant_patches(x, di, dj, k, k_pad):
    """Patches of the conv outputs that land in pooling quadrant (di, dj).

    x: (N, C, H, W).  Returns (N, Hp*Wp, k_pad) with rows ordered (i*Wp + j) and
    patch-feature order c*k*k + kh*k + kw (matches PyTorch weight.reshape).
    """
    xs = x[:, :, di:, dj:]
    p = jax.lax.conv_general_dilated_patches(
        xs, filter_shape=(k, k), window_strides=(2, 2), padding="VALID")
    n, f, ho, wo = p.shape                       # f = C*k*k
    p = p.transpose(0, 2, 3, 1).reshape(n, ho * wo, f)
    return jnp.pad(p, ((0, 0), (0, 0), (0, k_pad - f)))


# ----------------------------------------------------------------------------
# Parameters: PyTorch-style init, then one-time packing into kernel layouts.
# ----------------------------------------------------------------------------
def init_params(key):
    def uniform(k, shape, fan_in):
        bound = 1.0 / (fan_in ** 0.5)
        return jax.random.uniform(k, shape, jnp.float32, -bound, bound)

    ks = jax.random.split(key, 10)
    raw = {
        "conv1_w": uniform(ks[0], (6, 1, 5, 5), 25),
        "conv1_b": uniform(ks[1], (6,), 25),
        "conv2_w": uniform(ks[2], (16, 6, 5, 5), 150),
        "conv2_b": uniform(ks[3], (16,), 150),
        "fc1_w": uniform(ks[4], (120, 400), 400),   # PyTorch Linear: (out, in)
        "fc1_b": uniform(ks[5], (120,), 400),
        "fc2_w": uniform(ks[6], (84, 120), 120),
        "fc2_b": uniform(ks[7], (84,), 120),
        "fc3_w": uniform(ks[8], (10, 84), 84),
        "fc3_b": uniform(ks[9], (10,), 84),
    }
    return pack_params(raw)


def pack_params(raw):
    """Pre-transpose to (in, out), zero-pad to 128 lanes, cast GEMM operands to bf16."""
    def pad_to(a, shape):
        return jnp.pad(a, [(0, t - s) for s, t in zip(a.shape, shape)])

    def bias(b):
        return pad_to(b, (LANE,)).reshape(1, LANE).astype(jnp.float32)

    p = {}
    p["conv1_w"] = pad_to(raw["conv1_w"].reshape(6, 25).T, (K1_PAD, LANE)).astype(jnp.bfloat16)
    p["conv1_b"] = bias(raw["conv1_b"])
    p["conv2_w"] = pad_to(raw["conv2_w"].reshape(16, 150).T, (K2_PAD, LANE)).astype(jnp.bfloat16)
    p["conv2_b"] = bias(raw["conv2_b"])
    # fc1: reorder input features from PyTorch's (c, h, w) flatten to the kernel's
    # (spatial, padded-channel) flatten of the conv2 output, then pad.
    w1 = raw["fc1_w"].reshape(120, 16, 5, 5).transpose(2, 3, 1, 0)       # (h, w, c, out)
    p["fc1_w"] = pad_to(w1, (5, 5, LANE, LANE)).reshape(FC_K, LANE).astype(jnp.bfloat16)
    p["fc1_b"] = bias(raw["fc1_b"])
    p["fc2_w"] = pad_to(raw["fc2_w"].T, (LANE, LANE)).astype(jnp.bfloat16)
    p["fc2_b"] = bias(raw["fc2_b"])
    p["fc3_w"] = pad_to(raw["fc3_w"].T, (LANE, LANE)).astype(jnp.bfloat16)
    p["fc3_b"] = bias(raw["fc3_b"])
    return p


# ----------------------------------------------------------------------------
# LeNet-5 forward
# ----------------------------------------------------------------------------
@jax.jit
def lenet5_forward(params, img):
    """img: (N, 1, 28, 28) f32 NCHW -> logits (N, 10) f32."""
    n = img.shape[0]
    x = img.astype(jnp.bfloat16)
    x = jnp.pad(x, ((0, 0), (0, 0), (2, 2), (2, 2)))          # conv1 padding=2

    # conv1 (5x5, 1->6) + ReLU + 2x2 max-pool, one fused kernel.
    q1 = [_quadrant_patches(x, di, dj, 5, K1_PAD) for di in (0, 1) for dj in (0, 1)]
    p1 = conv_relu_pool(q1, params["conv1_w"], params["conv1_b"])        # (N,196,128)
    f1 = p1.reshape(n, 14, 14, LANE)[:, :, :, :6].transpose(0, 3, 1, 2)  # (N,6,14,14)

    # conv2 (5x5, 6->16) + ReLU + 2x2 max-pool, one fused kernel.
    q2 = [_quadrant_patches(f1, di, dj, 5, K2_PAD) for di in (0, 1) for dj in (0, 1)]
    p2 = conv_relu_pool(q2, params["conv2_w"], params["conv2_b"])        # (N,25,128)

    # fc1+ReLU+fc2+ReLU+fc3, one fused kernel.  fc1 weights are laid out for the
    # (spatial, padded-channel) flatten of p2, so no channel slicing is needed.
    feats = p2.reshape(n, FC_K)                                          # (N,3200) bf16
    logits = fc_fused(feats, params["fc1_w"], params["fc1_b"],
                      params["fc2_w"], params["fc2_b"],
                      params["fc3_w"], params["fc3_b"])                  # (N,128) f32
    return logits[:, :10]


if __name__ == "__main__":
    key = jax.random.PRNGKey(0)
    k_params, k_input = jax.random.split(key)
    params = init_params(k_params)

    # LeNet-5 geometry requires 28x28 single-channel input (fc1 expects 16*5*5).
    img = jax.random.normal(k_input, (2, 1, 28, 28), dtype=jnp.float32)

    logits = lenet5_forward(params, img)
    jax.block_until_ready(logits)
    assert logits.shape == (2, 10), logits.shape
    print("KERNEL_OK")
</pallas_src>

<mosaic_0001>
module attributes {stable_mosaic.version = 11 : i64} {
  func.func @_conv_relu_pool_kernel(%arg0: i32, %arg1: memref<1x196x128xbf16, #tpu.memory_space<vmem>>, %arg2: memref<1x196x128xbf16, #tpu.memory_space<vmem>>, %arg3: memref<1x196x128xbf16, #tpu.memory_space<vmem>>, %arg4: memref<1x196x128xbf16, #tpu.memory_space<vmem>>, %arg5: memref<128x128xbf16, #tpu.memory_space<vmem>>, %arg6: memref<1x128xf32, #tpu.memory_space<vmem>>, %arg7: memref<1x196x128xbf16, #tpu.memory_space<vmem>>) attributes {dimension_semantics = [#tpu.dimension_semantics<parallel>], iteration_bounds = array<i64: 2>, scalar_prefetch = 0 : i64, scratch_operands = 0 : i64, tpu.core_type = #tpu.core_type<tc>, window_params = [{transform_indices = @transform_0, window_bounds = array<i64: 1, 196, 128>}, {transform_indices = @transform_1, window_bounds = array<i64: 1, 196, 128>}, {transform_indices = @transform_2, window_bounds = array<i64: 1, 196, 128>}, {transform_indices = @transform_3, window_bounds = array<i64: 1, 196, 128>}, {pipeline_mode = #tpu.pipeline_mode<synchronous>, transform_indices = @transform_4, window_bounds = array<i64: 128, 128>}, {pipeline_mode = #tpu.pipeline_mode<synchronous>, transform_indices = @transform_5, window_bounds = array<i64: 1, 128>}, {transform_indices = @transform_6, window_bounds = array<i64: 1, 196, 128>}]} {
    %c0 = arith.constant 0 : index
    %c0_0 = arith.constant 0 : index
    %0 = vector.load %arg5[%c0, %c0_0] : memref<128x128xbf16, #tpu.memory_space<vmem>>, vector<128x128xbf16>
    %c0_1 = arith.constant 0 : index
    %c0_2 = arith.constant 0 : index
    %1 = vector.load %arg6[%c0_1, %c0_2] : memref<1x128xf32, #tpu.memory_space<vmem>>, vector<1x128xf32>
    %c0_3 = arith.constant 0 : index
    %c0_4 = arith.constant 0 : index
    %c0_5 = arith.constant 0 : index
    %2 = vector.load %arg1[%c0_3, %c0_4, %c0_5] : memref<1x196x128xbf16, #tpu.memory_space<vmem>>, vector<1x196x128xbf16>
    %3 = vector.shape_cast %2 : vector<1x196x128xbf16> to vector<196x128xbf16>
    %cst = arith.constant dense<0.000000e+00> : vector<196x128xf32>
    %4 = tpu.matmul %3, %0, %cst {dimension_numbers = #tpu.dot_dimension_numbers<[1], [0], [0], [1], [0, 0, 1, 1], [], []>} : vector<196x128xbf16>, vector<128x128xbf16>, vector<196x128xf32> -> vector<196x128xf32>
    %5 = vector.broadcast %1 : vector<1x128xf32> to vector<196x128xf32>
    %6 = arith.addf %4, %5 : vector<196x128xf32>
    %cst_6 = arith.constant 0.000000e+00 : f32
    %7 = vector.broadcast %cst_6 : f32 to vector<196x128xf32>
    %8 = arith.maximumf %6, %7 : vector<196x128xf32>
    %c0_7 = arith.constant 0 : index
    %c0_8 = arith.constant 0 : index
    %c0_9 = arith.constant 0 : index
    %9 = vector.load %arg2[%c0_7, %c0_8, %c0_9] : memref<1x196x128xbf16, #tpu.memory_space<vmem>>, vector<1x196x128xbf16>
    %10 = vector.shape_cast %9 : vector<1x196x128xbf16> to vector<196x128xbf16>
    %cst_10 = arith.constant dense<0.000000e+00> : vector<196x128xf32>
    %11 = tpu.matmul %10, %0, %cst_10 {dimension_numbers = #tpu.dot_dimension_numbers<[1], [0], [0], [1], [0, 0, 1, 1], [], []>} : vector<196x128xbf16>, vector<128x128xbf16>, vector<196x128xf32> -> vector<196x128xf32>
    %12 = vector.broadcast %1 : vector<1x128xf32> to vector<196x128xf32>
    %13 = arith.addf %11, %12 : vector<196x128xf32>
    %cst_11 = arith.constant 0.000000e+00 : f32
    %14 = vector.broadcast %cst_11 : f32 to vector<196x128xf32>
    %15 = arith.maximumf %13, %14 : vector<196x128xf32>
    %16 = arith.maximumf %8, %15 : vector<196x128xf32>
    %c0_12 = arith.constant 0 : index
    %c0_13 = arith.constant 0 : index
    %c0_14 = arith.constant 0 : index
    %17 = vector.load %arg3[%c0_12, %c0_13, %c0_14] : memref<1x196x128xbf16, #tpu.memory_space<vmem>>, vector<1x196x128xbf16>
    %18 = vector.shape_cast %17 : vector<1x196x128xbf16> to vector<196x128xbf16>
    %cst_15 = arith.constant dense<0.000000e+00> : vector<196x128xf32>
    %19 = tpu.matmul %18, %0, %cst_15 {dimension_numbers = #tpu.dot_dimension_numbers<[1], [0], [0], [1], [0, 0, 1, 1], [], []>} : vector<196x128xbf16>, vector<128x128xbf16>, vector<196x128xf32> -> vector<196x128xf32>
    %20 = vector.broadcast %1 : vector<1x128xf32> to vector<196x128xf32>
    %21 = arith.addf %19, %20 : vector<196x128xf32>
    %cst_16 = arith.constant 0.000000e+00 : f32
    %22 = vector.broadcast %cst_16 : f32 to vector<196x128xf32>
    %23 = arith.maximumf %21, %22 : vector<196x128xf32>
    %c0_17 = arith.constant 0 : index
    %c0_18 = arith.constant 0 : index
    %c0_19 = arith.constant 0 : index
    %24 = vector.load %arg4[%c0_17, %c0_18, %c0_19] : memref<1x196x128xbf16, #tpu.memory_space<vmem>>, vector<1x196x128xbf16>
    %25 = vector.shape_cast %24 : vector<1x196x128xbf16> to vector<196x128xbf16>
    %cst_20 = arith.constant dense<0.000000e+00> : vector<196x128xf32>
    %26 = tpu.matmul %25, %0, %cst_20 {dimension_numbers = #tpu.dot_dimension_numbers<[1], [0], [0], [1], [0, 0, 1, 1], [], []>} : vector<196x128xbf16>, vector<128x128xbf16>, vector<196x128xf32> -> vector<196x128xf32>
    %27 = vector.broadcast %1 : vector<1x128xf32> to vector<196x128xf32>
    %28 = arith.addf %26, %27 : vector<196x128xf32>
    %cst_21 = arith.constant 0.000000e+00 : f32
    %29 = vector.broadcast %cst_21 : f32 to vector<196x128xf32>
    %30 = arith.maximumf %28, %29 : vector<196x128xf32>
    %31 = arith.maximumf %23, %30 : vector<196x128xf32>
    %32 = arith.maximumf %16, %31 : vector<196x128xf32>
    %33 = arith.truncf %32 : vector<196x128xf32> to vector<196x128xbf16>
    %c0_22 = arith.constant 0 : index
    %c0_23 = arith.constant 0 : index
    %c0_24 = arith.constant 0 : index
    %34 = vector.load %arg7[%c0_22, %c0_23, %c0_24] : memref<1x196x128xbf16, #tpu.memory_space<vmem>>, vector<1x196x128xbf16>
    %35 = vector.shape_cast %34 : vector<1x196x128xbf16> to vector<196x128xbf16>
    %36 = vector.shape_cast %33 : vector<196x128xbf16> to vector<1x196x128xbf16>
    tpu.vector_store %arg7[%c0_22, %c0_23, %c0_24], %36 {strides = array<i32>} : memref<1x196x128xbf16, #tpu.memory_space<vmem>>, vector<1x196x128xbf16>,
    return
  }
  func.func @transform_0(%arg0: i32) -> (i32, i32, i32) {
    %c0_i32 = arith.constant 0 : i32
    %c0_i32_0 = arith.constant 0 : i32
    %c0_i32_1 = arith.constant 0 : i32
    return %arg0, %c0_i32, %c0_i32_0 : i32, i32, i32
  }
  func.func @transform_1(%arg0: i32) -> (i32, i32, i32) {
    %c0_i32 = arith.constant 0 : i32
    %c0_i32_0 = arith.constant 0 : i32
    %c0_i32_1 = arith.constant 0 : i32
    return %arg0, %c0_i32, %c0_i32_0 : i32, i32, i32
  }
  func.func @transform_2(%arg0: i32) -> (i32, i32, i32) {
    %c0_i32 = arith.constant 0 : i32
    %c0_i32_0 = arith.constant 0 : i32
    %c0_i32_1 = arith.constant 0 : i32
    return %arg0, %c0_i32, %c0_i32_0 : i32, i32, i32
  }
  func.func @transform_3(%arg0: i32) -> (i32, i32, i32) {
    %c0_i32 = arith.constant 0 : i32
    %c0_i32_0 = arith.constant 0 : i32
    %c0_i32_1 = arith.constant 0 : i32
    return %arg0, %c0_i32, %c0_i32_0 : i32, i32, i32
  }
  func.func @transform_4(%arg0: i32) -> (i32, i32) {
    %c0_i32 = arith.constant 0 : i32
    %c0_i32_0 = arith.constant 0 : i32
    %c0_i32_1 = arith.constant 0 : i32
    return %c0_i32, %c0_i32_0 : i32, i32
  }
  func.func @transform_5(%arg0: i32) -> (i32, i32) {
    %c0_i32 = arith.constant 0 : i32
    %c0_i32_0 = arith.constant 0 : i32
    %c0_i32_1 = arith.constant 0 : i32
    return %c0_i32, %c0_i32_0 : i32, i32
  }
  func.func @transform_6(%arg0: i32) -> (i32, i32, i32) {
    %c0_i32 = arith.constant 0 : i32
    %c0_i32_0 = arith.constant 0 : i32
    %c0_i32_1 = arith.constant 0 : i32
    return %arg0, %c0_i32, %c0_i32_0 : i32, i32, i32
  }
}

module attributes {stable_mosaic.version = 11 : i64} {
  func.func @_conv_relu_pool_kernel(%arg0: i32, %arg1: memref<1x25x256xbf16, #tpu.memory_space<vmem>>, %arg2: memref<1x25x256xbf16, #tpu.memory_space<vmem>>, %arg3: memref<1x25x256xbf16, #tpu.memory_space<vmem>>, %arg4: memref<1x25x256xbf16, #tpu.memory_space<vmem>>, %arg5: memref<256x128xbf16, #tpu.memory_space<vmem>>, %arg6: memref<1x128xf32, #tpu.memory_space<vmem>>, %arg7: memref<1x25x128xbf16, #tpu.memory_space<vmem>>) attributes {dimension_semantics = [#tpu.dimension_semantics<parallel>], iteration_bounds = array<i64: 2>, scalar_prefetch = 0 : i64, scratch_operands = 0 : i64, tpu.core_type = #tpu.core_type<tc>, window_params = [{transform_indices = @transform_0, window_bounds = array<i64: 1, 25, 256>}, {transform_indices = @transform_1, window_bounds = array<i64: 1, 25, 256>}, {transform_indices = @transform_2, window_bounds = array<i64: 1, 25, 256>}, {transform_indices = @transform_3, window_bounds = array<i64: 1, 25, 256>}, {pipeline_mode = #tpu.pipeline_mode<synchronous>, transform_indices = @transform_4, window_bounds = array<i64: 256, 128>}, {pipeline_mode = #tpu.pipeline_mode<synchronous>, transform_indices = @transform_5, window_bounds = array<i64: 1, 128>}, {transform_indices = @transform_6, window_bounds = array<i64: 1, 25, 128>}]} {
    %c0 = arith.constant 0 : index
    %c0_0 = arith.constant 0 : index
    %0 = vector.load %arg5[%c0, %c0_0] : memref<256x128xbf16, #tpu.memory_space<vmem>>, vector<256x128xbf16>
    %c0_1 = arith.constant 0 : index
    %c0_2 = arith.constant 0 : index
    %1 = vector.load %arg6[%c0_1, %c0_2] : memref<1x128xf32, #tpu.memory_space<vmem>>, vector<1x128xf32>
    %c0_3 = arith.constant 0 : index
    %c0_4 = arith.constant 0 : index
    %c0_5 = arith.constant 0 : index
    %2 = vector.load %arg1[%c0_3, %c0_4, %c0_5] : memref<1x25x256xbf16, #tpu.memory_space<vmem>>, vector<1x25x256xbf16>
    %3 = vector.shape_cast %2 : vector<1x25x256xbf16> to vector<25x256xbf16>
    %cst = arith.constant dense<0.000000e+00> : vector<25x128xf32>
    %4 = tpu.matmul %3, %0, %cst {dimension_numbers = #tpu.dot_dimension_numbers<[1], [0], [0], [1], [0, 0, 1, 1], [], []>} : vector<25x256xbf16>, vector<256x128xbf16>, vector<25x128xf32> -> vector<25x128xf32>
    %5 = vector.broadcast %1 : vector<1x128xf32> to vector<25x128xf32>
    %6 = arith.addf %4, %5 : vector<25x128xf32>
    %cst_6 = arith.constant 0.000000e+00 : f32
    %7 = vector.broadcast %cst_6 : f32 to vector<25x128xf32>
    %8 = arith.maximumf %6, %7 : vector<25x128xf32>
    %c0_7 = arith.constant 0 : index
    %c0_8 = arith.constant 0 : index
    %c0_9 = arith.constant 0 : index
    %9 = vector.load %arg2[%c0_7, %c0_8, %c0_9] : memref<1x25x256xbf16, #tpu.memory_space<vmem>>, vector<1x25x256xbf16>
    %10 = vector.shape_cast %9 : vector<1x25x256xbf16> to vector<25x256xbf16>
    %cst_10 = arith.constant dense<0.000000e+00> : vector<25x128xf32>
    %11 = tpu.matmul %10, %0, %cst_10 {dimension_numbers = #tpu.dot_dimension_numbers<[1], [0], [0], [1], [0, 0, 1, 1], [], []>} : vector<25x256xbf16>, vector<256x128xbf16>, vector<25x128xf32> -> vector<25x128xf32>
    %12 = vector.broadcast %1 : vector<1x128xf32> to vector<25x128xf32>
    %13 = arith.addf %11, %12 : vector<25x128xf32>
    %cst_11 = arith.constant 0.000000e+00 : f32
    %14 = vector.broadcast %cst_11 : f32 to vector<25x128xf32>
    %15 = arith.maximumf %13, %14 : vector<25x128xf32>
    %16 = arith.maximumf %8, %15 : vector<25x128xf32>
    %c0_12 = arith.constant 0 : index
    %c0_13 = arith.constant 0 : index
    %c0_14 = arith.constant 0 : index
    %17 = vector.load %arg3[%c0_12, %c0_13, %c0_14] : memref<1x25x256xbf16, #tpu.memory_space<vmem>>, vector<1x25x256xbf16>
    %18 = vector.shape_cast %17 : vector<1x25x256xbf16> to vector<25x256xbf16>
    %cst_15 = arith.constant dense<0.000000e+00> : vector<25x128xf32>
    %19 = tpu.matmul %18, %0, %cst_15 {dimension_numbers = #tpu.dot_dimension_numbers<[1], [0], [0], [1], [0, 0, 1, 1], [], []>} : vector<25x256xbf16>, vector<256x128xbf16>, vector<25x128xf32> -> vector<25x128xf32>
    %20 = vector.broadcast %1 : vector<1x128xf32> to vector<25x128xf32>
    %21 = arith.addf %19, %20 : vector<25x128xf32>
    %cst_16 = arith.constant 0.000000e+00 : f32
    %22 = vector.broadcast %cst_16 : f32 to vector<25x128xf32>
    %23 = arith.maximumf %21, %22 : vector<25x128xf32>
    %c0_17 = arith.constant 0 : index
    %c0_18 = arith.constant 0 : index
    %c0_19 = arith.constant 0 : index
    %24 = vector.load %arg4[%c0_17, %c0_18, %c0_19] : memref<1x25x256xbf16, #tpu.memory_space<vmem>>, vector<1x25x256xbf16>
    %25 = vector.shape_cast %24 : vector<1x25x256xbf16> to vector<25x256xbf16>
    %cst_20 = arith.constant dense<0.000000e+00> : vector<25x128xf32>
    %26 = tpu.matmul %25, %0, %cst_20 {dimension_numbers = #tpu.dot_dimension_numbers<[1], [0], [0], [1], [0, 0, 1, 1], [], []>} : vector<25x256xbf16>, vector<256x128xbf16>, vector<25x128xf32> -> vector<25x128xf32>
    %27 = vector.broadcast %1 : vector<1x128xf32> to vector<25x128xf32>
    %28 = arith.addf %26, %27 : vector<25x128xf32>
    %cst_21 = arith.constant 0.000000e+00 : f32
    %29 = vector.broadcast %cst_21 : f32 to vector<25x128xf32>
    %30 = arith.maximumf %28, %29 : vector<25x128xf32>
    %31 = arith.maximumf %23, %30 : vector<25x128xf32>
    %32 = arith.maximumf %16, %31 : vector<25x128xf32>
    %33 = arith.truncf %32 : vector<25x128xf32> to vector<25x128xbf16>
    %c0_22 = arith.constant 0 : index
    %c0_23 = arith.constant 0 : index
    %c0_24 = arith.constant 0 : index
    %34 = vector.load %arg7[%c0_22, %c0_23, %c0_24] : memref<1x25x128xbf16, #tpu.memory_space<vmem>>, vector<1x25x128xbf16>
    %35 = vector.shape_cast %34 : vector<1x25x128xbf16> to vector<25x128xbf16>
    %36 = vector.shape_cast %33 : vector<25x128xbf16> to vector<1x25x128xbf16>
    tpu.vector_store %arg7[%c0_22, %c0_23, %c0_24], %36 {strides = array<i32>} : memref<1x25x128xbf16, #tpu.memory_space<vmem>>, vector<1x25x128xbf16>,
    return
  }
  func.func @transform_0(%arg0: i32) -> (i32, i32, i32) {
    %c0_i32 = arith.constant 0 : i32
    %c0_i32_0 = arith.constant 0 : i32
    %c0_i32_1 = arith.constant 0 : i32
    return %arg0, %c0_i32, %c0_i32_0 : i32, i32, i32
  }
  func.func @transform_1(%arg0: i32) -> (i32, i32, i32) {
    %c0_i32 = arith.constant 0 : i32
    %c0_i32_0 = arith.constant 0 : i32
    %c0_i32_1 = arith.constant 0 : i32
    return %arg0, %c0_i32, %c0_i32_0 : i32, i32, i32
  }
  func.func @transform_2(%arg0: i32) -> (i32, i32, i32) {
    %c0_i32 = arith.constant 0 : i32
    %c0_i32_0 = arith.constant 0 : i32
    %c0_i32_1 = arith.constant 0 : i32
    return %arg0, %c0_i32, %c0_i32_0 : i32, i32, i32
  }
  func.func @transform_3(%arg0: i32) -> (i32, i32, i32) {
    %c0_i32 = arith.constant 0 : i32
    %c0_i32_0 = arith.constant 0 : i32
    %c0_i32_1 = arith.constant 0 : i32
    return %arg0, %c0_i32, %c0_i32_0 : i32, i32, i32
  }
  func.func @transform_4(%arg0: i32) -> (i32, i32) {
    %c0_i32 = arith.constant 0 : i32
    %c0_i32_0 = arith.constant 0 : i32
    %c0_i32_1 = arith.constant 0 : i32
    return %c0_i32, %c0_i32_0 : i32, i32
  }
  func.func @transform_5(%arg0: i32) -> (i32, i32) {
    %c0_i32 = arith.constant 0 : i32
    %c0_i32_0 = arith.constant 0 : i32
    %c0_i32_1 = arith.constant 0 : i32
    return %c0_i32, %c0_i32_0 : i32, i32
  }
  func.func @transform_6(%arg0: i32) -> (i32, i32, i32) {
    %c0_i32 = arith.constant 0 : i32
    %c0_i32_0 = arith.constant 0 : i32
    %c0_i32_1 = arith.constant 0 : i32
    return %arg0, %c0_i32, %c0_i32_0 : i32, i32, i32
  }
}

module attributes {stable_mosaic.version = 11 : i64} {
  func.func @_fc_fused_kernel(%arg0: i32, %arg1: memref<8x3200xbf16, #tpu.memory_space<vmem>>, %arg2: memref<3200x128xbf16, #tpu.memory_space<vmem>>, %arg3: memref<1x128xf32, #tpu.memory_space<vmem>>, %arg4: memref<128x128xbf16, #tpu.memory_space<vmem>>, %arg5: memref<1x128xf32, #tpu.memory_space<vmem>>, %arg6: memref<128x128xbf16, #tpu.memory_space<vmem>>, %arg7: memref<1x128xf32, #tpu.memory_space<vmem>>, %arg8: memref<8x128xf32, #tpu.memory_space<vmem>>) attributes {dimension_semantics = [#tpu.dimension_semantics<parallel>], iteration_bounds = array<i64: 1>, scalar_prefetch = 0 : i64, scratch_operands = 0 : i64, tpu.core_type = #tpu.core_type<tc>, window_params = [{transform_indices = @transform_0, window_bounds = array<i64: 8, 3200>}, {pipeline_mode = #tpu.pipeline_mode<synchronous>, transform_indices = @transform_1, window_bounds = array<i64: 3200, 128>}, {pipeline_mode = #tpu.pipeline_mode<synchronous>, transform_indices = @transform_2, window_bounds = array<i64: 1, 128>}, {pipeline_mode = #tpu.pipeline_mode<synchronous>, transform_indices = @transform_3, window_bounds = array<i64: 128, 128>}, {pipeline_mode = #tpu.pipeline_mode<synchronous>, transform_indices = @transform_4, window_bounds = array<i64: 1, 128>}, {pipeline_mode = #tpu.pipeline_mode<synchronous>, transform_indices = @transform_5, window_bounds = array<i64: 128, 128>}, {pipeline_mode = #tpu.pipeline_mode<synchronous>, transform_indices = @transform_6, window_bounds = array<i64: 1, 128>}, {transform_indices = @transform_7, window_bounds = array<i64: 8, 128>}]} {
    %c0 = arith.constant 0 : index
    %c0_0 = arith.constant 0 : index
    %0 = vector.load %arg1[%c0, %c0_0] : memref<8x3200xbf16, #tpu.memory_space<vmem>>, vector<8x3200xbf16>
    %c0_1 = arith.constant 0 : index
    %c0_2 = arith.constant 0 : index
    %1 = vector.load %arg2[%c0_1, %c0_2] : memref<3200x128xbf16, #tpu.memory_space<vmem>>, vector<3200x128xbf16>
    %cst = arith.constant dense<0.000000e+00> : vector<8x128xf32>
    %2 = tpu.matmul %0, %1, %cst {dimension_numbers = #tpu.dot_dimension_numbers<[1], [0], [0], [1], [0, 0, 1, 1], [], []>} : vector<8x3200xbf16>, vector<3200x128xbf16>, vector<8x128xf32> -> vector<8x128xf32>
    %c0_3 = arith.constant 0 : index
    %c0_4 = arith.constant 0 : index
    %3 = vector.load %arg3[%c0_3, %c0_4] : memref<1x128xf32, #tpu.memory_space<vmem>>, vector<1x128xf32>
    %4 = vector.broadcast %3 : vector<1x128xf32> to vector<8x128xf32>
    %5 = arith.addf %2, %4 : vector<8x128xf32>
    %cst_5 = arith.constant 0.000000e+00 : f32
    %6 = vector.broadcast %cst_5 : f32 to vector<8x128xf32>
    %7 = arith.maximumf %5, %6 : vector<8x128xf32>
    %8 = arith.truncf %7 : vector<8x128xf32> to vector<8x128xbf16>
    %c0_6 = arith.constant 0 : index
    %c0_7 = arith.constant 0 : index
    %9 = vector.load %arg4[%c0_6, %c0_7] : memref<128x128xbf16, #tpu.memory_space<vmem>>, vector<128x128xbf16>
    %cst_8 = arith.constant dense<0.000000e+00> : vector<8x128xf32>
    %10 = tpu.matmul %8, %9, %cst_8 {dimension_numbers = #tpu.dot_dimension_numbers<[1], [0], [0], [1], [0, 0, 1, 1], [], []>} : vector<8x128xbf16>, vector<128x128xbf16>, vector<8x128xf32> -> vector<8x128xf32>
    %c0_9 = arith.constant 0 : index
    %c0_10 = arith.constant 0 : index
    %11 = vector.load %arg5[%c0_9, %c0_10] : memref<1x128xf32, #tpu.memory_space<vmem>>, vector<1x128xf32>
    %12 = vector.broadcast %11 : vector<1x128xf32> to vector<8x128xf32>
    %13 = arith.addf %10, %12 : vector<8x128xf32>
    %cst_11 = arith.constant 0.000000e+00 : f32
    %14 = vector.broadcast %cst_11 : f32 to vector<8x128xf32>
    %15 = arith.maximumf %13, %14 : vector<8x128xf32>
    %16 = arith.truncf %15 : vector<8x128xf32> to vector<8x128xbf16>
    %c0_12 = arith.constant 0 : index
    %c0_13 = arith.constant 0 : index
    %17 = vector.load %arg6[%c0_12, %c0_13] : memref<128x128xbf16, #tpu.memory_space<vmem>>, vector<128x128xbf16>
    %cst_14 = arith.constant dense<0.000000e+00> : vector<8x128xf32>
    %18 = tpu.matmul %16, %17, %cst_14 {dimension_numbers = #tpu.dot_dimension_numbers<[1], [0], [0], [1], [0, 0, 1, 1], [], []>} : vector<8x128xbf16>, vector<128x128xbf16>, vector<8x128xf32> -> vector<8x128xf32>
    %c0_15 = arith.constant 0 : index
    %c0_16 = arith.constant 0 : index
    %19 = vector.load %arg7[%c0_15, %c0_16] : memref<1x128xf32, #tpu.memory_space<vmem>>, vector<1x128xf32>
    %20 = vector.broadcast %19 : vector<1x128xf32> to vector<8x128xf32>
    %21 = arith.addf %18, %20 : vector<8x128xf32>
    %c0_17 = arith.constant 0 : index
    %c0_18 = arith.constant 0 : index
    %22 = vector.load %arg8[%c0_17, %c0_18] : memref<8x128xf32, #tpu.memory_space<vmem>>, vector<8x128xf32>
    tpu.vector_store %arg8[%c0_17, %c0_18], %21 {strides = array<i32>} : memref<8x128xf32, #tpu.memory_space<vmem>>, vector<8x128xf32>,
    return
  }
  func.func @transform_0(%arg0: i32) -> (i32, i32) {
    %c0_i32 = arith.constant 0 : i32
    %c0_i32_0 = arith.constant 0 : i32
    return %arg0, %c0_i32 : i32, i32
  }
  func.func @transform_1(%arg0: i32) -> (i32, i32) {
    %c0_i32 = arith.constant 0 : i32
    %c0_i32_0 = arith.constant 0 : i32
    %c0_i32_1 = arith.constant 0 : i32
    return %c0_i32, %c0_i32_0 : i32, i32
  }
  func.func @transform_2(%arg0: i32) -> (i32, i32) {
    %c0_i32 = arith.constant 0 : i32
    %c0_i32_0 = arith.constant 0 : i32
    %c0_i32_1 = arith.constant 0 : i32
    return %c0_i32, %c0_i32_0 : i32, i32
  }
  func.func @transform_3(%arg0: i32) -> (i32, i32) {
    %c0_i32 = arith.constant 0 : i32
    %c0_i32_0 = arith.constant 0 : i32
    %c0_i32_1 = arith.constant 0 : i32
    return %c0_i32, %c0_i32_0 : i32, i32
  }
  func.func @transform_4(%arg0: i32) -> (i32, i32) {
    %c0_i32 = arith.constant 0 : i32
    %c0_i32_0 = arith.constant 0 : i32
    %c0_i32_1 = arith.constant 0 : i32
    return %c0_i32, %c0_i32_0 : i32, i32
  }
  func.func @transform_5(%arg0: i32) -> (i32, i32) {
    %c0_i32 = arith.constant 0 : i32
    %c0_i32_0 = arith.constant 0 : i32
    %c0_i32_1 = arith.constant 0 : i32
    return %c0_i32, %c0_i32_0 : i32, i32
  }
  func.func @transform_6(%arg0: i32) -> (i32, i32) {
    %c0_i32 = arith.constant 0 : i32
    %c0_i32_0 = arith.constant 0 : i32
    %c0_i32_1 = arith.constant 0 : i32
    return %c0_i32, %c0_i32_0 : i32, i32
  }
  func.func @transform_7(%arg0: i32) -> (i32, i32) {
    %c0_i32 = arith.constant 0 : i32
    %c0_i32_0 = arith.constant 0 : i32
    return %arg0, %c0_i32 : i32, i32
  }
}

</mosaic_0001>

<llo_original>
// kernel: lenet5_forward.3
$region0: #{lenet5_forward.3}
  #allocation0 [shape = 'u32[]', space=smem, size = 0x4, offset = 0x4, fixed_abs, tag = 'smem constant byte address 0x4 - core index']
  #allocation1 [shape = 'u32[144,128]{1,0:T(1,128)}', space=vmem, size = 0x12000, scoped, tag = 'internal scratch']
  %s0 = inlined_call_operand.vmem [shape: bf16[2,196,128], index: 0, kind: input, shape index: {}]
  %s1 = inlined_call_operand.vmem [shape: bf16[2,196,128], index: 1, kind: input, shape index: {}]
  %s2 = inlined_call_operand.vmem [shape: bf16[2,196,128], index: 2, kind: input, shape index: {}]
  %s3 = inlined_call_operand.vmem [shape: bf16[2,196,128], index: 3, kind: input, shape index: {}]
  %s4 = inlined_call_operand.vmem [shape: bf16[128,128], index: 4, kind: input, shape index: {}]
  %s5 = inlined_call_operand.vmem [shape: f32[1,128], index: 5, kind: input, shape index: {}]
  %s6 = inlined_call_operand.vmem [shape: bf16[2,196,128], index: 6, kind: output, shape index: {}]
  %s7 = sld [smem:[#allocation0]]
  $region57: #{lenet5_forward.3} parent=0
    _
  %s9 = ssub.s32 1, %s7
  %s10 = scalar_select 0, %s9, %s7
  loop: start=0, step=1, limit=4
  $region2: #{lenet5_forward.3} parent=0 // loop_pre_header
    _
  $region3: #{lenet5_forward.3} parent=0 // loop_header
    %s12 = sphi 0, %s16
    %p13 = scmp.ge.s32.totalorder %s12, 4
    %s22 = sphi 0, %s24
    %s25 = sphi 0, %s22
    %s26 = sphi 0, %s25
    %s42 = sphi 0, %s26
    %s48 = sphi 0, %s50
    %s51 = sphi 0, %s48
    %s52 = sphi 0, %s51
    %s68 = sphi 0, %s52
    %s74 = sphi 0, %s76
    %s77 = sphi 0, %s74
    %s78 = sphi 0, %s77
    %s94 = sphi 0, %s78
    %s100 = sphi 0, %s102
    %s103 = sphi 0, %s100
    %s104 = sphi 0, %s103
    %s120 = sphi 0, %s104
    %s124 = sphi 0, %s124
    %s126 = sphi 0, %s124
    %s127 = sphi 0, %s126
    %s141 = sphi 0, %s127
    %s145 = sphi 0, %s145
    %s147 = sphi 0, %s145
    %s148 = sphi 0, %s147
    %s162 = sphi 0, %s148
    %s168 = sphi 0, %s170
    %s171 = sphi 0, %s168
    %s172 = sphi 0, %s171
    %s188 = sphi 0, %s172
  $region4: #{lenet5_forward.3} parent=0 // loop_header_branch
    %15 = sbr.rel (%p13) target = $region8
  $region5: #{lenet5_forward.3} parent=0 // loop_body
    %s17 = ssub.s32 %s12, 1
    %s18 = ssub.s32 %s12, 2
    %s19 = sadd.s32 %s12, 1
    %s20 = ssub.s32 %s12, %s19
    %p21 = scmp.eq.s32.totalorder %s20, 0
    %s23 = sadd.s32 %s22, 1
    %s24 = scalar_select %p21, %s22, %s23
    %p27 = pneg %p21
    %p28 = scmp.eq.s32.totalorder %s12, 1
    %p29 = por %p27, %p28
    %p30 = scmp.ne.s32.totalorder %s22, %s25
    %p31 = scmp.eq.s32.totalorder %s12, 0
    %p32 = por %p30, %p31
    %p33 = scmp.ne.s32.totalorder %s22, %s25
    %p34 = scmp.eq.s32.totalorder %s17, 1
    %p35 = por %p33, %p34
    %p36 = scmp.ne.s32.totalorder %s25, %s26
    %p37 = scmp.eq.s32.totalorder %s17, 0
    %p38 = por %p36, %p37
    %p39 = scmp.ne.s32.totalorder %s25, %s26
    %p40 = scmp.eq.s32.totalorder %s18, 1
    %p41 = por %p39, %p40
    %p43 = scmp.ne.s32.totalorder %s26, %s42
    %p44 = scmp.eq.s32.totalorder %s18, 0
    %p45 = por %p43, %p44
    %s46 = ssub.s32 %s12, %s19
    %p47 = scmp.eq.s32.totalorder %s46, 0
    %s49 = sadd.s32 %s48, 1
    %s50 = scalar_select %p47, %s48, %s49
    %p53 = pneg %p47
    %p54 = scmp.eq.s32.totalorder %s12, 1
    %p55 = por %p53, %p54
    %p56 = scmp.ne.s32.totalorder %s48, %s51
    %p57 = scmp.eq.s32.totalorder %s12, 0
    %p58 = por %p56, %p57
    %p59 = scmp.ne.s32.totalorder %s48, %s51
    %p60 = scmp.eq.s32.totalorder %s17, 1
    %p61 = por %p59, %p60
    %p62 = scmp.ne.s32.totalorder %s51, %s52
    %p63 = scmp.eq.s32.totalorder %s17, 0
    %p64 = por %p62, %p63
    %p65 = scmp.ne.s32.totalorder %s51, %s52
    %p66 = scmp.eq.s32.totalorder %s18, 1
    %p67 = por %p65, %p66
    %p69 = scmp.ne.s32.totalorder %s52, %s68
    %p70 = scmp.eq.s32.totalorder %s18, 0
    %p71 = por %p69, %p70
    %s72 = ssub.s32 %s12, %s19
    %p73 = scmp.eq.s32.totalorder %s72, 0
    %s75 = sadd.s32 %s74, 1
    %s76 = scalar_select %p73, %s74, %s75
    %p79 = pneg %p73
    %p80 = scmp.eq.s32.totalorder %s12, 1
    %p81 = por %p79, %p80
    %p82 = scmp.ne.s32.totalorder %s74, %s77
    %p83 = scmp.eq.s32.totalorder %s12, 0
    %p84 = por %p82, %p83
    %p85 = scmp.ne.s32.totalorder %s74, %s77
    %p86 = scmp.eq.s32.totalorder %s17, 1
    %p87 = por %p85, %p86
    %p88 = scmp.ne.s32.totalorder %s77, %s78
    %p89 = scmp.eq.s32.totalorder %s17, 0
    %p90 = por %p88, %p89
    %p91 = scmp.ne.s32.totalorder %s77, %s78
    %p92 = scmp.eq.s32.totalorder %s18, 1
    %p93 = por %p91, %p92
    %p95 = scmp.ne.s32.totalorder %s78, %s94
    %p96 = scmp.eq.s32.totalorder %s18, 0
    %p97 = por %p95, %p96
    %s98 = ssub.s32 %s12, %s19
    %p99 = scmp.eq.s32.totalorder %s98, 0
    %s101 = sadd.s32 %s100, 1
    %s102 = scalar_select %p99, %s100, %s101
    %p105 = pneg %p99
    %p106 = scmp.eq.s32.totalorder %s12, 1
    %p107 = por %p105, %p106
    %p108 = scmp.ne.s32.totalorder %s100, %s103
    %p109 = scmp.eq.s32.totalorder %s12, 0
    %p110 = por %p108, %p109
    %p111 = scmp.ne.s32.totalorder %s100, %s103
    %p112 = scmp.eq.s32.totalorder %s17, 1
    %p113 = por %p111, %p112
    %p114 = scmp.ne.s32.totalorder %s103, %s104
    %p115 = scmp.eq.s32.totalorder %s17, 0
    %p116 = por %p114, %p115
    %p117 = scmp.ne.s32.totalorder %s103, %s104
    %p118 = scmp.eq.s32.totalorder %s18, 1
    %p119 = por %p117, %p118
    %p121 = scmp.ne.s32.totalorder %s104, %s120
    %p122 = scmp.eq.s32.totalorder %s18, 0
    %p123 = por %p121, %p122
    %s125 = sadd.s32 %s124, 1
    %p128 = scmp.eq.s32.totalorder %s12, 1
    %p129 = scmp.ne.s32.totalorder %s124, %s126
    %p130 = scmp.eq.s32.totalorder %s12, 0
    %p131 = por %p129, %p130
    %p132 = scmp.ne.s32.totalorder %s124, %s126
    %p133 = scmp.eq.s32.totalorder %s17, 1
    %p134 = por %p132, %p133
    %p135 = scmp.ne.s32.totalorder %s126, %s127
    %p136 = scmp.eq.s32.totalorder %s17, 0
    %p137 = por %p135, %p136
    %p138 = scmp.ne.s32.totalorder %s126, %s127
    %p139 = scmp.eq.s32.totalorder %s18, 1
    %p140 = por %p138, %p139
    %p142 = scmp.ne.s32.totalorder %s127, %s141
    %p143 = scmp.eq.s32.totalorder %s18, 0
    %p144 = por %p142, %p143
    %s146 = sadd.s32 %s145, 1
    %p149 = scmp.eq.s32.totalorder %s12, 1
    %p150 = scmp.ne.s32.totalorder %s145, %s147
    %p151 = scmp.eq.s32.totalorder %s12, 0
    %p152 = por %p150, %p151
    %p153 = scmp.ne.s32.totalorder %s145, %s147
    %p154 = scmp.eq.s32.totalorder %s17, 1
    %p155 = por %p153, %p154
    %p156 = scmp.ne.s32.totalorder %s147, %s148
    %p157 = scmp.eq.s32.totalorder %s17, 0
    %p158 = por %p156, %p157
    %p159 = scmp.ne.s32.totalorder %s147, %s148
    %p160 = scmp.eq.s32.totalorder %s18, 1
    %p161 = por %p159, %p160
    %p163 = scmp.ne.s32.totalorder %s148, %s162
    %p164 = scmp.eq.s32.totalorder %s18, 0
    %p165 = por %p163, %p164
    %s166 = ssub.s32 %s12, %s19
    %p167 = scmp.eq.s32.totalorder %s166, 0
    %s169 = sadd.s32 %s168, 1
    %s170 = scalar_select %p167, %s168, %s169
    %p173 = pneg %p167
    %p174 = scmp.eq.s32.totalorder %s12, 1
    %p175 = por %p173, %p174
    %p176 = scmp.ne.s32.totalorder %s168, %s171
    %p177 = scmp.eq.s32.totalorder %s12, 0
    %p178 = por %p176, %p177
    %p179 = scmp.ne.s32.totalorder %s168, %s171
    %p180 = scmp.eq.s32.totalorder %s17, 1
    %p181 = por %p179, %p180
    %p182 = scmp.ne.s32.totalorder %s171, %s172
    %p183 = scmp.eq.s32.totalorder %s17, 0
    %p184 = por %p182, %p183
    %p185 = scmp.ne.s32.totalorder %s171, %s172
    %p186 = scmp.eq.s32.totalorder %s18, 1
    %p187 = por %p185, %p186
    %p189 = scmp.ne.s32.totalorder %s172, %s188
    %p190 = scmp.eq.s32.totalorder %s18, 0
    %p191 = por %p189, %p190
    %p192 = scmp.le.s32.totalorder 1, %s12
    %p193 = scmp.lt.s32.totalorder %s12, 3
    %p194 = pnand %p192, %p193
    %p195 = pneg %p194
    // Predicated region
    $region9: #{lenet5_forward.3} parent=5 // pred_check
      _
    $region10: #{lenet5_forward.3} parent=5 // pred_check_branch
      %197 = sbr.rel (%p194) target = $region12
    $region11: #{lenet5_forward.3} parent=5 // pred_region
      %s198 = ssub.s32 %s12, 1
      // Predicated region
      $region13: #{lenet5_forward.3} parent=11 // pred_check
        %p199 = pneg %p137
      $region14: #{lenet5_forward.3} parent=11 // pred_check_branch
        %201 = sbr.rel (%p199) target = $region16
      $region15: #{lenet5_forward.3} parent=11 // pred_region
        _
      $region16: #{lenet5_forward.3} parent=11 // pred_fallthru
        _
      // Predicated region
      $region17: #{lenet5_forward.3} parent=11 // pred_check
        %p202 = pneg %p158
      $region18: #{lenet5_forward.3} parent=11 // pred_check_branch
        %204 = sbr.rel (%p202) target = $region20
      $region19: #{lenet5_forward.3} parent=11 // pred_region
        _
      $region20: #{lenet5_forward.3} parent=11 // pred_fallthru
        _
    $region12: #{lenet5_forward.3} parent=5 // pred_fallthru
      _
    %p205 = scmp.lt.s32.totalorder %s12, 2
    // Predicated region
    $region21: #{lenet5_forward.3} parent=5 // pred_check
      %p206 = pneg %p205
    $region22: #{lenet5_forward.3} parent=5 // pred_check_branch
      %208 = sbr.rel (%p206) target = $region24
    $region23: #{lenet5_forward.3} parent=5 // pred_region
      // Predicated region
      $region25: #{lenet5_forward.3} parent=23 // pred_check
        %p209 = pneg %p32
      $region26: #{lenet5_forward.3} parent=23 // pred_check_branch
        %211 = sbr.rel (%p209) target = $region28
      $region27: #{lenet5_forward.3} parent=23 // pred_region
        %p212 = scmp.lt.s32.totalorder %s12, 1
        %s213 = scalar_select %p212, %s12, 1
        %s214 = smul.addr %s213, 25
        %s215 = smul.addr %s214, 4
        %s216 = scalar_lea.vmem %s0, %s215
      $region28: #{lenet5_forward.3} parent=23 // pred_fallthru
        _
      // Predicated region
      $region29: #{lenet5_forward.3} parent=23 // pred_check
        %p217 = pneg %p58
      $region30: #{lenet5_forward.3} parent=23 // pred_check_branch
        %219 = sbr.rel (%p217) target = $region32
      $region31: #{lenet5_forward.3} parent=23 // pred_region
        %p220 = scmp.lt.s32.totalorder %s12, 1
        %s221 = scalar_select %p220, %s12, 1
        %s222 = smul.addr %s221, 25
        %s223 = smul.addr %s222, 4
        %s224 = scalar_lea.vmem %s1, %s223
      $region32: #{lenet5_forward.3} parent=23 // pred_fallthru
        _
      // Predicated region
      $region33: #{lenet5_forward.3} parent=23 // pred_check
        %p225 = pneg %p84
      $region34: #{lenet5_forward.3} parent=23 // pred_check_branch
        %227 = sbr.rel (%p225) target = $region36
      $region35: #{lenet5_forward.3} parent=23 // pred_region
        %p228 = scmp.lt.s32.totalorder %s12, 1
        %s229 = scalar_select %p228, %s12, 1
        %s230 = smul.addr %s229, 25
        %s231 = smul.addr %s230, 4
        %s232 = scalar_lea.vmem %s2, %s231
      $region36: #{lenet5_forward.3} parent=23 // pred_fallthru
        _
      // Predicated region
      $region37: #{lenet5_forward.3} parent=23 // pred_check
        %p233 = pneg %p110
      $region38: #{lenet5_forward.3} parent=23 // pred_check_branch
        %235 = sbr.rel (%p233) target = $region40
      $region39: #{lenet5_forward.3} parent=23 // pred_region
        %p236 = scmp.lt.s32.totalorder %s12, 1
        %s237 = scalar_select %p236, %s12, 1
        %s238 = smul.addr %s237, 25
        %s239 = smul.addr %s238, 4
        %s240 = scalar_lea.vmem %s3, %s239
      $region40: #{lenet5_forward.3} parent=23 // pred_fallthru
        _
    $region24: #{lenet5_forward.3} parent=5 // pred_fallthru
      _
    %p241 = scmp.le.s32.totalorder 1, %s12
    %p242 = scmp.lt.s32.totalorder %s12, 3
    %p243 = pnand %p241, %p242
    %p244 = pneg %p243
    // Predicated region
    $region41: #{lenet5_forward.3} parent=5 // pred_check
      _
    $region42: #{lenet5_forward.3} parent=5 // pred_check_branch
      %246 = sbr.rel (%p243) target = $region44
    $region43: #{lenet5_forward.3} parent=5 // pred_region
      %s247 = ssub.s32 %s12, 1
      %p248 = scmp.lt.s32.totalorder %s17, 1
      %s249 = scalar_select %p248, %s17, 1
      %s250 = smul.addr %s249, 25
      %s251 = smul.addr %s250, 4
      %s252 = scalar_lea.vmem %s0, %s251
      %p253 = pneg %p38
      %p254 = pneg %p35
      %p255 = scmp.lt.s32.totalorder %s17, 1
      %s256 = scalar_select %p255, %s17, 1
      %s257 = smul.addr %s256, 25
      %s258 = smul.addr %s257, 4
      %s259 = scalar_lea.vmem %s1, %s258
      %p260 = pneg %p64
      %p261 = pneg %p61
      %p262 = scmp.lt.s32.totalorder %s17, 1
      %s263 = scalar_select %p262, %s17, 1
      %s264 = smul.addr %s263, 25
      %s265 = smul.addr %s264, 4
      %s266 = scalar_lea.vmem %s2, %s265
      %p267 = pneg %p90
      %p268 = pneg %p87
      %p269 = scmp.lt.s32.totalorder %s17, 1
      %s270 = scalar_select %p269, %s17, 1
      %s271 = smul.addr %s270, 25
      %s272 = smul.addr %s271, 4
      %s273 = scalar_lea.vmem %s3, %s272
      %p274 = pneg %p116
      %p275 = pneg %p113
      %p276 = pneg %p137
      %p277 = pneg %p134
      %p278 = pneg %p158
      %p279 = pneg %p155
      %p280 = pneg %p184
      %p281 = pneg %p181
      %p282 = scmp.lt.s32.totalorder %s17, 1
      %s283 = scalar_select %p282, %s17, 1
      %s284 = smul.addr %s283, 25
      %s285 = smul.addr %s284, 4
      %s286 = scalar_lea.vmem %s6, %s285
      %p287 = scmp.lt.s32.totalorder %s17, 1
      %s288 = scalar_select %p287, %s17, 1
      %s289 = smul.addr %s288, 25
      %s290 = smul.addr %s289, 4
      %s291 = scalar_lea.vmem %s0, %s290
      %p292 = scmp.lt.s32.totalorder %s17, 1
      %s293 = scalar_select %p292, %s17, 1
      %s294 = smul.addr %s293, 25
      %s295 = smul.addr %s294, 4
      %s296 = scalar_lea.vmem %s1, %s295
      %p297 = scmp.lt.s32.totalorder %s17, 1
      %s298 = scalar_select %p297, %s17, 1
      %s299 = smul.addr %s298, 25
      %s300 = smul.addr %s299, 4
      %s301 = scalar_lea.vmem %s2, %s300
      %p302 = scmp.lt.s32.totalorder %s17, 1
      %s303 = scalar_select %p302, %s17, 1
      %s304 = smul.addr %s303, 25
      %s305 = smul.addr %s304, 4
      %s306 = scalar_lea.vmem %s3, %s305
      %p307 = scmp.lt.s32.totalorder %s17, 1
      %s308 = scalar_select %p307, %s17, 1
      %s309 = smul.addr %s308, 25
      %s310 = smul.addr %s309, 4
      %s311 = scalar_lea.vmem %s6, %s310
      %v313 = vld [vmem:[%s4] sm:$0xf]
      %v314 = vld [vmem:[%s4 + $0x4] sm:$0xf]
      %v315 = vld [vmem:[%s4 + $0x8] sm:$0xf]
      %v316 = vld [vmem:[%s4 + $0xc] sm:$0xf]
      %v317 = vld [vmem:[%s4 + $0x10] sm:$0xf]
      %v318 = vld [vmem:[%s4 + $0x14] sm:$0xf]
      %v319 = vld [vmem:[%s4 + $0x18] sm:$0xf]
      %v320 = vld [vmem:[%s4 + $0x1c] sm:$0xf]
      %v321 = vld [vmem:[%s4 + $0x20] sm:$0xf]
      %v322 = vld [vmem:[%s4 + $0x24] sm:$0xf]
      %v323 = vld [vmem:[%s4 + $0x28] sm:$0xf]
      %v324 = vld [vmem:[%s4 + $0x2c] sm:$0xf]
      %v325 = vld [vmem:[%s4 + $0x30] sm:$0xf]
      %v326 = vld [vmem:[%s4 + $0x34] sm:$0xf]
      %v327 = vld [vmem:[%s4 + $0x38] sm:$0xf]
      %v328 = vld [vmem:[%s4 + $0x3c] sm:$0xf]
      %v329 = vld [vmem:[%s5] sm:$0x1]
      %v330 = vld [vmem:[%s291] sm:$0xf]
      %v331 = vld [vmem:[%s291 + $0x4] sm:$0xf]
      %v332 = vld [vmem:[%s291 + $0x8] sm:$0xf]
      %v333 = vld [vmem:[%s291 + $0xc] sm:$0xf]
      %v334 = vld [vmem:[%s291 + $0x10] sm:$0xf]
      %v335 = vld [vmem:[%s291 + $0x14] sm:$0xf]
      %v336 = vld [vmem:[%s291 + $0x18] sm:$0xf]
      %v337 = vld [vmem:[%s291 + $0x1c] sm:$0xf]
      %v338 = vld [vmem:[%s291 + $0x20] sm:$0xf]
      %v339 = vld [vmem:[%s291 + $0x24] sm:$0xf]
      %v340 = vld [vmem:[%s291 + $0x28] sm:$0xf]
      %v341 = vld [vmem:[%s291 + $0x2c] sm:$0xf]
      %v342 = vld [vmem:[%s291 + $0x30] sm:$0xf]
      %v343 = vld [vmem:[%s291 + $0x34] sm:$0xf]
      %v344 = vld [vmem:[%s291 + $0x38] sm:$0xf]
      %v345 = vld [vmem:[%s291 + $0x3c] sm:$0xf]
      %v346 = vld [vmem:[%s291 + $0x40] sm:$0xf]
      %v347 = vld [vmem:[%s291 + $0x44] sm:$0xf]
      %v348 = vld [vmem:[%s291 + $0x48] sm:$0xf]
      %v349 = vld [vmem:[%s291 + $0x4c] sm:$0xf]
      %v350 = vld [vmem:[%s291 + $0x50] sm:$0xf]
      %v351 = vld [vmem:[%s291 + $0x54] sm:$0xf]
      %v352 = vld [vmem:[%s291 + $0x58] sm:$0xf]
      %v353 = vld [vmem:[%s291 + $0x5c] sm:$0xf]
      %v354 = vld [vmem:[%s291 + $0x60] sm:$0x3]
      %v356 = vlaneseq
      %v357 = vshrl.u32 %v356, 7
      %v358 = vsub.s32 0, %v357
      %v359 = vrot.slane %v329, %v358
      %v386 = vunpack.c.l.b16 %v330
      %v387 = vunpack.c.l.b16 %v331
      %v388 = vunpack.c.l.b16 %v332
      %v389 = vunpack.c.l.b16 %v333
      %v390 = vunpack.c.l.b16 %v334
      %v391 = vunpack.c.l.b16 %v335
      %v392 = vunpack.c.l.b16 %v336
      %v393 = vunpack.c.l.b16 %v337
      %v394 = vunpack.c.l.b16 %v338
      %v395 = vunpack.c.l.b16 %v339
      %v396 = vunpack.c.l.b16 %v340
      %v397 = vunpack.c.l.b16 %v341
      %v398 = vunpack.c.l.b16 %v342
      %v399 = vunpack.c.l.b16 %v343
      %v400 = vunpack.c.l.b16 %v344
      %v401 = vunpack.c.l.b16 %v345
      %v402 = vunpack.c.l.b16 %v346
      %v403 = vunpack.c.l.b16 %v347
      %v404 = vunpack.c.l.b16 %v348
      %v405 = vunpack.c.l.b16 %v349
      %v406 = vunpack.c.l.b16 %v350
      %v407 = vunpack.c.l.b16 %v351
      %v408 = vunpack.c.l.b16 %v352
      %v409 = vunpack.c.l.b16 %v353
      %v410 = vunpack.c.l.b16 %v354
      %v411 = vpack.c.b16 %v387, %v386
      %v412 = vpack.c.b16 %v389, %v388
      %v413 = vpack.c.b16 %v391, %v390
      %v414 = vpack.c.b16 %v393, %v392
      %v415 = vpack.c.b16 %v395, %v394
      %v416 = vpack.c.b16 %v397, %v396
      %v417 = vpack.c.b16 %v399, %v398
      %v418 = vpack.c.b16 %v401, %v400
      %v419 = vpack.c.b16 %v403, %v402
      %v420 = vpack.c.b16 %v405, %v404
      %v421 = vpack.c.b16 %v407, %v406
      %v422 = vpack.c.b16 %v409, %v408
      %v423 = vpack.c.b16 %v410, %v410
      %v453 = vunpack.c.l.b16 %v313
      %v454 = vunpack.c.l.b16 %v314
      %v455 = vunpack.c.l.b16 %v315
      %v456 = vunpack.c.l.b16 %v316
      %v457 = vunpack.c.l.b16 %v317
      %v458 = vunpack.c.l.b16 %v318
      %v459 = vunpack.c.l.b16 %v319
      %v460 = vunpack.c.l.b16 %v320
      %v461 = vunpack.c.l.b16 %v321
      %v462 = vunpack.c.l.b16 %v322
      %v463 = vunpack.c.l.b16 %v323
      %v464 = vunpack.c.l.b16 %v324
      %v465 = vunpack.c.l.b16 %v325
      %v466 = vunpack.c.l.b16 %v326
      %v467 = vunpack.c.l.b16 %v327
      %v468 = vunpack.c.l.b16 %v328
      %v469 = vpack.c.b16 %v454, %v453
      %v470 = vpack.c.b16 %v456, %v455
      %v471 = vpack.c.b16 %v458, %v457
      %v472 = vpack.c.b16 %v460, %v459
      %v473 = vpack.c.b16 %v462, %v461
      %v474 = vpack.c.b16 %v464, %v463
      %v475 = vpack.c.b16 %v466, %v465
      %v476 = vpack.c.b16 %v468, %v467
      %485 = vmatprep.subr.bf16.mxu0 0
      %486 = vmatpush1.bf16.msra.mxu0 %v476
      %487 = vmatprep.subr.bf16.mxu0 0
      %488 = vmatpush1.bf16.msra.mxu0 %v475
      %489 = vmatprep.subr.bf16.mxu0 0
      %490 = vmatpush1.bf16.msra.mxu0 %v474
      %491 = vmatprep.subr.bf16.mxu0 0
      %492 = vmatpush1.bf16.msra.mxu0 %v473
      %493 = vmatprep.subr.bf16.mxu0 0
      %494 = vmatpush1.bf16.msra.mxu0 %v472
      %495 = vmatprep.subr.bf16.mxu0 0
      %496 = vmatpush1.bf16.msra.mxu0 %v471
      %497 = vmatprep.subr.bf16.mxu0 0
      %498 = vmatpush1.bf16.msra.mxu0 %v470
      %499 = vmatprep.subr.bf16.mxu0 0
      %500 = vmatpush1.bf16.msra.mxu0 %v469
      %501 = vmatprep.subr.bf16.mxu0 0
      %502 = vmatpush2.bf16.msra.mxu0 0
      %503 = vmatprep.subr.bf16.mxu0 0
      %504 = vmatpush2.bf16.msra.mxu0 0
      %505 = vmatprep.subr.bf16.mxu0 0
      %506 = vmatpush2.bf16.msra.mxu0 0
      %507 = vmatprep.subr.bf16.mxu0 0
      %508 = vmatpush2.bf16.msra.mxu0 0
      %509 = vmatprep.subr.bf16.mxu0 0
      %510 = vmatpush2.bf16.msra.mxu0 0
      %511 = vmatprep.subr.bf16.mxu0 0
      %512 = vmatpush2.bf16.msra.mxu0 0
      %513 = vmatprep.subr.bf16.mxu0 0
      %514 = vmatpush2.bf16.msra.mxu0 0
      %515 = vmatprep.subr.bf16.mxu0 0
      %516 = vmatpush2.bf16.msra.mxu0 0
      %517 = vmatprep.mubr.bf16.mxu0 0
      %518 = vmatmul.mubr.bf16.gmra.mxu0 %v411
      %v519 = vpop.f32.mrf.mxu0
      %v520 = vadd.f32 %v359, %v519
      %v521 = vpop.f32.mrf.mxu0
      %v522 = vpop.f32.mrf.mxu0
      %v523 = vadd.f32 %v359, %v522
      %v524 = vpop.f32.mrf.mxu0
      %525 = vmatprep.mubr.bf16.mxu0 0
      %526 = vmatmul.mubr.bf16.gmra.mxu0 %v412
      %v527 = vpop.f32.mrf.mxu0
      %v528 = vadd.f32 %v359, %v527
      %v529 = vpop.f32.mrf.mxu0
      %v530 = vpop.f32.mrf.mxu0
      %v531 = vadd.f32 %v359, %v530
      %v532 = vpop.f32.mrf.mxu0
      %533 = vmatprep.mubr.bf16.mxu0 0
      %534 = vmatmul.mubr.bf16.gmra.mxu0 %v413
      %v535 = vpop.f32.mrf.mxu0
      %v536 = vadd.f32 %v359, %v535
      %v537 = vpop.f32.mrf.mxu0
      %v538 = vpop.f32.mrf.mxu0
      %v539 = vadd.f32 %v359, %v538
      %v540 = vpop.f32.mrf.mxu0
      %541 = vmatprep.mubr.bf16.mxu0 0
      %542 = vmatmul.mubr.bf16.gmra.mxu0 %v414
      %v543 = vpop.f32.mrf.mxu0
      %v544 = vadd.f32 %v359, %v543
      %v545 = vpop.f32.mrf.mxu0
      %v546 = vpop.f32.mrf.mxu0
      %v547 = vadd.f32 %v359, %v546
      %v548 = vpop.f32.mrf.mxu0
      %549 = vmatprep.mubr.bf16.mxu0 0
      %550 = vmatmul.mubr.bf16.gmra.mxu0 %v415
      %v551 = vpop.f32.mrf.mxu0
      %v552 = vadd.f32 %v359, %v551
      %v553 = vpop.f32.mrf.mxu0
      %v554 = vpop.f32.mrf.mxu0
      %v555 = vadd.f32 %v359, %v554
      %v556 = vpop.f32.mrf.mxu0
      %557 = vmatprep.mubr.bf16.mxu0 0
      %558 = vmatmul.mubr.bf16.gmra.mxu0 %v416
      %v559 = vpop.f32.mrf.mxu0
      %v560 = vadd.f32 %v359, %v559
      %v561 = vpop.f32.mrf.mxu0
      %v562 = vpop.f32.mrf.mxu0
      %v563 = vadd.f32 %v359, %v562
      %v564 = vpop.f32.mrf.mxu0
      %565 = vmatprep.mubr.bf16.mxu0 0
      %566 = vmatmul.mubr.bf16.gmra.mxu0 %v417
      %v567 = vpop.f32.mrf.mxu0
      %v568 = vadd.f32 %v359, %v567
      %v569 = vpop.f32.mrf.mxu0
      %v570 = vpop.f32.mrf.mxu0
      %v571 = vadd.f32 %v359, %v570
      %v572 = vpop.f32.mrf.mxu0
      %573 = vmatprep.mubr.bf16.mxu0 0
      %574 = vmatmul.mubr.bf16.gmra.mxu0 %v418
      %v575 = vpop.f32.mrf.mxu0
      %v576 = vadd.f32 %v359, %v575
      %v577 = vpop.f32.mrf.mxu0
      %v578 = vpop.f32.mrf.mxu0
      %v579 = vadd.f32 %v359, %v578
      %v580 = vpop.f32.mrf.mxu0
      %581 = vmatprep.mubr.bf16.mxu0 0
      %582 = vmatmul.mubr.bf16.gmra.mxu0 %v419
      %v583 = vpop.f32.mrf.mxu0
      %v584 = vadd.f32 %v359, %v583
      %v585 = vpop.f32.mrf.mxu0
      %v586 = vpop.f32.mrf.mxu0
      %v587 = vadd.f32 %v359, %v586
      %v588 = vpop.f32.mrf.mxu0
      %589 = vmatprep.mubr.bf16.mxu0 0
      %590 = vmatmul.mubr.bf16.gmra.mxu0 %v420
      %v591 = vpop.f32.mrf.mxu0
      %v592 = vadd.f32 %v359, %v591
      %v593 = vpop.f32.mrf.mxu0
      %v594 = vpop.f32.mrf.mxu0
      %v595 = vadd.f32 %v359, %v594
      %v596 = vpop.f32.mrf.mxu0
      %597 = vmatprep.mubr.bf16.mxu0 0
      %598 = vmatmul.mubr.bf16.gmra.mxu0 %v421
      %v599 = vpop.f32.mrf.mxu0
      %v600 = vadd.f32 %v359, %v599
      %v601 = vpop.f32.mrf.mxu0
      %v602 = vpop.f32.mrf.mxu0
      %v603 = vadd.f32 %v359, %v602
      %v604 = vpop.f32.mrf.mxu0
      %605 = vmatprep.mubr.bf16.mxu0 0
      %606 = vmatmul.mubr.bf16.gmra.mxu0 %v422
      %v607 = vpop.f32.mrf.mxu0
      %v608 = vadd.f32 %v359, %v607
      %v609 = vpop.f32.mrf.mxu0
      %v610 = vpop.f32.mrf.mxu0
      %v611 = vadd.f32 %v359, %v610
      %v612 = vpop.f32.mrf.mxu0
      %613 = vmatprep.mubr.bf16.mxu0 0
      %614 = vmatmul.mubr.bf16.gmra.mxu0 %v423
      %v615 = vpop.f32.mrf.mxu0
      %v616 = vadd.f32 %v359, %v615
      %v617 = vpop.f32.mrf.mxu0
      %v618 = vpop.f32.mrf.mxu0
      %v619 = vpop.f32.mrf.mxu0
      %620 = vdwg.mxu0
      %v621 = vmax.f32 %v520, 0.0
      %v622 = vmax.f32 %v523, 0.0
      %v623 = vmax.f32 %v528, 0.0
      %v624 = vmax.f32 %v531, 0.0
      %v625 = vmax.f32 %v536, 0.0
      %v626 = vmax.f32 %v539, 0.0
      %v627 = vmax.f32 %v544, 0.0
      %v628 = vmax.f32 %v547, 0.0
      %v629 = vmax.f32 %v552, 0.0
      %v630 = vmax.f32 %v555, 0.0
      %v631 = vmax.f32 %v560, 0.0
      %v632 = vmax.f32 %v563, 0.0
      %v633 = vmax.f32 %v568, 0.0
      %v634 = vmax.f32 %v571, 0.0
      %v635 = vmax.f32 %v576, 0.0
      %v636 = vmax.f32 %v579, 0.0
      %v637 = vmax.f32 %v584, 0.0
      %v638 = vmax.f32 %v587, 0.0
      %v639 = vmax.f32 %v592, 0.0
      %v640 = vmax.f32 %v595, 0.0
      %v641 = vmax.f32 %v600, 0.0
      %v642 = vmax.f32 %v603, 0.0
      %v643 = vmax.f32 %v608, 0.0
      %v644 = vmax.f32 %v611, 0.0
      %v645 = vmax.f32 %v616, 0.0
      %v646 = vld [vmem:[%s296] sm:$0xf]
      %v647 = vld [vmem:[%s296 + $0x4] sm:$0xf]
      %v648 = vld [vmem:[%s296 + $0x8] sm:$0xf]
      %v649 = vld [vmem:[%s296 + $0xc] sm:$0xf]
      %v650 = vld [vmem:[%s296 + $0x10] sm:$0xf]
      %v651 = vld [vmem:[%s296 + $0x14] sm:$0xf]
      %v652 = vld [vmem:[%s296 + $0x18] sm:$0xf]
      %v653 = vld [vmem:[%s296 + $0x1c] sm:$0xf]
      %v654 = vld [vmem:[%s296 + $0x20] sm:$0xf]
      %v655 = vld [vmem:[%s296 + $0x24] sm:$0xf]
      %v656 = vld [vmem:[%s296 + $0x28] sm:$0xf]
      %v657 = vld [vmem:[%s296 + $0x2c] sm:$0xf]
      %v658 = vld [vmem:[%s296 + $0x30] sm:$0xf]
      %v659 = vld [vmem:[%s296 + $0x34] sm:$0xf]
      %v660 = vld [vmem:[%s296 + $0x38] sm:$0xf]
      %v661 = vld [vmem:[%s296 + $0x3c] sm:$0xf]
      %v662 = vld [vmem:[%s296 + $0x40] sm:$0xf]
      %v663 = vld [vmem:[%s296 + $0x44] sm:$0xf]
      %v664 = vld [vmem:[%s296 + $0x48] sm:$0xf]
      %v665 = vld [vmem:[%s296 + $0x4c] sm:$0xf]
      %v666 = vld [vmem:[%s296 + $0x50] sm:$0xf]
      %v667 = vld [vmem:[%s296 + $0x54] sm:$0xf]
      %v668 = vld [vmem:[%s296 + $0x58] sm:$0xf]
      %v669 = vld [vmem:[%s296 + $0x5c] sm:$0xf]
      %v670 = vld [vmem:[%s296 + $0x60] sm:$0x3]
      %v696 = vunpack.c.l.b16 %v646
      %v697 = vunpack.c.l.b16 %v647
      %v698 = vunpack.c.l.b16 %v648
      %v699 = vunpack.c.l.b16 %v649
      %v700 = vunpack.c.l.b16 %v650
      %v701 = vunpack.c.l.b16 %v651
      %v702 = vunpack.c.l.b16 %v652
      %v703 = vunpack.c.l.b16 %v653
      %v704 = vunpack.c.l.b16 %v654
      %v705 = vunpack.c.l.b16 %v655
      %v706 = vunpack.c.l.b16 %v656
      %v707 = vunpack.c.l.b16 %v657
      %v708 = vunpack.c.l.b16 %v658
      %v709 = vunpack.c.l.b16 %v659
      %v710 = vunpack.c.l.b16 %v660
      %v711 = vunpack.c.l.b16 %v661
      %v712 = vunpack.c.l.b16 %v662
      %v713 = vunpack.c.l.b16 %v663
      %v714 = vunpack.c.l.b16 %v664
      %v715 = vunpack.c.l.b16 %v665
      %v716 = vunpack.c.l.b16 %v666
      %v717 = vunpack.c.l.b16 %v667
      %v718 = vunpack.c.l.b16 %v668
      %v719 = vunpack.c.l.b16 %v669
      %v720 = vunpack.c.l.b16 %v670
      %v721 = vpack.c.b16 %v697, %v696
      %v722 = vpack.c.b16 %v699, %v698
      %v723 = vpack.c.b16 %v701, %v700
      %v724 = vpack.c.b16 %v703, %v702
      %v725 = vpack.c.b16 %v705, %v704
      %v726 = vpack.c.b16 %v707, %v706
      %v727 = vpack.c.b16 %v709, %v708
      %v728 = vpack.c.b16 %v711, %v710
      %v729 = vpack.c.b16 %v713, %v712
      %v730 = vpack.c.b16 %v715, %v714
      %v731 = vpack.c.b16 %v717, %v716
      %v732 = vpack.c.b16 %v719, %v718
      %v733 = vpack.c.b16 %v720, %v720
      %747 = vmatprep.subr.bf16.mxu0 0
      %748 = vmatpush1.bf16.msra.mxu0 %v476
      %749 = vmatprep.subr.bf16.mxu0 0
      %750 = vmatpush1.bf16.msra.mxu0 %v475
      %751 = vmatprep.subr.bf16.mxu0 0
      %752 = vmatpush1.bf16.msra.mxu0 %v474
      %753 = vmatprep.subr.bf16.mxu0 0
      %754 = vmatpush1.bf16.msra.mxu0 %v473
      %755 = vmatprep.subr.bf16.mxu0 0
      %756 = vmatpush1.bf16.msra.mxu0 %v472
      %757 = vmatprep.subr.bf16.mxu0 0
      %758 = vmatpush1.bf16.msra.mxu0 %v471
      %759 = vmatprep.subr.bf16.mxu0 0
      %760 = vmatpush1.bf16.msra.mxu0 %v470
      %761 = vmatprep.subr.bf16.mxu0 0
      %762 = vmatpush1.bf16.msra.mxu0 %v469
      %763 = vmatprep.subr.bf16.mxu0 0
      %764 = vmatpush2.bf16.msra.mxu0 0
      %765 = vmatprep.subr.bf16.mxu0 0
      %766 = vmatpush2.bf16.msra.mxu0 0
      %767 = vmatprep.subr.bf16.mxu0 0
      %768 = vmatpush2.bf16.msra.mxu0 0
      %769 = vmatprep.subr.bf16.mxu0 0
      %770 = vmatpush2.bf16.msra.mxu0 0
      %771 = vmatprep.subr.bf16.mxu0 0
      %772 = vmatpush2.bf16.msra.mxu0 0
      %773 = vmatprep.subr.bf16.mxu0 0
      %774 = vmatpush2.bf16.msra.mxu0 0
      %775 = vmatprep.subr.bf16.mxu0 0
      %776 = vmatpush2.bf16.msra.mxu0 0
      %777 = vmatprep.subr.bf16.mxu0 0
      %778 = vmatpush2.bf16.msra.mxu0 0
      %779 = vmatprep.mubr.bf16.mxu0 0
      %780 = vmatmul.mubr.bf16.gmra.mxu0 %v721
      %v781 = vpop.f32.mrf.mxu0
      %v782 = vadd.f32 %v359, %v781
      %v783 = vpop.f32.mrf.mxu0
      %v784 = vpop.f32.mrf.mxu0
      %v785 = vadd.f32 %v359, %v784
      %v786 = vpop.f32.mrf.mxu0
      %787 = vmatprep.mubr.bf16.mxu0 0
      %788 = vmatmul.mubr.bf16.gmra.mxu0 %v722
      %v789 = vpop.f32.mrf.mxu0
      %v790 = vadd.f32 %v359, %v789
      %v791 = vpop.f32.mrf.mxu0
      %v792 = vpop.f32.mrf.mxu0
      %v793 = vadd.f32 %v359, %v792
      %v794 = vpop.f32.mrf.mxu0
      %795 = vmatprep.mubr.bf16.mxu0 0
      %796 = vmatmul.mubr.bf16.gmra.mxu0 %v723
      %v797 = vpop.f32.mrf.mxu0
      %v798 = vadd.f32 %v359, %v797
      %v799 = vpop.f32.mrf.mxu0
      %v800 = vpop.f32.mrf.mxu0
      %v801 = vadd.f32 %v359, %v800
      %v802 = vpop.f32.mrf.mxu0
      %803 = vmatprep.mubr.bf16.mxu0 0
      %804 = vmatmul.mubr.bf16.gmra.mxu0 %v724
      %v805 = vpop.f32.mrf.mxu0
      %v806 = vadd.f32 %v359, %v805
      %v807 = vpop.f32.mrf.mxu0
      %v808 = vpop.f32.mrf.mxu0
      %v809 = vadd.f32 %v359, %v808
      %v810 = vpop.f32.mrf.mxu0
      %811 = vmatprep.mubr.bf16.mxu0 0
      %812 = vmatmul.mubr.bf16.gmra.mxu0 %v725
      %v813 = vpop.f32.mrf.mxu0
      %v814 = vadd.f32 %v359, %v813
      %v815 = vpop.f32.mrf.mxu0
      %v816 = vpop.f32.mrf.mxu0
      %v817 = vadd.f32 %v359, %v816
      %v818 = vpop.f32.mrf.mxu0
      %819 = vmatprep.mubr.bf16.mxu0 0
      %820 = vmatmul.mubr.bf16.gmra.mxu0 %v726
      %v821 = vpop.f32.mrf.mxu0
      %v822 = vadd.f32 %v359, %v821
      %v823 = vpop.f32.mrf.mxu0
      %v824 = vpop.f32.mrf.mxu0
      %v825 = vadd.f32 %v359, %v824
      %v826 = vpop.f32.mrf.mxu0
      %827 = vmatprep.mubr.bf16.mxu0 0
      %828 = vmatmul.mubr.bf16.gmra.mxu0 %v727
      %v829 = vpop.f32.mrf.mxu0
      %v830 = vadd.f32 %v359, %v829
      %v831 = vpop.f32.mrf.mxu0
      %v832 = vpop.f32.mrf.mxu0
      %v833 = vadd.f32 %v359, %v832
      %v834 = vpop.f32.mrf.mxu0
      %835 = vmatprep.mubr.bf16.mxu0 0
      %836 = vmatmul.mubr.bf16.gmra.mxu0 %v728
      %v837 = vpop.f32.mrf.mxu0
      %v838 = vadd.f32 %v359, %v837
      %v839 = vpop.f32.mrf.mxu0
      %v840 = vpop.f32.mrf.mxu0
      %v841 = vadd.f32 %v359, %v840
      %v842 = vpop.f32.mrf.mxu0
      %843 = vmatprep.mubr.bf16.mxu0 0
      %844 = vmatmul.mubr.bf16.gmra.mxu0 %v729
      %v845 = vpop.f32.mrf.mxu0
      %v846 = vadd.f32 %v359, %v845
      %v847 = vpop.f32.mrf.mxu0
      %v848 = vpop.f32.mrf.mxu0
      %v849 = vadd.f32 %v359, %v848
      %v850 = vpop.f32.mrf.mxu0
      %851 = vmatprep.mubr.bf16.mxu0 0
      %852 = vmatmul.mubr.bf16.gmra.mxu0 %v730
      %v853 = vpop.f32.mrf.mxu0
      %v854 = vadd.f32 %v359, %v853
      %v855 = vpop.f32.mrf.mxu0
      %v856 = vpop.f32.mrf.mxu0
      %v857 = vadd.f32 %v359, %v856
      %v858 = vpop.f32.mrf.mxu0
      %859 = vmatprep.mubr.bf16.mxu0 0
      %860 = vmatmul.mubr.bf16.gmra.mxu0 %v731
      %v861 = vpop.f32.mrf.mxu0
      %v862 = vadd.f32 %v359, %v861
      %v863 = vpop.f32.mrf.mxu0
      %v864 = vpop.f32.mrf.mxu0
      %v865 = vadd.f32 %v359, %v864
      %v866 = vpop.f32.mrf.mxu0
      %867 = vmatprep.mubr.bf16.mxu0 0
      %868 = vmatmul.mubr.bf16.gmra.mxu0 %v732
      %v869 = vpop.f32.mrf.mxu0
      %v870 = vadd.f32 %v359, %v869
      %v871 = vpop.f32.mrf.mxu0
      %v872 = vpop.f32.mrf.mxu0
      %v873 = vadd.f32 %v359, %v872
      %v874 = vpop.f32.mrf.mxu0
      %875 = vmatprep.mubr.bf16.mxu0 0
      %876 = vmatmul.mubr.bf16.gmra.mxu0 %v733
      %v877 = vpop.f32.mrf.mxu0
      %v878 = vadd.f32 %v359, %v877
      %v879 = vpop.f32.mrf.mxu0
      %v880 = vpop.f32.mrf.mxu0
      %v881 = vpop.f32.mrf.mxu0
      %882 = vdwg.mxu0
      %v883 = vmax.f32 %v782, 0.0
      %v884 = vmax.f32 %v785, 0.0
      %v885 = vmax.f32 %v790, 0.0
      %v886 = vmax.f32 %v793, 0.0
      %v887 = vmax.f32 %v798, 0.0
      %v888 = vmax.f32 %v801, 0.0
      %v889 = vmax.f32 %v806, 0.0
      %v890 = vmax.f32 %v809, 0.0
      %v891 = vmax.f32 %v814, 0.0
      %v892 = vmax.f32 %v817, 0.0
      %v893 = vmax.f32 %v822, 0.0
      %v894 = vmax.f32 %v825, 0.0
      %v895 = vmax.f32 %v830, 0.0
      %v896 = vmax.f32 %v833, 0.0
      %v897 = vmax.f32 %v838, 0.0
      %v898 = vmax.f32 %v841, 0.0
      %v899 = vmax.f32 %v846, 0.0
      %v900 = vmax.f32 %v849, 0.0
      %v901 = vmax.f32 %v854, 0.0
      %v902 = vmax.f32 %v857, 0.0
      %v903 = vmax.f32 %v862, 0.0
      %v904 = vmax.f32 %v865, 0.0
      %v905 = vmax.f32 %v870, 0.0
      %v906 = vmax.f32 %v873, 0.0
      %v907 = vmax.f32 %v878, 0.0
      %v908 = vmax.f32 %v621, %v883
      %v909 = vmax.f32 %v622, %v884
      %v910 = vmax.f32 %v623, %v885
      %v911 = vmax.f32 %v624, %v886
      %v912 = vmax.f32 %v625, %v887
      %v913 = vmax.f32 %v626, %v888
      %v914 = vmax.f32 %v627, %v889
      %v915 = vmax.f32 %v628, %v890
      %v916 = vmax.f32 %v629, %v891
      %v917 = vmax.f32 %v630, %v892
      %v918 = vmax.f32 %v631, %v893
      %v919 = vmax.f32 %v632, %v894
      %v920 = vmax.f32 %v633, %v895
      %v921 = vmax.f32 %v634, %v896
      %v922 = vmax.f32 %v635, %v897
      %v923 = vmax.f32 %v636, %v898
      %v924 = vmax.f32 %v637, %v899
      %v925 = vmax.f32 %v638, %v900
      %v926 = vmax.f32 %v639, %v901
      %v927 = vmax.f32 %v640, %v902
      %v928 = vmax.f32 %v641, %v903
      %v929 = vmax.f32 %v642, %v904
      %v930 = vmax.f32 %v643, %v905
      %v931 = vmax.f32 %v644, %v906
      %v932 = vmax.f32 %v645, %v907
      %v933 = vld [vmem:[%s301] sm:$0xf]
      %v934 = vld [vmem:[%s301 + $0x4] sm:$0xf]
      %v935 = vld [vmem:[%s301 + $0x8] sm:$0xf]
      %v936 = vld [vmem:[%s301 + $0xc] sm:$0xf]
      %v937 = vld [vmem:[%s301 + $0x10] sm:$0xf]
      %v938 = vld [vmem:[%s301 + $0x14] sm:$0xf]
      %v939 = vld [vmem:[%s301 + $0x18] sm:$0xf]
      %v940 = vld [vmem:[%s301 + $0x1c] sm:$0xf]
      %v941 = vld [vmem:[%s301 + $0x20] sm:$0xf]
      %v942 = vld [vmem:[%s301 + $0x24] sm:$0xf]
      %v943 = vld [vmem:[%s301 + $0x28] sm:$0xf]
      %v944 = vld [vmem:[%s301 + $0x2c] sm:$0xf]
      %v945 = vld [vmem:[%s301 + $0x30] sm:$0xf]
      %v946 = vld [vmem:[%s301 + $0x34] sm:$0xf]
      %v947 = vld [vmem:[%s301 + $0x38] sm:$0xf]
      %v948 = vld [vmem:[%s301 + $0x3c] sm:$0xf]
      %v949 = vld [vmem:[%s301 + $0x40] sm:$0xf]
      %v950 = vld [vmem:[%s301 + $0x44] sm:$0xf]
      %v951 = vld [vmem:[%s301 + $0x48] sm:$0xf]
      %v952 = vld [vmem:[%s301 + $0x4c] sm:$0xf]
      %v953 = vld [vmem:[%s301 + $0x50] sm:$0xf]
      %v954 = vld [vmem:[%s301 + $0x54] sm:$0xf]
      %v955 = vld [vmem:[%s301 + $0x58] sm:$0xf]
      %v956 = vld [vmem:[%s301 + $0x5c] sm:$0xf]
      %v957 = vld [vmem:[%s301 + $0x60] sm:$0x3]
      %v983 = vunpack.c.l.b16 %v933
      %v984 = vunpack.c.l.b16 %v934
      %v985 = vunpack.c.l.b16 %v935
      %v986 = vunpack.c.l.b16 %v936
      %v987 = vunpack.c.l.b16 %v937
      %v988 = vunpack.c.l.b16 %v938
      %v989 = vunpack.c.l.b16 %v939
      %v990 = vunpack.c.l.b16 %v940
      %v991 = vunpack.c.l.b16 %v941
      %v992 = vunpack.c.l.b16 %v942
      %v993 = vunpack.c.l.b16 %v943
      %v994 = vunpack.c.l.b16 %v944
      %v995 = vunpack.c.l.b16 %v945
      %v996 = vunpack.c.l.b16 %v946
      %v997 = vunpack.c.l.b16 %v947
      %v998 = vunpack.c.l.b16 %v948
      %v999 = vunpack.c.l.b16 %v949
      %v1000 = vunpack.c.l.b16 %v950
      %v1001 = vunpack.c.l.b16 %v951
      %v1002 = vunpack.c.l.b16 %v952
      %v1003 = vunpack.c.l.b16 %v953
      %v1004 = vunpack.c.l.b16 %v954
      %v1005 = vunpack.c.l.b16 %v955
      %v1006 = vunpack.c.l.b16 %v956
      %v1007 = vunpack.c.l.b16 %v957
      %v1008 = vpack.c.b16 %v984, %v983
      %v1009 = vpack.c.b16 %v986, %v985
      %v1010 = vpack.c.b16 %v988, %v987
      %v1011 = vpack.c.b16 %v990, %v989
      %v1012 = vpack.c.b16 %v992, %v991
      %v1013 = vpack.c.b16 %v994, %v993
      %v1014 = vpack.c.b16 %v996, %v995
      %v1015 = vpack.c.b16 %v998, %v997
      %v1016 = vpack.c.b16 %v1000, %v999
      %v1017 = vpack.c.b16 %v1002, %v1001
      %v1018 = vpack.c.b16 %v1004, %v1003
      %v1019 = vpack.c.b16 %v1006, %v1005
      %v1020 = vpack.c.b16 %v1007, %v1007
      %1034 = vmatprep.subr.bf16.mxu0 0
      %1035 = vmatpush1.bf16.msra.mxu0 %v476
      %1036 = vmatprep.subr.bf16.mxu0 0
      %1037 = vmatpush1.bf16.msra.mxu0 %v475
      %1038 = vmatprep.subr.bf16.mxu0 0
      %1039 = vmatpush1.bf16.msra.mxu0 %v474
      %1040 = vmatprep.subr.bf16.mxu0 0
      %1041 = vmatpush1.bf16.msra.mxu0 %v473
      %1042 = vmatprep.subr.bf16.mxu0 0
      %1043 = vmatpush1.bf16.msra.mxu0 %v472
      %1044 = vmatprep.subr.bf16.mxu0 0
      %1045 = vmatpush1.bf16.msra.mxu0 %v471
      %1046 = vmatprep.subr.bf16.mxu0 0
      %1047 = vmatpush1.bf16.msra.mxu0 %v470
      %1048 = vmatprep.subr.bf16.mxu0 0
      %1049 = vmatpush1.bf16.msra.mxu0 %v469
      %1050 = vmatprep.subr.bf16.mxu0 0
      %1051 = vmatpush2.bf16.msra.mxu0 0
      %1052 = vmatprep.subr.bf16.mxu0 0
      %1053 = vmatpush2.bf16.msra.mxu0 0
      %1054 = vmatprep.subr.bf16.mxu0 0
      %1055 = vmatpush2.bf16.msra.mxu0 0
      %1056 = vmatprep.subr.bf16.mxu0 0
      %1057 = vmatpush2.bf16.msra.mxu0 0
      %1058 = vmatprep.subr.bf16.mxu0 0
      %1059 = vmatpush2.bf16.msra.mxu0 0
      %1060 = vmatprep.subr.bf16.mxu0 0
      %1061 = vmatpush2.bf16.msra.mxu0 0
      %1062 = vmatprep.subr.bf16.mxu0 0
      %1063 = vmatpush2.bf16.msra.mxu0 0
      %1064 = vmatprep.subr.bf16.mxu0 0
      %1065 = vmatpush2.bf16.msra.mxu0 0
      %1066 = vmatprep.mubr.bf16.mxu0 0
      %1067 = vmatmul.mubr.bf16.gmra.mxu0 %v1008
      %v1068 = vpop.f32.mrf.mxu0
      %v1069 = vadd.f32 %v359, %v1068
      %v1070 = vpop.f32.mrf.mxu0
      %v1071 = vpop.f32.mrf.mxu0
      %v1072 = vadd.f32 %v359, %v1071
      %v1073 = vpop.f32.mrf.mxu0
      %1074 = vmatprep.mubr.bf16.mxu0 0
      %1075 = vmatmul.mubr.bf16.gmra.mxu0 %v1009
      %v1076 = vpop.f32.mrf.mxu0
      %v1077 = vadd.f32 %v359, %v1076
      %v1078 = vpop.f32.mrf.mxu0
      %v1079 = vpop.f32.mrf.mxu0
      %v1080 = vadd.f32 %v359, %v1079
      %v1081 = vpop.f32.mrf.mxu0
      %1082 = vmatprep.mubr.bf16.mxu0 0
      %1083 = vmatmul.mubr.bf16.gmra.mxu0 %v1010
      %v1084 = vpop.f32.mrf.mxu0
      %v1085 = vadd.f32 %v359, %v1084
      %v1086 = vpop.f32.mrf.mxu0
      %v1087 = vpop.f32.mrf.mxu0
      %v1088 = vadd.f32 %v359, %v1087
      %v1089 = vpop.f32.mrf.mxu0
      %1090 = vmatprep.mubr.bf16.mxu0 0
      %1091 = vmatmul.mubr.bf16.gmra.mxu0 %v1011
      %v1092 = vpop.f32.mrf.mxu0
      %v1093 = vadd.f32 %v359, %v1092
      %v1094 = vpop.f32.mrf.mxu0
      %v1095 = vpop.f32.mrf.mxu0
      %v1096 = vadd.f32 %v359, %v1095
      %v1097 = vpop.f32.mrf.mxu0
      %1098 = vmatprep.mubr.bf16.mxu0 0
      %1099 = vmatmul.mubr.bf16.gmra.mxu0 %v1012
      %v1100 = vpop.f32.mrf.mxu0
      %v1101 = vadd.f32 %v359, %v1100
      %v1102 = vpop.f32.mrf.mxu0
      %v1103 = vpop.f32.mrf.mxu0
      %v1104 = vadd.f32 %v359, %v1103
      %v1105 = vpop.f32.mrf.mxu0
      %1106 = vmatprep.mubr.bf16.mxu0 0
      %1107 = vmatmul.mubr.bf16.gmra.mxu0 %v1013
      %v1108 = vpop.f32.mrf.mxu0
      %v1109 = vadd.f32 %v359, %v1108
      %v1110 = vpop.f32.mrf.mxu0
      %v1111 = vpop.f32.mrf.mxu0
      %v1112 = vadd.f32 %v359, %v1111
      %v1113 = vpop.f32.mrf.mxu0
      %1114 = vmatprep.mubr.bf16.mxu0 0
      %1115 = vmatmul.mubr.bf16.gmra.mxu0 %v1014
      %v1116 = vpop.f32.mrf.mxu0
      %v1117 = vadd.f32 %v359, %v1116
      %v1118 = vpop.f32.mrf.mxu0
      %v1119 = vpop.f32.mrf.mxu0
      %v1120 = vadd.f32 %v359, %v1119
      %v1121 = vpop.f32.mrf.mxu0
      %1122 = vmatprep.mubr.bf16.mxu0 0
      %1123 = vmatmul.mubr.bf16.gmra.mxu0 %v1015
      %v1124 = vpop.f32.mrf.mxu0
      %v1125 = vadd.f32 %v359, %v1124
      %v1126 = vpop.f32.mrf.mxu0
      %v1127 = vpop.f32.mrf.mxu0
      %v1128 = vadd.f32 %v359, %v1127
      %v1129 = vpop.f32.mrf.mxu0
      %1130 = vmatprep.mubr.bf16.mxu0 0
      %1131 = vmatmul.mubr.bf16.gmra.mxu0 %v1016
      %v1132 = vpop.f32.mrf.mxu0
      %v1133 = vadd.f32 %v359, %v1132
      %v1134 = vpop.f32.mrf.mxu0
      %v1135 = vpop.f32.mrf.mxu0
      %v1136 = vadd.f32 %v359, %v1135
      %v1137 = vpop.f32.mrf.mxu0
      %1138 = vmatprep.mubr.bf16.mxu0 0
      %1139 = vmatmul.mubr.bf16.gmra.mxu0 %v1017
      %v1140 = vpop.f32.mrf.mxu0
      %v1141 = vadd.f32 %v359, %v1140
      %v1142 = vpop.f32.mrf.mxu0
      %v1143 = vpop.f32.mrf.mxu0
      %v1144 = vadd.f32 %v359, %v1143
      %v1145 = vpop.f32.mrf.mxu0
      %1146 = vmatprep.mubr.bf16.mxu0 0
      %1147 = vmatmul.mubr.bf16.gmra.mxu0 %v1018
      %v1148 = vpop.f32.mrf.mxu0
      %v1149 = vadd.f32 %v359, %v1148
      %v1150 = vpop.f32.mrf.mxu0
      %v1151 = vpop.f32.mrf.mxu0
      %v1152 = vadd.f32 %v359, %v1151
      %v1153 = vpop.f32.mrf.mxu0
      %1154 = vmatprep.mubr.bf16.mxu0 0
      %1155 = vmatmul.mubr.bf16.gmra.mxu0 %v1019
      %v1156 = vpop.f32.mrf.mxu0
      %v1157 = vadd.f32 %v359, %v1156
      %v1158 = vpop.f32.mrf.mxu0
      %v1159 = vpop.f32.mrf.mxu0
      %v1160 = vadd.f32 %v359, %v1159
      %v1161 = vpop.f32.mrf.mxu0
      %1162 = vmatprep.mubr.bf16.mxu0 0
      %1163 = vmatmul.mubr.bf16.gmra.mxu0 %v1020
      %v1164 = vpop.f32.mrf.mxu0
      %v1165 = vadd.f32 %v359, %v1164
      %v1166 = vpop.f32.mrf.mxu0
      %v1167 = vpop.f32.mrf.mxu0
      %v1168 = vpop.f32.mrf.mxu0
      %1169 = vdwg.mxu0
      %v1170 = vmax.f32 %v1069, 0.0
      %v1171 = vmax.f32 %v1072, 0.0
      %v1172 = vmax.f32 %v1077, 0.0
      %v1173 = vmax.f32 %v1080, 0.0
      %v1174 = vmax.f32 %v1085, 0.0
      %v1175 = vmax.f32 %v1088, 0.0
      %v1176 = vmax.f32 %v1093, 0.0
      %v1177 = vmax.f32 %v1096, 0.0
      %v1178 = vmax.f32 %v1101, 0.0
      %v1179 = vmax.f32 %v1104, 0.0
      %v1180 = vmax.f32 %v1109, 0.0
      %v1181 = vmax.f32 %v1112, 0.0
      %v1182 = vmax.f32 %v1117, 0.0
      %v1183 = vmax.f32 %v1120, 0.0
      %v1184 = vmax.f32 %v1125, 0.0
      %v1185 = vmax.f32 %v1128, 0.0
      %v1186 = vmax.f32 %v1133, 0.0
      %v1187 = vmax.f32 %v1136, 0.0
      %v1188 = vmax.f32 %v1141, 0.0
      %v1189 = vmax.f32 %v1144, 0.0
      %v1190 = vmax.f32 %v1149, 0.0
      %v1191 = vmax.f32 %v1152, 0.0
      %v1192 = vmax.f32 %v1157, 0.0
      %v1193 = vmax.f32 %v1160, 0.0
      %v1194 = vmax.f32 %v1165, 0.0
      %v1195 = vld [vmem:[%s306] sm:$0xf]
      %v1196 = vld [vmem:[%s306 + $0x4] sm:$0xf]
      %v1197 = vld [vmem:[%s306 + $0x8] sm:$0xf]
      %v1198 = vld [vmem:[%s306 + $0xc] sm:$0xf]
      %v1199 = vld [vmem:[%s306 + $0x10] sm:$0xf]
      %v1200 = vld [vmem:[%s306 + $0x14] sm:$0xf]
      %v1201 = vld [vmem:[%s306 + $0x18] sm:$0xf]
      %v1202 = vld [vmem:[%s306 + $0x1c] sm:$0xf]
      %v1203 = vld [vmem:[%s306 + $0x20] sm:$0xf]
      %v1204 = vld [vmem:[%s306 + $0x24] sm:$0xf]
      %v1205 = vld [vmem:[%s306 + $0x28] sm:$0xf]
      %v1206 = vld [vmem:[%s306 + $0x2c] sm:$0xf]
      %v1207 = vld [vmem:[%s306 + $0x30] sm:$0xf]
      %v1208 = vld [vmem:[%s306 + $0x34] sm:$0xf]
      %v1209 = vld [vmem:[%s306 + $0x38] sm:$0xf]
      %v1210 = vld [vmem:[%s306 + $0x3c] sm:$0xf]
      %v1211 = vld [vmem:[%s306 + $0x40] sm:$0xf]
      %v1212 = vld [vmem:[%s306 + $0x44] sm:$0xf]
      %v1213 = vld [vmem:[%s306 + $0x48] sm:$0xf]
      %v1214 = vld [vmem:[%s306 + $0x4c] sm:$0xf]
      %v1215 = vld [vmem:[%s306 + $0x50] sm:$0xf]
      %v1216 = vld [vmem:[%s306 + $0x54] sm:$0xf]
      %v1217 = vld [vmem:[%s306 + $0x58] sm:$0xf]
      %v1218 = vld [vmem:[%s306 + $0x5c] sm:$0xf]
      %v1219 = vld [vmem:[%s306 + $0x60] sm:$0x3]
      %v1245 = vunpack.c.l.b16 %v1195
      %v1246 = vunpack.c.l.b16 %v1196
      %v1247 = vunpack.c.l.b16 %v1197
      %v1248 = vunpack.c.l.b16 %v1198
      %v1249 = vunpack.c.l.b16 %v1199
      %v1250 = vunpack.c.l.b16 %v1200
      %v1251 = vunpack.c.l.b16 %v1201
      %v1252 = vunpack.c.l.b16 %v1202
      %v1253 = vunpack.c.l.b16 %v1203
      %v1254 = vunpack.c.l.b16 %v1204
      %v1255 = vunpack.c.l.b16 %v1205
      %v1256 = vunpack.c.l.b16 %v1206
      %v1257 = vunpack.c.l.b16 %v1207
      %v1258 = vunpack.c.l.b16 %v1208
      %v1259 = vunpack.c.l.b16 %v1209
      %v1260 = vunpack.c.l.b16 %v1210
      %v1261 = vunpack.c.l.b16 %v1211
      %v1262 = vunpack.c.l.b16 %v1212
      %v1263 = vunpack.c.l.b16 %v1213
      %v1264 = vunpack.c.l.b16 %v1214
      %v1265 = vunpack.c.l.b16 %v1215
      %v1266 = vunpack.c.l.b16 %v1216
      %v1267 = vunpack.c.l.b16 %v1217
      %v1268 = vunpack.c.l.b16 %v1218
      %v1269 = vunpack.c.l.b16 %v1219
      %v1270 = vpack.c.b16 %v1246, %v1245
      %v1271 = vpack.c.b16 %v1248, %v1247
      %v1272 = vpack.c.b16 %v1250, %v1249
      %v1273 = vpack.c.b16 %v1252, %v1251
      %v1274 = vpack.c.b16 %v1254, %v1253
      %v1275 = vpack.c.b16 %v1256, %v1255
      %v1276 = vpack.c.b16 %v1258, %v1257
      %v1277 = vpack.c.b16 %v1260, %v1259
      %v1278 = vpack.c.b16 %v1262, %v1261
      %v1279 = vpack.c.b16 %v1264, %v1263
      %v1280 = vpack.c.b16 %v1266, %v1265
      %v1281 = vpack.c.b16 %v1268, %v1267
      %v1282 = vpack.c.b16 %v1269, %v1269
      %1296 = vmatprep.subr.bf16.mxu0 0
      %1297 = vmatpush1.bf16.msra.mxu0 %v476
      %1298 = vmatprep.subr.bf16.mxu0 0
      %1299 = vmatpush1.bf16.msra.mxu0 %v475
      %1300 = vmatprep.subr.bf16.mxu0 0
      %1301 = vmatpush1.bf16.msra.mxu0 %v474
      %1302 = vmatprep.subr.bf16.mxu0 0
      %1303 = vmatpush1.bf16.msra.mxu0 %v473
      %1304 = vmatprep.subr.bf16.mxu0 0
      %1305 = vmatpush1.bf16.msra.mxu0 %v472
      %1306 = vmatprep.subr.bf16.mxu0 0
      %1307 = vmatpush1.bf16.msra.mxu0 %v471
      %1308 = vmatprep.subr.bf16.mxu0 0
      %1309 = vmatpush1.bf16.msra.mxu0 %v470
      %1310 = vmatprep.subr.bf16.mxu0 0
      %1311 = vmatpush1.bf16.msra.mxu0 %v469
      %1312 = vmatprep.subr.bf16.mxu0 0
      %1313 = vmatpush2.bf16.msra.mxu0 0
      %1314 = vmatprep.subr.bf16.mxu0 0
      %1315 = vmatpush2.bf16.msra.mxu0 0
      %1316 = vmatprep.subr.bf16.mxu0 0
      %1317 = vmatpush2.bf16.msra.mxu0 0
      %1318 = vmatprep.subr.bf16.mxu0 0
      %1319 = vmatpush2.bf16.msra.mxu0 0
      %1320 = vmatprep.subr.bf16.mxu0 0
      %1321 = vmatpush2.bf16.msra.mxu0 0
      %1322 = vmatprep.subr.bf16.mxu0 0
      %1323 = vmatpush2.bf16.msra.mxu0 0
      %1324 = vmatprep.subr.bf16.mxu0 0
      %1325 = vmatpush2.bf16.msra.mxu0 0
      %1326 = vmatprep.subr.bf16.mxu0 0
      %1327 = vmatpush2.bf16.msra.mxu0 0
      %1328 = vmatprep.mubr.bf16.mxu0 0
      %1329 = vmatmul.mubr.bf16.gmra.mxu0 %v1270
      %v1330 = vpop.f32.mrf.mxu0
      %v1331 = vadd.f32 %v359, %v1330
      %v1332 = vpop.f32.mrf.mxu0
      %v1333 = vpop.f32.mrf.mxu0
      %v1334 = vadd.f32 %v359, %v1333
      %v1335 = vpop.f32.mrf.mxu0
      %1336 = vmatprep.mubr.bf16.mxu0 0
      %1337 = vmatmul.mubr.bf16.gmra.mxu0 %v1271
      %v1338 = vpop.f32.mrf.mxu0
      %v1339 = vadd.f32 %v359, %v1338
      %v1340 = vpop.f32.mrf.mxu0
      %v1341 = vpop.f32.mrf.mxu0
      %v1342 = vadd.f32 %v359, %v1341
      %v1343 = vpop.f32.mrf.mxu0
      %1344 = vmatprep.mubr.bf16.mxu0 0
      %1345 = vmatmul.mubr.bf16.gmra.mxu0 %v1272
      %v1346 = vpop.f32.mrf.mxu0
      %v1347 = vadd.f32 %v359, %v1346
      %v1348 = vpop.f32.mrf.mxu0
      %v1349 = vpop.f32.mrf.mxu0
      %v1350 = vadd.f32 %v359, %v1349
      %v1351 = vpop.f32.mrf.mxu0
      %1352 = vmatprep.mubr.bf16.mxu0 0
      %1353 = vmatmul.mubr.bf16.gmra.mxu0 %v1273
      %v1354 = vpop.f32.mrf.mxu0
      %v1355 = vadd.f32 %v359, %v1354
      %v1356 = vpop.f32.mrf.mxu0
      %v1357 = vpop.f32.mrf.mxu0
      %v1358 = vadd.f32 %v359, %v1357
      %v1359 = vpop.f32.mrf.mxu0
      %1360 = vmatprep.mubr.bf16.mxu0 0
      %1361 = vmatmul.mubr.bf16.gmra.mxu0 %v1274
      %v1362 = vpop.f32.mrf.mxu0
      %v1363 = vadd.f32 %v359, %v1362
      %v1364 = vpop.f32.mrf.mxu0
      %v1365 = vpop.f32.mrf.mxu0
      %v1366 = vadd.f32 %v359, %v1365
      %v1367 = vpop.f32.mrf.mxu0
      %1368 = vmatprep.mubr.bf16.mxu0 0
      %1369 = vmatmul.mubr.bf16.gmra.mxu0 %v1275
      %v1370 = vpop.f32.mrf.mxu0
      %v1371 = vadd.f32 %v359, %v1370
      %v1372 = vpop.f32.mrf.mxu0
      %v1373 = vpop.f32.mrf.mxu0
      %v1374 = vadd.f32 %v359, %v1373
      %v1375 = vpop.f32.mrf.mxu0
      %1376 = vmatprep.mubr.bf16.mxu0 0
      %1377 = vmatmul.mubr.bf16.gmra.mxu0 %v1276
      %v1378 = vpop.f32.mrf.mxu0
      %v1379 = vadd.f32 %v359, %v1378
      %v1380 = vpop.f32.mrf.mxu0
      %v1381 = vpop.f32.mrf.mxu0
      %v1382 = vadd.f32 %v359, %v1381
      %v1383 = vpop.f32.mrf.mxu0
      %1384 = vmatprep.mubr.bf16.mxu0 0
      %1385 = vmatmul.mubr.bf16.gmra.mxu0 %v1277
      %v1386 = vpop.f32.mrf.mxu0
      %v1387 = vadd.f32 %v359, %v1386
      %v1388 = vpop.f32.mrf.mxu0
      %v1389 = vpop.f32.mrf.mxu0
      %v1390 = vadd.f32 %v359, %v1389
      %v1391 = vpop.f32.mrf.mxu0
      %1392 = vmatprep.mubr.bf16.mxu0 0
      %1393 = vmatmul.mubr.bf16.gmra.mxu0 %v1278
      %v1394 = vpop.f32.mrf.mxu0
      %v1395 = vadd.f32 %v359, %v1394
      %v1396 = vpop.f32.mrf.mxu0
      %v1397 = vpop.f32.mrf.mxu0
      %v1398 = vadd.f32 %v359, %v1397
      %v1399 = vpop.f32.mrf.mxu0
      %1400 = vmatprep.mubr.bf16.mxu0 0
      %1401 = vmatmul.mubr.bf16.gmra.mxu0 %v1279
      %v1402 = vpop.f32.mrf.mxu0
      %v1403 = vadd.f32 %v359, %v1402
      %v1404 = vpop.f32.mrf.mxu0
      %v1405 = vpop.f32.mrf.mxu0
      %v1406 = vadd.f32 %v359, %v1405
      %v1407 = vpop.f32.mrf.mxu0
      %1408 = vmatprep.mubr.bf16.mxu0 0
      %1409 = vmatmul.mubr.bf16.gmra.mxu0 %v1280
      %v1410 = vpop.f32.mrf.mxu0
      %v1411 = vadd.f32 %v359, %v1410
      %v1412 = vpop.f32.mrf.mxu0
      %v1413 = vpop.f32.mrf.mxu0
      %v1414 = vadd.f32 %v359, %v1413
      %v1415 = vpop.f32.mrf.mxu0
      %1416 = vmatprep.mubr.bf16.mxu0 0
      %1417 = vmatmul.mubr.bf16.gmra.mxu0 %v1281
      %v1418 = vpop.f32.mrf.mxu0
      %v1419 = vadd.f32 %v359, %v1418
      %v1420 = vpop.f32.mrf.mxu0
      %v1421 = vpop.f32.mrf.mxu0
      %v1422 = vadd.f32 %v359, %v1421
      %v1423 = vpop.f32.mrf.mxu0
      %1424 = vmatprep.mubr.bf16.mxu0 0
      %1425 = vmatmul.mubr.bf16.gmra.mxu0 %v1282
      %v1426 = vpop.f32.mrf.mxu0
      %v1427 = vadd.f32 %v359, %v1426
      %v1428 = vpop.f32.mrf.mxu0
      %v1429 = vpop.f32.mrf.mxu0
      %v1430 = vpop.f32.mrf.mxu0
      %1431 = vdwg.mxu0
      %v1432 = vmax.f32 %v1331, 0.0
      %v1433 = vmax.f32 %v1334, 0.0
      %v1434 = vmax.f32 %v1339, 0.0
      %v1435 = vmax.f32 %v1342, 0.0
      %v1436 = vmax.f32 %v1347, 0.0
      %v1437 = vmax.f32 %v1350, 0.0
      %v1438 = vmax.f32 %v1355, 0.0
      %v1439 = vmax.f32 %v1358, 0.0
      %v1440 = vmax.f32 %v1363, 0.0
      %v1441 = vmax.f32 %v1366, 0.0
      %v1442 = vmax.f32 %v1371, 0.0
      %v1443 = vmax.f32 %v1374, 0.0
      %v1444 = vmax.f32 %v1379, 0.0
      %v1445 = vmax.f32 %v1382, 0.0
      %v1446 = vmax.f32 %v1387, 0.0
      %v1447 = vmax.f32 %v1390, 0.0
      %v1448 = vmax.f32 %v1395, 0.0
      %v1449 = vmax.f32 %v1398, 0.0
      %v1450 = vmax.f32 %v1403, 0.0
      %v1451 = vmax.f32 %v1406, 0.0
      %v1452 = vmax.f32 %v1411, 0.0
      %v1453 = vmax.f32 %v1414, 0.0
      %v1454 = vmax.f32 %v1419, 0.0
      %v1455 = vmax.f32 %v1422, 0.0
      %v1456 = vmax.f32 %v1427, 0.0
      %v1457 = vmax.f32 %v1170, %v1432
      %v1458 = vmax.f32 %v1171, %v1433
      %v1459 = vmax.f32 %v1172, %v1434
      %v1460 = vmax.f32 %v1173, %v1435
      %v1461 = vmax.f32 %v1174, %v1436
      %v1462 = vmax.f32 %v1175, %v1437
      %v1463 = vmax.f32 %v1176, %v1438
      %v1464 = vmax.f32 %v1177, %v1439
      %v1465 = vmax.f32 %v1178, %v1440
      %v1466 = vmax.f32 %v1179, %v1441
      %v1467 = vmax.f32 %v1180, %v1442
      %v1468 = vmax.f32 %v1181, %v1443
      %v1469 = vmax.f32 %v1182, %v1444
      %v1470 = vmax.f32 %v1183, %v1445
      %v1471 = vmax.f32 %v1184, %v1446
      %v1472 = vmax.f32 %v1185, %v1447
      %v1473 = vmax.f32 %v1186, %v1448
      %v1474 = vmax.f32 %v1187, %v1449
      %v1475 = vmax.f32 %v1188, %v1450
      %v1476 = vmax.f32 %v1189, %v1451
      %v1477 = vmax.f32 %v1190, %v1452
      %v1478 = vmax.f32 %v1191, %v1453
      %v1479 = vmax.f32 %v1192, %v1454
      %v1480 = vmax.f32 %v1193, %v1455
      %v1481 = vmax.f32 %v1194, %v1456
      %v1482 = vmax.f32 %v908, %v1457
      %v1483 = vmax.f32 %v909, %v1458
      %v1484 = vmax.f32 %v910, %v1459
      %v1485 = vmax.f32 %v911, %v1460
      %v1486 = vmax.f32 %v912, %v1461
      %v1487 = vmax.f32 %v913, %v1462
      %v1488 = vmax.f32 %v914, %v1463
      %v1489 = vmax.f32 %v915, %v1464
      %v1490 = vmax.f32 %v916, %v1465
      %v1491 = vmax.f32 %v917, %v1466
      %v1492 = vmax.f32 %v918, %v1467
      %v1493 = vmax.f32 %v919, %v1468
      %v1494 = vmax.f32 %v920, %v1469
      %v1495 = vmax.f32 %v921, %v1470
      %v1496 = vmax.f32 %v922, %v1471
      %v1497 = vmax.f32 %v923, %v1472
      %v1498 = vmax.f32 %v924, %v1473
      %v1499 = vmax.f32 %v925, %v1474
      %v1500 = vmax.f32 %v926, %v1475
      %v1501 = vmax.f32 %v927, %v1476
      %v1502 = vmax.f32 %v928, %v1477
      %v1503 = vmax.f32 %v929, %v1478
      %v1504 = vmax.f32 %v930, %v1479
      %v1505 = vmax.f32 %v931, %v1480
      %v1506 = vmax.f32 %v932, %v1481
      %v1507 = vpack.c.bf16 %v1483, %v1482
      %v1508 = vpack.c.bf16 %v1485, %v1484
      %v1509 = vpack.c.bf16 %v1487, %v1486
      %v1510 = vpack.c.bf16 %v1489, %v1488
      %v1511 = vpack.c.bf16 %v1491, %v1490
      %v1512 = vpack.c.bf16 %v1493, %v1492
      %v1513 = vpack.c.bf16 %v1495, %v1494
      %v1514 = vpack.c.bf16 %v1497, %v1496
      %v1515 = vpack.c.bf16 %v1499, %v1498
      %v1516 = vpack.c.bf16 %v1501, %v1500
      %v1517 = vpack.c.bf16 %v1503, %v1502
      %v1518 = vpack.c.bf16 %v1505, %v1504
      %v1519 = vpack.c.bf16 %v1506, %v1506
      %v1533 = vunpack.c.l.b16 %v1507
      %v1534 = vunpack.c.h.b16 %v1507
      %v1535 = vunpack.c.l.b16 %v1508
      %v1536 = vunpack.c.h.b16 %v1508
      %v1537 = vunpack.c.l.b16 %v1509
      %v1538 = vunpack.c.h.b16 %v1509
      %v1539 = vunpack.c.l.b16 %v1510
      %v1540 = vunpack.c.h.b16 %v1510
      %v1541 = vunpack.c.l.b16 %v1511
      %v1542 = vunpack.c.h.b16 %v1511
      %v1543 = vunpack.c.l.b16 %v1512
      %v1544 = vunpack.c.h.b16 %v1512
      %v1545 = vunpack.c.l.b16 %v1513
      %v1546 = vunpack.c.h.b16 %v1513
      %v1547 = vunpack.c.l.b16 %v1514
      %v1548 = vunpack.c.h.b16 %v1514
      %v1549 = vunpack.c.l.b16 %v1515
      %v1550 = vunpack.c.h.b16 %v1515
      %v1551 = vunpack.c.l.b16 %v1516
      %v1552 = vunpack.c.h.b16 %v1516
      %v1553 = vunpack.c.l.b16 %v1517
      %v1554 = vunpack.c.h.b16 %v1517
      %v1555 = vunpack.c.l.b16 %v1518
      %v1556 = vunpack.c.h.b16 %v1518
      %v1557 = vunpack.c.l.b16 %v1519
      %v1558 = vpack.c.b16 %v1533, %v1533
      %v1559 = vpack.c.b16 %v1534, %v1534
      %v1560 = vpack.c.b16 %v1535, %v1535
      %v1561 = vpack.c.b16 %v1536, %v1536
      %v1562 = vpack.c.b16 %v1537, %v1537
      %v1563 = vpack.c.b16 %v1538, %v1538
      %v1564 = vpack.c.b16 %v1539, %v1539
      %v1565 = vpack.c.b16 %v1540, %v1540
      %v1566 = vpack.c.b16 %v1541, %v1541
      %v1567 = vpack.c.b16 %v1542, %v1542
      %v1568 = vpack.c.b16 %v1543, %v1543
      %v1569 = vpack.c.b16 %v1544, %v1544
      %v1570 = vpack.c.b16 %v1545, %v1545
      %v1571 = vpack.c.b16 %v1546, %v1546
      %v1572 = vpack.c.b16 %v1547, %v1547
      %v1573 = vpack.c.b16 %v1548, %v1548
      %v1574 = vpack.c.b16 %v1549, %v1549
      %v1575 = vpack.c.b16 %v1550, %v1550
      %v1576 = vpack.c.b16 %v1551, %v1551
      %v1577 = vpack.c.b16 %v1552, %v1552
      %v1578 = vpack.c.b16 %v1553, %v1553
      %v1579 = vpack.c.b16 %v1554, %v1554
      %v1580 = vpack.c.b16 %v1555, %v1555
      %v1581 = vpack.c.b16 %v1556, %v1556
      %v1582 = vpack.c.b16 %v1557, %v1557
      %1608 = vst [vmem:[%s311] sm:$0xf] %v1558
      %1609 = vst [vmem:[%s311 + $0x4] sm:$0xf] %v1559
      %1610 = vst [vmem:[%s311 + $0x8] sm:$0xf] %v1560
      %1611 = vst [vmem:[%s311 + $0xc] sm:$0xf] %v1561
      %1612 = vst [vmem:[%s311 + $0x10] sm:$0xf] %v1562
      %1613 = vst [vmem:[%s311 + $0x14] sm:$0xf] %v1563
      %1614 = vst [vmem:[%s311 + $0x18] sm:$0xf] %v1564
      %1615 = vst [vmem:[%s311 + $0x1c] sm:$0xf] %v1565
      %1616 = vst [vmem:[%s311 + $0x20] sm:$0xf] %v1566
      %1617 = vst [vmem:[%s311 + $0x24] sm:$0xf] %v1567
      %1618 = vst [vmem:[%s311 + $0x28] sm:$0xf] %v1568
      %1619 = vst [vmem:[%s311 + $0x2c] sm:$0xf] %v1569
      %1620 = vst [vmem:[%s311 + $0x30] sm:$0xf] %v1570
      %1621 = vst [vmem:[%s311 + $0x34] sm:$0xf] %v1571
      %1622 = vst [vmem:[%s311 + $0x38] sm:$0xf] %v1572
      %1623 = vst [vmem:[%s311 + $0x3c] sm:$0xf] %v1573
      %1624 = vst [vmem:[%s311 + $0x40] sm:$0xf] %v1574
      %1625 = vst [vmem:[%s311 + $0x44] sm:$0xf] %v1575
      %1626 = vst [vmem:[%s311 + $0x48] sm:$0xf] %v1576
      %1627 = vst [vmem:[%s311 + $0x4c] sm:$0xf] %v1577
      %1628 = vst [vmem:[%s311 + $0x50] sm:$0xf] %v1578
      %1629 = vst [vmem:[%s311 + $0x54] sm:$0xf] %v1579
      %1630 = vst [vmem:[%s311 + $0x58] sm:$0xf] %v1580
      %1631 = vst [vmem:[%s311 + $0x5c] sm:$0xf] %v1581
      %1632 = vst [vmem:[%s311 + $0x60] sm:$0x3] %v1582
      %p1633 = scmp.lt.s32.totalorder %s17, 1
      %s1634 = scalar_select %p1633, %s17, 1
      %s1635 = smul.addr %s1634, 25
      %s1636 = smul.addr %s1635, 4
      %s1637 = scalar_lea.vmem %s6, %s1636
      // Predicated region
      $region45: #{lenet5_forward.3} parent=43 // pred_check
        %p1638 = pneg %p181
      $region46: #{lenet5_forward.3} parent=43 // pred_check_branch
        %1640 = sbr.rel (%p1638) target = $region48
      $region47: #{lenet5_forward.3} parent=43 // pred_region
        _
      $region48: #{lenet5_forward.3} parent=43 // pred_fallthru
        _
    $region44: #{lenet5_forward.3} parent=5 // pred_fallthru
      _
    %p1641 = scmp.le.s32.totalorder 2, %s12
    // Predicated region
    $region49: #{lenet5_forward.3} parent=5 // pred_check
      %p1642 = pneg %p1641
    $region50: #{lenet5_forward.3} parent=5 // pred_check_branch
      %1644 = sbr.rel (%p1642) target = $region52
    $region51: #{lenet5_forward.3} parent=5 // pred_region
      %s1645 = ssub.s32 %s12, 2
      // Predicated region
      $region53: #{lenet5_forward.3} parent=51 // pred_check
        %p1646 = pneg %p187
      $region54: #{lenet5_forward.3} parent=51 // pred_check_branch
        %1648 = sbr.rel (%p1646) target = $region56
      $region55: #{lenet5_forward.3} parent=51 // pred_region
        %p1649 = scmp.lt.s32.totalorder %s18, 1
        %s1650 = scalar_select %p1649, %s18, 1
        %s1651 = smul.addr %s1650, 25
        %s1652 = smul.addr %s1651, 4
        %s1653 = scalar_lea.vmem %s6, %s1652
      $region56: #{lenet5_forward.3} parent=51 // pred_fallthru
        _
    $region52: #{lenet5_forward.3} parent=5 // pred_fallthru
      _
  $region6: #{lenet5_forward.3} parent=0 // loop_footer
    %s16 = sadd.s32 1, %s12
  $region7: #{lenet5_forward.3} parent=0 // loop_footer_branch
    %11 = sbr.rel target = $region3
  $region8: #{lenet5_forward.3} parent=0 // loop_exit
    _

// kernel: lenet5_forward.4
$region0: #{lenet5_forward.4}
  #allocation0 [shape = 'u32[]', space=smem, size = 0x4, offset = 0x4, fixed_abs, tag = 'smem constant byte address 0x4 - core index']
  #allocation1 [shape = 'u32[144,128]{1,0:T(1,128)}', space=vmem, size = 0x12000, scoped, tag = 'internal scratch']
  %s0 = inlined_call_operand.vmem [shape: bf16[2,25,256], index: 0, kind: input, shape index: {}]
  %s1 = inlined_call_operand.vmem [shape: bf16[2,25,256], index: 1, kind: input, shape index: {}]
  %s2 = inlined_call_operand.vmem [shape: bf16[2,25,256], index: 2, kind: input, shape index: {}]
  %s3 = inlined_call_operand.vmem [shape: bf16[2,25,256], index: 3, kind: input, shape index: {}]
  %s4 = inlined_call_operand.vmem [shape: bf16[256,128], index: 4, kind: input, shape index: {}]
  %s5 = inlined_call_operand.vmem [shape: f32[1,128], index: 5, kind: input, shape index: {}]
  %s6 = inlined_call_operand.vmem [shape: bf16[2,25,128], index: 6, kind: output, shape index: {}]
  %s7 = sld [smem:[#allocation0]]
  $region57: #{lenet5_forward.4} parent=0
    _
  %s9 = ssub.s32 1, %s7
  %s10 = scalar_select 0, %s9, %s7
  loop: start=0, step=1, limit=4
  $region2: #{lenet5_forward.4} parent=0 // loop_pre_header
    _
  $region3: #{lenet5_forward.4} parent=0 // loop_header
    %s12 = sphi 0, %s16
    %p13 = scmp.ge.s32.totalorder %s12, 4
    %s22 = sphi 0, %s24
    %s25 = sphi 0, %s22
    %s26 = sphi 0, %s25
    %s42 = sphi 0, %s26
    %s48 = sphi 0, %s50
    %s51 = sphi 0, %s48
    %s52 = sphi 0, %s51
    %s68 = sphi 0, %s52
    %s74 = sphi 0, %s76
    %s77 = sphi 0, %s74
    %s78 = sphi 0, %s77
    %s94 = sphi 0, %s78
    %s100 = sphi 0, %s102
    %s103 = sphi 0, %s100
    %s104 = sphi 0, %s103
    %s120 = sphi 0, %s104
    %s124 = sphi 0, %s124
    %s126 = sphi 0, %s124
    %s127 = sphi 0, %s126
    %s141 = sphi 0, %s127
    %s145 = sphi 0, %s145
    %s147 = sphi 0, %s145
    %s148 = sphi 0, %s147
    %s162 = sphi 0, %s148
    %s168 = sphi 0, %s170
    %s171 = sphi 0, %s168
    %s172 = sphi 0, %s171
    %s188 = sphi 0, %s172
  $region4: #{lenet5_forward.4} parent=0 // loop_header_branch
    %15 = sbr.rel (%p13) target = $region8
  $region5: #{lenet5_forward.4} parent=0 // loop_body
    %s17 = ssub.s32 %s12, 1
    %s18 = ssub.s32 %s12, 2
    %s19 = sadd.s32 %s12, 1
    %s20 = ssub.s32 %s12, %s19
    %p21 = scmp.eq.s32.totalorder %s20, 0
    %s23 = sadd.s32 %s22, 1
    %s24 = scalar_select %p21, %s22, %s23
    %p27 = pneg %p21
    %p28 = scmp.eq.s32.totalorder %s12, 1
    %p29 = por %p27, %p28
    %p30 = scmp.ne.s32.totalorder %s22, %s25
    %p31 = scmp.eq.s32.totalorder %s12, 0
    %p32 = por %p30, %p31
    %p33 = scmp.ne.s32.totalorder %s22, %s25
    %p34 = scmp.eq.s32.totalorder %s17, 1
    %p35 = por %p33, %p34
    %p36 = scmp.ne.s32.totalorder %s25, %s26
    %p37 = scmp.eq.s32.totalorder %s17, 0
    %p38 = por %p36, %p37
    %p39 = scmp.ne.s32.totalorder %s25, %s26
    %p40 = scmp.eq.s32.totalorder %s18, 1
    %p41 = por %p39, %p40
    %p43 = scmp.ne.s32.totalorder %s26, %s42
    %p44 = scmp.eq.s32.totalorder %s18, 0
    %p45 = por %p43, %p44
    %s46 = ssub.s32 %s12, %s19
    %p47 = scmp.eq.s32.totalorder %s46, 0
    %s49 = sadd.s32 %s48, 1
    %s50 = scalar_select %p47, %s48, %s49
    %p53 = pneg %p47
    %p54 = scmp.eq.s32.totalorder %s12, 1
    %p55 = por %p53, %p54
    %p56 = scmp.ne.s32.totalorder %s48, %s51
    %p57 = scmp.eq.s32.totalorder %s12, 0
    %p58 = por %p56, %p57
    %p59 = scmp.ne.s32.totalorder %s48, %s51
    %p60 = scmp.eq.s32.totalorder %s17, 1
    %p61 = por %p59, %p60
    %p62 = scmp.ne.s32.totalorder %s51, %s52
    %p63 = scmp.eq.s32.totalorder %s17, 0
    %p64 = por %p62, %p63
    %p65 = scmp.ne.s32.totalorder %s51, %s52
    %p66 = scmp.eq.s32.totalorder %s18, 1
    %p67 = por %p65, %p66
    %p69 = scmp.ne.s32.totalorder %s52, %s68
    %p70 = scmp.eq.s32.totalorder %s18, 0
    %p71 = por %p69, %p70
    %s72 = ssub.s32 %s12, %s19
    %p73 = scmp.eq.s32.totalorder %s72, 0
    %s75 = sadd.s32 %s74, 1
    %s76 = scalar_select %p73, %s74, %s75
    %p79 = pneg %p73
    %p80 = scmp.eq.s32.totalorder %s12, 1
    %p81 = por %p79, %p80
    %p82 = scmp.ne.s32.totalorder %s74, %s77
    %p83 = scmp.eq.s32.totalorder %s12, 0
    %p84 = por %p82, %p83
    %p85 = scmp.ne.s32.totalorder %s74, %s77
    %p86 = scmp.eq.s32.totalorder %s17, 1
    %p87 = por %p85, %p86
    %p88 = scmp.ne.s32.totalorder %s77, %s78
    %p89 = scmp.eq.s32.totalorder %s17, 0
    %p90 = por %p88, %p89
    %p91 = scmp.ne.s32.totalorder %s77, %s78
    %p92 = scmp.eq.s32.totalorder %s18, 1
    %p93 = por %p91, %p92
    %p95 = scmp.ne.s32.totalorder %s78, %s94
    %p96 = scmp.eq.s32.totalorder %s18, 0
    %p97 = por %p95, %p96
    %s98 = ssub.s32 %s12, %s19
    %p99 = scmp.eq.s32.totalorder %s98, 0
    %s101 = sadd.s32 %s100, 1
    %s102 = scalar_select %p99, %s100, %s101
    %p105 = pneg %p99
    %p106 = scmp.eq.s32.totalorder %s12, 1
    %p107 = por %p105, %p106
    %p108 = scmp.ne.s32.totalorder %s100, %s103
    %p109 = scmp.eq.s32.totalorder %s12, 0
    %p110 = por %p108, %p109
    %p111 = scmp.ne.s32.totalorder %s100, %s103
    %p112 = scmp.eq.s32.totalorder %s17, 1
    %p113 = por %p111, %p112
    %p114 = scmp.ne.s32.totalorder %s103, %s104
    %p115 = scmp.eq.s32.totalorder %s17, 0
    %p116 = por %p114, %p115
    %p117 = scmp.ne.s32.totalorder %s103, %s104
    %p118 = scmp.eq.s32.totalorder %s18, 1
    %p119 = por %p117, %p118
    %p121 = scmp.ne.s32.totalorder %s104, %s120
    %p122 = scmp.eq.s32.totalorder %s18, 0
    %p123 = por %p121, %p122
    %s125 = sadd.s32 %s124, 1
    %p128 = scmp.eq.s32.totalorder %s12, 1
    %p129 = scmp.ne.s32.totalorder %s124, %s126
    %p130 = scmp.eq.s32.totalorder %s12, 0
    %p131 = por %p129, %p130
    %p132 = scmp.ne.s32.totalorder %s124, %s126
    %p133 = scmp.eq.s32.totalorder %s17, 1
    %p134 = por %p132, %p133
    %p135 = scmp.ne.s32.totalorder %s126, %s127
    %p136 = scmp.eq.s32.totalorder %s17, 0
    %p137 = por %p135, %p136
    %p138 = scmp.ne.s32.totalorder %s126, %s127
    %p139 = scmp.eq.s32.totalorder %s18, 1
    %p140 = por %p138, %p139
    %p142 = scmp.ne.s32.totalorder %s127, %s141
    %p143 = scmp.eq.s32.totalorder %s18, 0
    %p144 = por %p142, %p143
    %s146 = sadd.s32 %s145, 1
    %p149 = scmp.eq.s32.totalorder %s12, 1
    %p150 = scmp.ne.s32.totalorder %s145, %s147
    %p151 = scmp.eq.s32.totalorder %s12, 0
    %p152 = por %p150, %p151
    %p153 = scmp.ne.s32.totalorder %s145, %s147
    %p154 = scmp.eq.s32.totalorder %s17, 1
    %p155 = por %p153, %p154
    %p156 = scmp.ne.s32.totalorder %s147, %s148
    %p157 = scmp.eq.s32.totalorder %s17, 0
    %p158 = por %p156, %p157
    %p159 = scmp.ne.s32.totalorder %s147, %s148
    %p160 = scmp.eq.s32.totalorder %s18, 1
    %p161 = por %p159, %p160
    %p163 = scmp.ne.s32.totalorder %s148, %s162
    %p164 = scmp.eq.s32.totalorder %s18, 0
    %p165 = por %p163, %p164
    %s166 = ssub.s32 %s12, %s19
    %p167 = scmp.eq.s32.totalorder %s166, 0
    %s169 = sadd.s32 %s168, 1
    %s170 = scalar_select %p167, %s168, %s169
    %p173 = pneg %p167
    %p174 = scmp.eq.s32.totalorder %s12, 1
    %p175 = por %p173, %p174
    %p176 = scmp.ne.s32.totalorder %s168, %s171
    %p177 = scmp.eq.s32.totalorder %s12, 0
    %p178 = por %p176, %p177
    %p179 = scmp.ne.s32.totalorder %s168, %s171
    %p180 = scmp.eq.s32.totalorder %s17, 1
    %p181 = por %p179, %p180
    %p182 = scmp.ne.s32.totalorder %s171, %s172
    %p183 = scmp.eq.s32.totalorder %s17, 0
    %p184 = por %p182, %p183
    %p185 = scmp.ne.s32.totalorder %s171, %s172
    %p186 = scmp.eq.s32.totalorder %s18, 1
    %p187 = por %p185, %p186
    %p189 = scmp.ne.s32.totalorder %s172, %s188
    %p190 = scmp.eq.s32.totalorder %s18, 0
    %p191 = por %p189, %p190
    %p192 = scmp.le.s32.totalorder 1, %s12
    %p193 = scmp.lt.s32.totalorder %s12, 3
    %p194 = pnand %p192, %p193
    %p195 = pneg %p194
    // Predicated region
    $region9: #{lenet5_forward.4} parent=5 // pred_check
      _
    $region10: #{lenet5_forward.4} parent=5 // pred_check_branch
      %197 = sbr.rel (%p194) target = $region12
    $region11: #{lenet5_forward.4} parent=5 // pred_region
      %s198 = ssub.s32 %s12, 1
      // Predicated region
      $region13: #{lenet5_forward.4} parent=11 // pred_check
        %p199 = pneg %p137
      $region14: #{lenet5_forward.4} parent=11 // pred_check_branch
        %201 = sbr.rel (%p199) target = $region16
      $region15: #{lenet5_forward.4} parent=11 // pred_region
        _
      $region16: #{lenet5_forward.4} parent=11 // pred_fallthru
        _
      // Predicated region
      $region17: #{lenet5_forward.4} parent=11 // pred_check
        %p202 = pneg %p158
      $region18: #{lenet5_forward.4} parent=11 // pred_check_branch
        %204 = sbr.rel (%p202) target = $region20
      $region19: #{lenet5_forward.4} parent=11 // pred_region
        _
      $region20: #{lenet5_forward.4} parent=11 // pred_fallthru
        _
    $region12: #{lenet5_forward.4} parent=5 // pred_fallthru
      _
    %p205 = scmp.lt.s32.totalorder %s12, 2
    // Predicated region
    $region21: #{lenet5_forward.4} parent=5 // pred_check
      %p206 = pneg %p205
    $region22: #{lenet5_forward.4} parent=5 // pred_check_branch
      %208 = sbr.rel (%p206) target = $region24
    $region23: #{lenet5_forward.4} parent=5 // pred_region
      // Predicated region
      $region25: #{lenet5_forward.4} parent=23 // pred_check
        %p209 = pneg %p32
      $region26: #{lenet5_forward.4} parent=23 // pred_check_branch
        %211 = sbr.rel (%p209) target = $region28
      $region27: #{lenet5_forward.4} parent=23 // pred_region
        %p212 = scmp.lt.s32.totalorder %s12, 1
        %s213 = scalar_select %p212, %s12, 1
        %s214 = smul.addr %s213, 8
        %s215 = smul.addr %s214, 4
        %s216 = scalar_lea.vmem %s0, %s215
      $region28: #{lenet5_forward.4} parent=23 // pred_fallthru
        _
      // Predicated region
      $region29: #{lenet5_forward.4} parent=23 // pred_check
        %p217 = pneg %p58
      $region30: #{lenet5_forward.4} parent=23 // pred_check_branch
        %219 = sbr.rel (%p217) target = $region32
      $region31: #{lenet5_forward.4} parent=23 // pred_region
        %p220 = scmp.lt.s32.totalorder %s12, 1
        %s221 = scalar_select %p220, %s12, 1
        %s222 = smul.addr %s221, 8
        %s223 = smul.addr %s222, 4
        %s224 = scalar_lea.vmem %s1, %s223
      $region32: #{lenet5_forward.4} parent=23 // pred_fallthru
        _
      // Predicated region
      $region33: #{lenet5_forward.4} parent=23 // pred_check
        %p225 = pneg %p84
      $region34: #{lenet5_forward.4} parent=23 // pred_check_branch
        %227 = sbr.rel (%p225) target = $region36
      $region35: #{lenet5_forward.4} parent=23 // pred_region
        %p228 = scmp.lt.s32.totalorder %s12, 1
        %s229 = scalar_select %p228, %s12, 1
        %s230 = smul.addr %s229, 8
        %s231 = smul.addr %s230, 4
        %s232 = scalar_lea.vmem %s2, %s231
      $region36: #{lenet5_forward.4} parent=23 // pred_fallthru
        _
      // Predicated region
      $region37: #{lenet5_forward.4} parent=23 // pred_check
        %p233 = pneg %p110
      $region38: #{lenet5_forward.4} parent=23 // pred_check_branch
        %235 = sbr.rel (%p233) target = $region40
      $region39: #{lenet5_forward.4} parent=23 // pred_region
        %p236 = scmp.lt.s32.totalorder %s12, 1
        %s237 = scalar_select %p236, %s12, 1
        %s238 = smul.addr %s237, 8
        %s239 = smul.addr %s238, 4
        %s240 = scalar_lea.vmem %s3, %s239
      $region40: #{lenet5_forward.4} parent=23 // pred_fallthru
        _
    $region24: #{lenet5_forward.4} parent=5 // pred_fallthru
      _
    %p241 = scmp.le.s32.totalorder 1, %s12
    %p242 = scmp.lt.s32.totalorder %s12, 3
    %p243 = pnand %p241, %p242
    %p244 = pneg %p243
    // Predicated region
    $region41: #{lenet5_forward.4} parent=5 // pred_check
      _
    $region42: #{lenet5_forward.4} parent=5 // pred_check_branch
      %246 = sbr.rel (%p243) target = $region44
    $region43: #{lenet5_forward.4} parent=5 // pred_region
      %s247 = ssub.s32 %s12, 1
      %p248 = scmp.lt.s32.totalorder %s17, 1
      %s249 = scalar_select %p248, %s17, 1
      %s250 = smul.addr %s249, 8
      %s251 = smul.addr %s250, 4
      %s252 = scalar_lea.vmem %s0, %s251
      %p253 = pneg %p38
      %p254 = pneg %p35
      %p255 = scmp.lt.s32.totalorder %s17, 1
      %s256 = scalar_select %p255, %s17, 1
      %s257 = smul.addr %s256, 8
      %s258 = smul.addr %s257, 4
      %s259 = scalar_lea.vmem %s1, %s258
      %p260 = pneg %p64
      %p261 = pneg %p61
      %p262 = scmp.lt.s32.totalorder %s17, 1
      %s263 = scalar_select %p262, %s17, 1
      %s264 = smul.addr %s263, 8
      %s265 = smul.addr %s264, 4
      %s266 = scalar_lea.vmem %s2, %s265
      %p267 = pneg %p90
      %p268 = pneg %p87
      %p269 = scmp.lt.s32.totalorder %s17, 1
      %s270 = scalar_select %p269, %s17, 1
      %s271 = smul.addr %s270, 8
      %s272 = smul.addr %s271, 4
      %s273 = scalar_lea.vmem %s3, %s272
      %p274 = pneg %p116
      %p275 = pneg %p113
      %p276 = pneg %p137
      %p277 = pneg %p134
      %p278 = pneg %p158
      %p279 = pneg %p155
      %p280 = pneg %p184
      %p281 = pneg %p181
      %p282 = scmp.lt.s32.totalorder %s17, 1
      %s283 = scalar_select %p282, %s17, 1
      %s284 = smul.addr %s283, 4
      %s285 = smul.addr %s284, 4
      %s286 = scalar_lea.vmem %s6, %s285
      %p287 = scmp.lt.s32.totalorder %s17, 1
      %s288 = scalar_select %p287, %s17, 1
      %s289 = smul.addr %s288, 8
      %s290 = smul.addr %s289, 4
      %s291 = scalar_lea.vmem %s0, %s290
      %p292 = scmp.lt.s32.totalorder %s17, 1
      %s293 = scalar_select %p292, %s17, 1
      %s294 = smul.addr %s293, 8
      %s295 = smul.addr %s294, 4
      %s296 = scalar_lea.vmem %s1, %s295
      %p297 = scmp.lt.s32.totalorder %s17, 1
      %s298 = scalar_select %p297, %s17, 1
      %s299 = smul.addr %s298, 8
      %s300 = smul.addr %s299, 4
      %s301 = scalar_lea.vmem %s2, %s300
      %p302 = scmp.lt.s32.totalorder %s17, 1
      %s303 = scalar_select %p302, %s17, 1
      %s304 = smul.addr %s303, 8
      %s305 = smul.addr %s304, 4
      %s306 = scalar_lea.vmem %s3, %s305
      %p307 = scmp.lt.s32.totalorder %s17, 1
      %s308 = scalar_select %p307, %s17, 1
      %s309 = smul.addr %s308, 4
      %s310 = smul.addr %s309, 4
      %s311 = scalar_lea.vmem %s6, %s310
      %v313 = vld [vmem:[%s4] sm:$0xf]
      %v314 = vld [vmem:[%s4 + $0x4] sm:$0xf]
      %v315 = vld [vmem:[%s4 + $0x8] sm:$0xf]
      %v316 = vld [vmem:[%s4 + $0xc] sm:$0xf]
      %v317 = vld [vmem:[%s4 + $0x10] sm:$0xf]
      %v318 = vld [vmem:[%s4 + $0x14] sm:$0xf]
      %v319 = vld [vmem:[%s4 + $0x18] sm:$0xf]
      %v320 = vld [vmem:[%s4 + $0x1c] sm:$0xf]
      %v321 = vld [vmem:[%s4 + $0x20] sm:$0xf]
      %v322 = vld [vmem:[%s4 + $0x24] sm:$0xf]
      %v323 = vld [vmem:[%s4 + $0x28] sm:$0xf]
      %v324 = vld [vmem:[%s4 + $0x2c] sm:$0xf]
      %v325 = vld [vmem:[%s4 + $0x30] sm:$0xf]
      %v326 = vld [vmem:[%s4 + $0x34] sm:$0xf]
      %v327 = vld [vmem:[%s4 + $0x38] sm:$0xf]
      %v328 = vld [vmem:[%s4 + $0x3c] sm:$0xf]
      %v329 = vld [vmem:[%s4 + $0x40] sm:$0xf]
      %v330 = vld [vmem:[%s4 + $0x44] sm:$0xf]
      %v331 = vld [vmem:[%s4 + $0x48] sm:$0xf]
      %v332 = vld [vmem:[%s4 + $0x4c] sm:$0xf]
      %v333 = vld [vmem:[%s4 + $0x50] sm:$0xf]
      %v334 = vld [vmem:[%s4 + $0x54] sm:$0xf]
      %v335 = vld [vmem:[%s4 + $0x58] sm:$0xf]
      %v336 = vld [vmem:[%s4 + $0x5c] sm:$0xf]
      %v337 = vld [vmem:[%s4 + $0x60] sm:$0xf]
      %v338 = vld [vmem:[%s4 + $0x64] sm:$0xf]
      %v339 = vld [vmem:[%s4 + $0x68] sm:$0xf]
      %v340 = vld [vmem:[%s4 + $0x6c] sm:$0xf]
      %v341 = vld [vmem:[%s4 + $0x70] sm:$0xf]
      %v342 = vld [vmem:[%s4 + $0x74] sm:$0xf]
      %v343 = vld [vmem:[%s4 + $0x78] sm:$0xf]
      %v344 = vld [vmem:[%s4 + $0x7c] sm:$0xf]
      %v345 = vld [vmem:[%s5] sm:$0x1]
      %v346 = vld [vmem:[%s291] sm:$0xff]
      %v347 = vld [vmem:[%s291 + $0x8] sm:$0xff]
      %v348 = vld [vmem:[%s291 + $0x10] sm:$0xff]
      %v349 = vld [vmem:[%s291 + $0x18] sm:$0x11]
      %v351 = vlaneseq
      %v352 = vshrl.u32 %v351, 7
      %v353 = vsub.s32 0, %v352
      %v354 = vrot.slane %v345, %v353
      %v360 = vunpack.c.l.b16 %v346
      %v361 = vunpack.c.h.b16 %v346
      %v362 = vunpack.c.l.b16 %v347
      %v363 = vunpack.c.h.b16 %v347
      %v364 = vunpack.c.l.b16 %v348
      %v365 = vunpack.c.h.b16 %v348
      %v366 = vunpack.c.l.b16 %v349
      %v367 = vunpack.c.h.b16 %v349
      %v368 = vpack.c.b16 %v362, %v360
      %v369 = vpack.c.b16 %v363, %v361
      %v370 = vpack.c.b16 %v366, %v364
      %v371 = vpack.c.b16 %v367, %v365
      %v408 = vunpack.c.l.b16 %v313
      %v409 = vunpack.c.l.b16 %v314
      %v410 = vunpack.c.l.b16 %v315
      %v411 = vunpack.c.l.b16 %v316
      %v412 = vunpack.c.l.b16 %v317
      %v413 = vunpack.c.l.b16 %v318
      %v414 = vunpack.c.l.b16 %v319
      %v415 = vunpack.c.l.b16 %v320
      %v416 = vunpack.c.l.b16 %v321
      %v417 = vunpack.c.l.b16 %v322
      %v418 = vunpack.c.l.b16 %v323
      %v419 = vunpack.c.l.b16 %v324
      %v420 = vunpack.c.l.b16 %v325
      %v421 = vunpack.c.l.b16 %v326
      %v422 = vunpack.c.l.b16 %v327
      %v423 = vunpack.c.l.b16 %v328
      %v424 = vunpack.c.l.b16 %v329
      %v425 = vunpack.c.l.b16 %v330
      %v426 = vunpack.c.l.b16 %v331
      %v427 = vunpack.c.l.b16 %v332
      %v428 = vunpack.c.l.b16 %v333
      %v429 = vunpack.c.l.b16 %v334
      %v430 = vunpack.c.l.b16 %v335
      %v431 = vunpack.c.l.b16 %v336
      %v432 = vunpack.c.l.b16 %v337
      %v433 = vunpack.c.l.b16 %v338
      %v434 = vunpack.c.l.b16 %v339
      %v435 = vunpack.c.l.b16 %v340
      %v436 = vunpack.c.l.b16 %v341
      %v437 = vunpack.c.l.b16 %v342
      %v438 = vunpack.c.l.b16 %v343
      %v439 = vunpack.c.l.b16 %v344
      %v440 = vpack.c.b16 %v409, %v408
      %v441 = vpack.c.b16 %v411, %v410
      %v442 = vpack.c.b16 %v413, %v412
      %v443 = vpack.c.b16 %v415, %v414
      %v444 = vpack.c.b16 %v417, %v416
      %v445 = vpack.c.b16 %v419, %v418
      %v446 = vpack.c.b16 %v421, %v420
      %v447 = vpack.c.b16 %v423, %v422
      %v448 = vpack.c.b16 %v425, %v424
      %v449 = vpack.c.b16 %v427, %v426
      %v450 = vpack.c.b16 %v429, %v428
      %v451 = vpack.c.b16 %v431, %v430
      %v452 = vpack.c.b16 %v433, %v432
      %v453 = vpack.c.b16 %v435, %v434
      %v454 = vpack.c.b16 %v437, %v436
      %v455 = vpack.c.b16 %v439, %v438
      %472 = vmatprep.subr.bf16.mxu0 0
      %473 = vmatpush1.bf16.msra.mxu0 %v447
      %474 = vmatprep.subr.bf16.mxu0 0
      %475 = vmatpush1.bf16.msra.mxu0 %v446
      %476 = vmatprep.subr.bf16.mxu0 0
      %477 = vmatpush1.bf16.msra.mxu0 %v445
      %478 = vmatprep.subr.bf16.mxu0 0
      %479 = vmatpush1.bf16.msra.mxu0 %v444
      %480 = vmatprep.subr.bf16.mxu0 0
      %481 = vmatpush1.bf16.msra.mxu0 %v443
      %482 = vmatprep.subr.bf16.mxu0 0
      %483 = vmatpush1.bf16.msra.mxu0 %v442
      %484 = vmatprep.subr.bf16.mxu0 0
      %485 = vmatpush1.bf16.msra.mxu0 %v441
      %486 = vmatprep.subr.bf16.mxu0 0
      %487 = vmatpush1.bf16.msra.mxu0 %v440
      %488 = vmatprep.subr.bf16.mxu0 0
      %489 = vmatpush2.bf16.msra.mxu0 %v455
      %490 = vmatprep.subr.bf16.mxu0 0
      %491 = vmatpush2.bf16.msra.mxu0 %v454
      %492 = vmatprep.subr.bf16.mxu0 0
      %493 = vmatpush2.bf16.msra.mxu0 %v453
      %494 = vmatprep.subr.bf16.mxu0 0
      %495 = vmatpush2.bf16.msra.mxu0 %v452
      %496 = vmatprep.subr.bf16.mxu0 0
      %497 = vmatpush2.bf16.msra.mxu0 %v451
      %498 = vmatprep.subr.bf16.mxu0 0
      %499 = vmatpush2.bf16.msra.mxu0 %v450
      %500 = vmatprep.subr.bf16.mxu0 0
      %501 = vmatpush2.bf16.msra.mxu0 %v449
      %502 = vmatprep.subr.bf16.mxu0 0
      %503 = vmatpush2.bf16.msra.mxu0 %v448
      %504 = vmatprep.mubr.bf16.mxu0 %v369
      %505 = vmatmul.mubr.bf16.gmra.mxu0 %v368
      %v506 = vpop.f32.mrf.mxu0
      %v507 = vadd.f32 %v354, %v506
      %v508 = vpop.f32.mrf.mxu0
      %v509 = vpop.f32.mrf.mxu0
      %v510 = vadd.f32 %v354, %v509
      %v511 = vpop.f32.mrf.mxu0
      %512 = vmatprep.mubr.bf16.mxu0 %v371
      %513 = vmatmul.mubr.bf16.gmra.mxu0 %v370
      %v514 = vpop.f32.mrf.mxu0
      %v515 = vadd.f32 %v354, %v514
      %v516 = vpop.f32.mrf.mxu0
      %v517 = vpop.f32.mrf.mxu0
      %v518 = vadd.f32 %v354, %v517
      %v519 = vpop.f32.mrf.mxu0
      %520 = vdwg.mxu0
      %v521 = vmax.f32 %v507, 0.0
      %v522 = vmax.f32 %v510, 0.0
      %v523 = vmax.f32 %v515, 0.0
      %v524 = vmax.f32 %v518, 0.0
      %v525 = vld [vmem:[%s296] sm:$0xff]
      %v526 = vld [vmem:[%s296 + $0x8] sm:$0xff]
      %v527 = vld [vmem:[%s296 + $0x10] sm:$0xff]
      %v528 = vld [vmem:[%s296 + $0x18] sm:$0x11]
      %v533 = vunpack.c.l.b16 %v525
      %v534 = vunpack.c.h.b16 %v525
      %v535 = vunpack.c.l.b16 %v526
      %v536 = vunpack.c.h.b16 %v526
      %v537 = vunpack.c.l.b16 %v527
      %v538 = vunpack.c.h.b16 %v527
      %v539 = vunpack.c.l.b16 %v528
      %v540 = vunpack.c.h.b16 %v528
      %v541 = vpack.c.b16 %v535, %v533
      %v542 = vpack.c.b16 %v536, %v534
      %v543 = vpack.c.b16 %v539, %v537
      %v544 = vpack.c.b16 %v540, %v538
      %549 = vmatprep.subr.bf16.mxu0 0
      %550 = vmatpush1.bf16.msra.mxu0 %v447
      %551 = vmatprep.subr.bf16.mxu0 0
      %552 = vmatpush1.bf16.msra.mxu0 %v446
      %553 = vmatprep.subr.bf16.mxu0 0
      %554 = vmatpush1.bf16.msra.mxu0 %v445
      %555 = vmatprep.subr.bf16.mxu0 0
      %556 = vmatpush1.bf16.msra.mxu0 %v444
      %557 = vmatprep.subr.bf16.mxu0 0
      %558 = vmatpush1.bf16.msra.mxu0 %v443
      %559 = vmatprep.subr.bf16.mxu0 0
      %560 = vmatpush1.bf16.msra.mxu0 %v442
      %561 = vmatprep.subr.bf16.mxu0 0
      %562 = vmatpush1.bf16.msra.mxu0 %v441
      %563 = vmatprep.subr.bf16.mxu0 0
      %564 = vmatpush1.bf16.msra.mxu0 %v440
      %565 = vmatprep.subr.bf16.mxu0 0
      %566 = vmatpush2.bf16.msra.mxu0 %v455
      %567 = vmatprep.subr.bf16.mxu0 0
      %568 = vmatpush2.bf16.msra.mxu0 %v454
      %569 = vmatprep.subr.bf16.mxu0 0
      %570 = vmatpush2.bf16.msra.mxu0 %v453
      %571 = vmatprep.subr.bf16.mxu0 0
      %572 = vmatpush2.bf16.msra.mxu0 %v452
      %573 = vmatprep.subr.bf16.mxu0 0
      %574 = vmatpush2.bf16.msra.mxu0 %v451
      %575 = vmatprep.subr.bf16.mxu0 0
      %576 = vmatpush2.bf16.msra.mxu0 %v450
      %577 = vmatprep.subr.bf16.mxu0 0
      %578 = vmatpush2.bf16.msra.mxu0 %v449
      %579 = vmatprep.subr.bf16.mxu0 0
      %580 = vmatpush2.bf16.msra.mxu0 %v448
      %581 = vmatprep.mubr.bf16.mxu0 %v542
      %582 = vmatmul.mubr.bf16.gmra.mxu0 %v541
      %v583 = vpop.f32.mrf.mxu0
      %v584 = vadd.f32 %v354, %v583
      %v585 = vpop.f32.mrf.mxu0
      %v586 = vpop.f32.mrf.mxu0
      %v587 = vadd.f32 %v354, %v586
      %v588 = vpop.f32.mrf.mxu0
      %589 = vmatprep.mubr.bf16.mxu0 %v544
      %590 = vmatmul.mubr.bf16.gmra.mxu0 %v543
      %v591 = vpop.f32.mrf.mxu0
      %v592 = vadd.f32 %v354, %v591
      %v593 = vpop.f32.mrf.mxu0
      %v594 = vpop.f32.mrf.mxu0
      %v595 = vadd.f32 %v354, %v594
      %v596 = vpop.f32.mrf.mxu0
      %597 = vdwg.mxu0
      %v598 = vmax.f32 %v584, 0.0
      %v599 = vmax.f32 %v587, 0.0
      %v600 = vmax.f32 %v592, 0.0
      %v601 = vmax.f32 %v595, 0.0
      %v602 = vmax.f32 %v521, %v598
      %v603 = vmax.f32 %v522, %v599
      %v604 = vmax.f32 %v523, %v600
      %v605 = vmax.f32 %v524, %v601
      %v606 = vld [vmem:[%s301] sm:$0xff]
      %v607 = vld [vmem:[%s301 + $0x8] sm:$0xff]
      %v608 = vld [vmem:[%s301 + $0x10] sm:$0xff]
      %v609 = vld [vmem:[%s301 + $0x18] sm:$0x11]
      %v614 = vunpack.c.l.b16 %v606
      %v615 = vunpack.c.h.b16 %v606
      %v616 = vunpack.c.l.b16 %v607
      %v617 = vunpack.c.h.b16 %v607
      %v618 = vunpack.c.l.b16 %v608
      %v619 = vunpack.c.h.b16 %v608
      %v620 = vunpack.c.l.b16 %v609
      %v621 = vunpack.c.h.b16 %v609
      %v622 = vpack.c.b16 %v616, %v614
      %v623 = vpack.c.b16 %v617, %v615
      %v624 = vpack.c.b16 %v620, %v618
      %v625 = vpack.c.b16 %v621, %v619
      %630 = vmatprep.subr.bf16.mxu0 0
      %631 = vmatpush1.bf16.msra.mxu0 %v447
      %632 = vmatprep.subr.bf16.mxu0 0
      %633 = vmatpush1.bf16.msra.mxu0 %v446
      %634 = vmatprep.subr.bf16.mxu0 0
      %635 = vmatpush1.bf16.msra.mxu0 %v445
      %636 = vmatprep.subr.bf16.mxu0 0
      %637 = vmatpush1.bf16.msra.mxu0 %v444
      %638 = vmatprep.subr.bf16.mxu0 0
      %639 = vmatpush1.bf16.msra.mxu0 %v443
      %640 = vmatprep.subr.bf16.mxu0 0
      %641 = vmatpush1.bf16.msra.mxu0 %v442
      %642 = vmatprep.subr.bf16.mxu0 0
      %643 = vmatpush1.bf16.msra.mxu0 %v441
      %644 = vmatprep.subr.bf16.mxu0 0
      %645 = vmatpush1.bf16.msra.mxu0 %v440
      %646 = vmatprep.subr.bf16.mxu0 0
      %647 = vmatpush2.bf16.msra.mxu0 %v455
      %648 = vmatprep.subr.bf16.mxu0 0
      %649 = vmatpush2.bf16.msra.mxu0 %v454
      %650 = vmatprep.subr.bf16.mxu0 0
      %651 = vmatpush2.bf16.msra.mxu0 %v453
      %652 = vmatprep.subr.bf16.mxu0 0
      %653 = vmatpush2.bf16.msra.mxu0 %v452
      %654 = vmatprep.subr.bf16.mxu0 0
      %655 = vmatpush2.bf16.msra.mxu0 %v451
      %656 = vmatprep.subr.bf16.mxu0 0
      %657 = vmatpush2.bf16.msra.mxu0 %v450
      %658 = vmatprep.subr.bf16.mxu0 0
      %659 = vmatpush2.bf16.msra.mxu0 %v449
      %660 = vmatprep.subr.bf16.mxu0 0
      %661 = vmatpush2.bf16.msra.mxu0 %v448
      %662 = vmatprep.mubr.bf16.mxu0 %v623
      %663 = vmatmul.mubr.bf16.gmra.mxu0 %v622
      %v664 = vpop.f32.mrf.mxu0
      %v665 = vadd.f32 %v354, %v664
      %v666 = vpop.f32.mrf.mxu0
      %v667 = vpop.f32.mrf.mxu0
      %v668 = vadd.f32 %v354, %v667
      %v669 = vpop.f32.mrf.mxu0
      %670 = vmatprep.mubr.bf16.mxu0 %v625
      %671 = vmatmul.mubr.bf16.gmra.mxu0 %v624
      %v672 = vpop.f32.mrf.mxu0
      %v673 = vadd.f32 %v354, %v672
      %v674 = vpop.f32.mrf.mxu0
      %v675 = vpop.f32.mrf.mxu0
      %v676 = vadd.f32 %v354, %v675
      %v677 = vpop.f32.mrf.mxu0
      %678 = vdwg.mxu0
      %v679 = vmax.f32 %v665, 0.0
      %v680 = vmax.f32 %v668, 0.0
      %v681 = vmax.f32 %v673, 0.0
      %v682 = vmax.f32 %v676, 0.0
      %v683 = vld [vmem:[%s306] sm:$0xff]
      %v684 = vld [vmem:[%s306 + $0x8] sm:$0xff]
      %v685 = vld [vmem:[%s306 + $0x10] sm:$0xff]
      %v686 = vld [vmem:[%s306 + $0x18] sm:$0x11]
      %v691 = vunpack.c.l.b16 %v683
      %v692 = vunpack.c.h.b16 %v683
      %v693 = vunpack.c.l.b16 %v684
      %v694 = vunpack.c.h.b16 %v684
      %v695 = vunpack.c.l.b16 %v685
      %v696 = vunpack.c.h.b16 %v685
      %v697 = vunpack.c.l.b16 %v686
      %v698 = vunpack.c.h.b16 %v686
      %v699 = vpack.c.b16 %v693, %v691
      %v700 = vpack.c.b16 %v694, %v692
      %v701 = vpack.c.b16 %v697, %v695
      %v702 = vpack.c.b16 %v698, %v696
      %707 = vmatprep.subr.bf16.mxu0 0
      %708 = vmatpush1.bf16.msra.mxu0 %v447
      %709 = vmatprep.subr.bf16.mxu0 0
      %710 = vmatpush1.bf16.msra.mxu0 %v446
      %711 = vmatprep.subr.bf16.mxu0 0
      %712 = vmatpush1.bf16.msra.mxu0 %v445
      %713 = vmatprep.subr.bf16.mxu0 0
      %714 = vmatpush1.bf16.msra.mxu0 %v444
      %715 = vmatprep.subr.bf16.mxu0 0
      %716 = vmatpush1.bf16.msra.mxu0 %v443
      %717 = vmatprep.subr.bf16.mxu0 0
      %718 = vmatpush1.bf16.msra.mxu0 %v442
      %719 = vmatprep.subr.bf16.mxu0 0
      %720 = vmatpush1.bf16.msra.mxu0 %v441
      %721 = vmatprep.subr.bf16.mxu0 0
      %722 = vmatpush1.bf16.msra.mxu0 %v440
      %723 = vmatprep.subr.bf16.mxu0 0
      %724 = vmatpush2.bf16.msra.mxu0 %v455
      %725 = vmatprep.subr.bf16.mxu0 0
      %726 = vmatpush2.bf16.msra.mxu0 %v454
      %727 = vmatprep.subr.bf16.mxu0 0
      %728 = vmatpush2.bf16.msra.mxu0 %v453
      %729 = vmatprep.subr.bf16.mxu0 0
      %730 = vmatpush2.bf16.msra.mxu0 %v452
      %731 = vmatprep.subr.bf16.mxu0 0
      %732 = vmatpush2.bf16.msra.mxu0 %v451
      %733 = vmatprep.subr.bf16.mxu0 0
      %734 = vmatpush2.bf16.msra.mxu0 %v450
      %735 = vmatprep.subr.bf16.mxu0 0
      %736 = vmatpush2.bf16.msra.mxu0 %v449
      %737 = vmatprep.subr.bf16.mxu0 0
      %738 = vmatpush2.bf16.msra.mxu0 %v448
      %739 = vmatprep.mubr.bf16.mxu0 %v700
      %740 = vmatmul.mubr.bf16.gmra.mxu0 %v699
      %v741 = vpop.f32.mrf.mxu0
      %v742 = vadd.f32 %v354, %v741
      %v743 = vpop.f32.mrf.mxu0
      %v744 = vpop.f32.mrf.mxu0
      %v745 = vadd.f32 %v354, %v744
      %v746 = vpop.f32.mrf.mxu0
      %747 = vmatprep.mubr.bf16.mxu0 %v702
      %748 = vmatmul.mubr.bf16.gmra.mxu0 %v701
      %v749 = vpop.f32.mrf.mxu0
      %v750 = vadd.f32 %v354, %v749
      %v751 = vpop.f32.mrf.mxu0
      %v752 = vpop.f32.mrf.mxu0
      %v753 = vadd.f32 %v354, %v752
      %v754 = vpop.f32.mrf.mxu0
      %755 = vdwg.mxu0
      %v756 = vmax.f32 %v742, 0.0
      %v757 = vmax.f32 %v745, 0.0
      %v758 = vmax.f32 %v750, 0.0
      %v759 = vmax.f32 %v753, 0.0
      %v760 = vmax.f32 %v679, %v756
      %v761 = vmax.f32 %v680, %v757
      %v762 = vmax.f32 %v681, %v758
      %v763 = vmax.f32 %v682, %v759
      %v764 = vmax.f32 %v602, %v760
      %v765 = vmax.f32 %v603, %v761
      %v766 = vmax.f32 %v604, %v762
      %v767 = vmax.f32 %v605, %v763
      %v768 = vpack.c.bf16 %v765, %v764
      %v769 = vpack.c.bf16 %v767, %v766
      %v772 = vunpack.c.l.b16 %v768
      %v773 = vunpack.c.h.b16 %v768
      %v774 = vunpack.c.l.b16 %v769
      %v775 = vunpack.c.h.b16 %v769
      %v776 = vpack.c.b16 %v772, %v772
      %v777 = vpack.c.b16 %v773, %v773
      %v778 = vpack.c.b16 %v774, %v774
      %v779 = vpack.c.b16 %v775, %v775
      %784 = vst [vmem:[%s311] sm:$0xf] %v776
      %785 = vst [vmem:[%s311 + $0x4] sm:$0xf] %v777
      %786 = vst [vmem:[%s311 + $0x8] sm:$0xf] %v778
      %vm787 = vcmask 1040384
      %vm788 = vsmask.f32 256
      %vm789 = vmand %vm787, %vm788
      %v790 = vld [vmem:[%s311 + $0xc] sm:$0x1]
      %v791 = vsel %vm789, %v779, %v790
      %792 = vst [vmem:[%s311 + $0xc] sm:$0x1] %v791
      %p793 = scmp.lt.s32.totalorder %s17, 1
      %s794 = scalar_select %p793, %s17, 1
      %s795 = smul.addr %s794, 4
      %s796 = smul.addr %s795, 4
      %s797 = scalar_lea.vmem %s6, %s796
      // Predicated region
      $region45: #{lenet5_forward.4} parent=43 // pred_check
        %p798 = pneg %p181
      $region46: #{lenet5_forward.4} parent=43 // pred_check_branch
        %800 = sbr.rel (%p798) target = $region48
      $region47: #{lenet5_forward.4} parent=43 // pred_region
        _
      $region48: #{lenet5_forward.4} parent=43 // pred_fallthru
        _
    $region44: #{lenet5_forward.4} parent=5 // pred_fallthru
      _
    %p801 = scmp.le.s32.totalorder 2, %s12
    // Predicated region
    $region49: #{lenet5_forward.4} parent=5 // pred_check
      %p802 = pneg %p801
    $region50: #{lenet5_forward.4} parent=5 // pred_check_branch
      %804 = sbr.rel (%p802) target = $region52
    $region51: #{lenet5_forward.4} parent=5 // pred_region
      %s805 = ssub.s32 %s12, 2
      // Predicated region
      $region53: #{lenet5_forward.4} parent=51 // pred_check
        %p806 = pneg %p187
      $region54: #{lenet5_forward.4} parent=51 // pred_check_branch
        %808 = sbr.rel (%p806) target = $region56
      $region55: #{lenet5_forward.4} parent=51 // pred_region
        %p809 = scmp.lt.s32.totalorder %s18, 1
        %s810 = scalar_select %p809, %s18, 1
        %s811 = smul.addr %s810, 4
        %s812 = smul.addr %s811, 4
        %s813 = scalar_lea.vmem %s6, %s812
      $region56: #{lenet5_forward.4} parent=51 // pred_fallthru
        _
    $region52: #{lenet5_forward.4} parent=5 // pred_fallthru
      _
  $region6: #{lenet5_forward.4} parent=0 // loop_footer
    %s16 = sadd.s32 1, %s12
  $region7: #{lenet5_forward.4} parent=0 // loop_footer_branch
    %11 = sbr.rel target = $region3
  $region8: #{lenet5_forward.4} parent=0 // loop_exit
    _

// kernel: lenet5_forward.5
$region0: #{lenet5_forward.5}
  #allocation0 [shape = 'u32[]', space=smem, size = 0x4, offset = 0x4, fixed_abs, tag = 'smem constant byte address 0x4 - core index']
  #allocation1 [shape = 'u32[144,128]{1,0:T(1,128)}', space=vmem, size = 0x12000, scoped, tag = 'internal scratch']
  %s0 = inlined_call_operand.vmem [shape: bf16[8,3200], index: 0, kind: input, shape index: {}]
  %s1 = inlined_call_operand.vmem [shape: bf16[3200,128], index: 1, kind: input, shape index: {}]
  %s2 = inlined_call_operand.vmem [shape: f32[1,128], index: 2, kind: input, shape index: {}]
  %s3 = inlined_call_operand.vmem [shape: bf16[128,128], index: 3, kind: input, shape index: {}]
  %s4 = inlined_call_operand.vmem [shape: f32[1,128], index: 4, kind: input, shape index: {}]
  %s5 = inlined_call_operand.vmem [shape: bf16[128,128], index: 5, kind: input, shape index: {}]
  %s6 = inlined_call_operand.vmem [shape: f32[1,128], index: 6, kind: input, shape index: {}]
  %s7 = inlined_call_operand.vmem [shape: f32[8,128], index: 7, kind: output, shape index: {}]
  %s8 = sld [smem:[#allocation0]]
  $region38: #{lenet5_forward.5} parent=0
    _
  %s10 = ssub.s32 1, %s8
  %s11 = scalar_select 0, %s10, %s8
  // Predicated region
  $region2: #{lenet5_forward.5} parent=0 // pred_check
    _
  $region3: #{lenet5_forward.5} parent=0 // pred_check_branch
    %13 = sbr.rel (0) target = $region5
  $region4: #{lenet5_forward.5} parent=0 // pred_region
    _
  $region5: #{lenet5_forward.5} parent=0 // pred_fallthru
    _
  // Predicated region
  $region6: #{lenet5_forward.5} parent=0 // pred_check
    _
  $region7: #{lenet5_forward.5} parent=0 // pred_check_branch
    %15 = sbr.rel (0) target = $region9
  $region8: #{lenet5_forward.5} parent=0 // pred_region
    _
  $region9: #{lenet5_forward.5} parent=0 // pred_fallthru
    _
  // Predicated region
  $region10: #{lenet5_forward.5} parent=0 // pred_check
    _
  $region11: #{lenet5_forward.5} parent=0 // pred_check_branch
    %17 = sbr.rel (0) target = $region13
  $region12: #{lenet5_forward.5} parent=0 // pred_region
    _
  $region13: #{lenet5_forward.5} parent=0 // pred_fallthru
    _
  // Predicated region
  $region14: #{lenet5_forward.5} parent=0 // pred_check
    _
  $region15: #{lenet5_forward.5} parent=0 // pred_check_branch
    %19 = sbr.rel (0) target = $region17
  $region16: #{lenet5_forward.5} parent=0 // pred_region
    _
  $region17: #{lenet5_forward.5} parent=0 // pred_fallthru
    _
  // Predicated region
  $region18: #{lenet5_forward.5} parent=0 // pred_check
    _
  $region19: #{lenet5_forward.5} parent=0 // pred_check_branch
    %21 = sbr.rel (0) target = $region21
  $region20: #{lenet5_forward.5} parent=0 // pred_region
    _
  $region21: #{lenet5_forward.5} parent=0 // pred_fallthru
    _
  // Predicated region
  $region22: #{lenet5_forward.5} parent=0 // pred_check
    _
  $region23: #{lenet5_forward.5} parent=0 // pred_check_branch
    %23 = sbr.rel (0) target = $region25
  $region24: #{lenet5_forward.5} parent=0 // pred_region
    _
  $region25: #{lenet5_forward.5} parent=0 // pred_fallthru
    _
  // Predicated region
  $region26: #{lenet5_forward.5} parent=0 // pred_check
    _
  $region27: #{lenet5_forward.5} parent=0 // pred_check_branch
    %25 = sbr.rel (0) target = $region29
  $region28: #{lenet5_forward.5} parent=0 // pred_region
    _
  $region29: #{lenet5_forward.5} parent=0 // pred_fallthru
    _
  %v27 = vld [vmem:[%s0] sm:$0xff]
  %v28 = vld [vmem:[%s0 + $0x8] sm:$0xff]
  %v29 = vld [vmem:[%s0 + $0x10] sm:$0xff]
  %v30 = vld [vmem:[%s0 + $0x18] sm:$0xff]
  %v31 = vld [vmem:[%s0 + $0x20] sm:$0xff]
  %v32 = vld [vmem:[%s0 + $0x28] sm:$0xff]
  %v33 = vld [vmem:[%s0 + $0x30] sm:$0xff]
  %v34 = vld [vmem:[%s0 + $0x38] sm:$0xff]
  %v35 = vld [vmem:[%s0 + $0x40] sm:$0xff]
  %v36 = vld [vmem:[%s0 + $0x48] sm:$0xff]
  %v37 = vld [vmem:[%s0 + $0x50] sm:$0xff]
  %v38 = vld [vmem:[%s0 + $0x58] sm:$0xff]
  %v39 = vld [vmem:[%s0 + $0x60] sm:$0xf]
  %v40 = vld [vmem:[%s1] sm:$0xf]
  %v41 = vld [vmem:[%s1 + $0x4] sm:$0xf]
  %v42 = vld [vmem:[%s1 + $0x8] sm:$0xf]
  %v43 = vld [vmem:[%s1 + $0xc] sm:$0xf]
  %v44 = vld [vmem:[%s1 + $0x10] sm:$0xf]
  %v45 = vld [vmem:[%s1 + $0x14] sm:$0xf]
  %v46 = vld [vmem:[%s1 + $0x18] sm:$0xf]
  %v47 = vld [vmem:[%s1 + $0x1c] sm:$0xf]
  %v48 = vld [vmem:[%s1 + $0x20] sm:$0xf]
  %v49 = vld [vmem:[%s1 + $0x24] sm:$0xf]
  %v50 = vld [vmem:[%s1 + $0x28] sm:$0xf]
  %v51 = vld [vmem:[%s1 + $0x2c] sm:$0xf]
  %v52 = vld [vmem:[%s1 + $0x30] sm:$0xf]
  %v53 = vld [vmem:[%s1 + $0x34] sm:$0xf]
  %v54 = vld [vmem:[%s1 + $0x38] sm:$0xf]
  %v55 = vld [vmem:[%s1 + $0x3c] sm:$0xf]
  %v56 = vld [vmem:[%s1 + $0x40] sm:$0xf]
  %v57 = vld [vmem:[%s1 + $0x44] sm:$0xf]
  %v58 = vld [vmem:[%s1 + $0x48] sm:$0xf]
  %v59 = vld [vmem:[%s1 + $0x4c] sm:$0xf]
  %v60 = vld [vmem:[%s1 + $0x50] sm:$0xf]
  %v61 = vld [vmem:[%s1 + $0x54] sm:$0xf]
  %v62 = vld [vmem:[%s1 + $0x58] sm:$0xf]
  %v63 = vld [vmem:[%s1 + $0x5c] sm:$0xf]
  %v64 = vld [vmem:[%s1 + $0x60] sm:$0xf]
  %v65 = vld [vmem:[%s1 + $0x64] sm:$0xf]
  %v66 = vld [vmem:[%s1 + $0x68] sm:$0xf]
  %v67 = vld [vmem:[%s1 + $0x6c] sm:$0xf]
  %v68 = vld [vmem:[%s1 + $0x70] sm:$0xf]
  %v69 = vld [vmem:[%s1 + $0x74] sm:$0xf]
  %v70 = vld [vmem:[%s1 + $0x78] sm:$0xf]
  %v71 = vld [vmem:[%s1 + $0x7c] sm:$0xf]
  %v72 = vld [vmem:[%s1 + $0x80] sm:$0xf]
  %v73 = vld [vmem:[%s1 + $0x84] sm:$0xf]
  %v74 = vld [vmem:[%s1 + $0x88] sm:$0xf]
  %v75 = vld [vmem:[%s1 + $0x8c] sm:$0xf]
  %v76 = vld [vmem:[%s1 + $0x90] sm:$0xf]
  %v77 = vld [vmem:[%s1 + $0x94] sm:$0xf]
  %v78 = vld [vmem:[%s1 + $0x98] sm:$0xf]
  %v79 = vld [vmem:[%s1 + $0x9c] sm:$0xf]
  %v80 = vld [vmem:[%s1 + $0xa0] sm:$0xf]
  %v81 = vld [vmem:[%s1 + $0xa4] sm:$0xf]
  %v82 = vld [vmem:[%s1 + $0xa8] sm:$0xf]
  %v83 = vld [vmem:[%s1 + $0xac] sm:$0xf]
  %v84 = vld [vmem:[%s1 + $0xb0] sm:$0xf]
  %v85 = vld [vmem:[%s1 + $0xb4] sm:$0xf]
  %v86 = vld [vmem:[%s1 + $0xb8] sm:$0xf]
  %v87 = vld [vmem:[%s1 + $0xbc] sm:$0xf]
  %v88 = vld [vmem:[%s1 + $0xc0] sm:$0xf]
  %v89 = vld [vmem:[%s1 + $0xc4] sm:$0xf]
  %v90 = vld [vmem:[%s1 + $0xc8] sm:$0xf]
  %v91 = vld [vmem:[%s1 + $0xcc] sm:$0xf]
  %v92 = vld [vmem:[%s1 + $0xd0] sm:$0xf]
  %v93 = vld [vmem:[%s1 + $0xd4] sm:$0xf]
  %v94 = vld [vmem:[%s1 + $0xd8] sm:$0xf]
  %v95 = vld [vmem:[%s1 + $0xdc] sm:$0xf]
  %v96 = vld [vmem:[%s1 + $0xe0] sm:$0xf]
  %v97 = vld [vmem:[%s1 + $0xe4] sm:$0xf]
  %v98 = vld [vmem:[%s1 + $0xe8] sm:$0xf]
  %v99 = vld [vmem:[%s1 + $0xec] sm:$0xf]
  %v100 = vld [vmem:[%s1 + $0xf0] sm:$0xf]
  %v101 = vld [vmem:[%s1 + $0xf4] sm:$0xf]
  %v102 = vld [vmem:[%s1 + $0xf8] sm:$0xf]
  %v103 = vld [vmem:[%s1 + $0xfc] sm:$0xf]
  %v104 = vld [vmem:[%s1 + $0x100] sm:$0xf]
  %v105 = vld [vmem:[%s1 + $0x104] sm:$0xf]
  %v106 = vld [vmem:[%s1 + $0x108] sm:$0xf]
  %v107 = vld [vmem:[%s1 + $0x10c] sm:$0xf]
  %v108 = vld [vmem:[%s1 + $0x110] sm:$0xf]
  %v109 = vld [vmem:[%s1 + $0x114] sm:$0xf]
  %v110 = vld [vmem:[%s1 + $0x118] sm:$0xf]
  %v111 = vld [vmem:[%s1 + $0x11c] sm:$0xf]
  %v112 = vld [vmem:[%s1 + $0x120] sm:$0xf]
  %v113 = vld [vmem:[%s1 + $0x124] sm:$0xf]
  %v114 = vld [vmem:[%s1 + $0x128] sm:$0xf]
  %v115 = vld [vmem:[%s1 + $0x12c] sm:$0xf]
  %v116 = vld [vmem:[%s1 + $0x130] sm:$0xf]
  %v117 = vld [vmem:[%s1 + $0x134] sm:$0xf]
  %v118 = vld [vmem:[%s1 + $0x138] sm:$0xf]
  %v119 = vld [vmem:[%s1 + $0x13c] sm:$0xf]
  %v120 = vld [vmem:[%s1 + $0x140] sm:$0xf]
  %v121 = vld [vmem:[%s1 + $0x144] sm:$0xf]
  %v122 = vld [vmem:[%s1 + $0x148] sm:$0xf]
  %v123 = vld [vmem:[%s1 + $0x14c] sm:$0xf]
  %v124 = vld [vmem:[%s1 + $0x150] sm:$0xf]
  %v125 = vld [vmem:[%s1 + $0x154] sm:$0xf]
  %v126 = vld [vmem:[%s1 + $0x158] sm:$0xf]
  %v127 = vld [vmem:[%s1 + $0x15c] sm:$0xf]
  %v128 = vld [vmem:[%s1 + $0x160] sm:$0xf]
  %v129 = vld [vmem:[%s1 + $0x164] sm:$0xf]
  %v130 = vld [vmem:[%s1 + $0x168] sm:$0xf]
  %v131 = vld [vmem:[%s1 + $0x16c] sm:$0xf]
  %v132 = vld [vmem:[%s1 + $0x170] sm:$0xf]
  %v133 = vld [vmem:[%s1 + $0x174] sm:$0xf]
  %v134 = vld [vmem:[%s1 + $0x178] sm:$0xf]
  %v135 = vld [vmem:[%s1 + $0x17c] sm:$0xf]
  %v136 = vld [vmem:[%s1 + $0x180] sm:$0xf]
  %v137 = vld [vmem:[%s1 + $0x184] sm:$0xf]
  %v138 = vld [vmem:[%s1 + $0x188] sm:$0xf]
  %v139 = vld [vmem:[%s1 + $0x18c] sm:$0xf]
  %v140 = vld [vmem:[%s1 + $0x190] sm:$0xf]
  %v141 = vld [vmem:[%s1 + $0x194] sm:$0xf]
  %v142 = vld [vmem:[%s1 + $0x198] sm:$0xf]
  %v143 = vld [vmem:[%s1 + $0x19c] sm:$0xf]
  %v144 = vld [vmem:[%s1 + $0x1a0] sm:$0xf]
  %v145 = vld [vmem:[%s1 + $0x1a4] sm:$0xf]
  %v146 = vld [vmem:[%s1 + $0x1a8] sm:$0xf]
  %v147 = vld [vmem:[%s1 + $0x1ac] sm:$0xf]
  %v148 = vld [vmem:[%s1 + $0x1b0] sm:$0xf]
  %v149 = vld [vmem:[%s1 + $0x1b4] sm:$0xf]
  %v150 = vld [vmem:[%s1 + $0x1b8] sm:$0xf]
  %v151 = vld [vmem:[%s1 + $0x1bc] sm:$0xf]
  %v152 = vld [vmem:[%s1 + $0x1c0] sm:$0xf]
  %v153 = vld [vmem:[%s1 + $0x1c4] sm:$0xf]
  %v154 = vld [vmem:[%s1 + $0x1c8] sm:$0xf]
  %v155 = vld [vmem:[%s1 + $0x1cc] sm:$0xf]
  %v156 = vld [vmem:[%s1 + $0x1d0] sm:$0xf]
  %v157 = vld [vmem:[%s1 + $0x1d4] sm:$0xf]
  %v158 = vld [vmem:[%s1 + $0x1d8] sm:$0xf]
  %v159 = vld [vmem:[%s1 + $0x1dc] sm:$0xf]
  %v160 = vld [vmem:[%s1 + $0x1e0] sm:$0xf]
  %v161 = vld [vmem:[%s1 + $0x1e4] sm:$0xf]
  %v162 = vld [vmem:[%s1 + $0x1e8] sm:$0xf]
  %v163 = vld [vmem:[%s1 + $0x1ec] sm:$0xf]
  %v164 = vld [vmem:[%s1 + $0x1f0] sm:$0xf]
  %v165 = vld [vmem:[%s1 + $0x1f4] sm:$0xf]
  %v166 = vld [vmem:[%s1 + $0x1f8] sm:$0xf]
  %v167 = vld [vmem:[%s1 + $0x1fc] sm:$0xf]
  %v168 = vld [vmem:[%s1 + $0x200] sm:$0xf]
  %v169 = vld [vmem:[%s1 + $0x204] sm:$0xf]
  %v170 = vld [vmem:[%s1 + $0x208] sm:$0xf]
  %v171 = vld [vmem:[%s1 + $0x20c] sm:$0xf]
  %v172 = vld [vmem:[%s1 + $0x210] sm:$0xf]
  %v173 = vld [vmem:[%s1 + $0x214] sm:$0xf]
  %v174 = vld [vmem:[%s1 + $0x218] sm:$0xf]
  %v175 = vld [vmem:[%s1 + $0x21c] sm:$0xf]
  %v176 = vld [vmem:[%s1 + $0x220] sm:$0xf]
  %v177 = vld [vmem:[%s1 + $0x224] sm:$0xf]
  %v178 = vld [vmem:[%s1 + $0x228] sm:$0xf]
  %v179 = vld [vmem:[%s1 + $0x22c] sm:$0xf]
  %v180 = vld [vmem:[%s1 + $0x230] sm:$0xf]
  %v181 = vld [vmem:[%s1 + $0x234] sm:$0xf]
  %v182 = vld [vmem:[%s1 + $0x238] sm:$0xf]
  %v183 = vld [vmem:[%s1 + $0x23c] sm:$0xf]
  %v184 = vld [vmem:[%s1 + $0x240] sm:$0xf]
  %v185 = vld [vmem:[%s1 + $0x244] sm:$0xf]
  %v186 = vld [vmem:[%s1 + $0x248] sm:$0xf]
  %v187 = vld [vmem:[%s1 + $0x24c] sm:$0xf]
  %v188 = vld [vmem:[%s1 + $0x250] sm:$0xf]
  %v189 = vld [vmem:[%s1 + $0x254] sm:$0xf]
  %v190 = vld [vmem:[%s1 + $0x258] sm:$0xf]
  %v191 = vld [vmem:[%s1 + $0x25c] sm:$0xf]
  %v192 = vld [vmem:[%s1 + $0x260] sm:$0xf]
  %v193 = vld [vmem:[%s1 + $0x264] sm:$0xf]
  %v194 = vld [vmem:[%s1 + $0x268] sm:$0xf]
  %v195 = vld [vmem:[%s1 + $0x26c] sm:$0xf]
  %v196 = vld [vmem:[%s1 + $0x270] sm:$0xf]
  %v197 = vld [vmem:[%s1 + $0x274] sm:$0xf]
  %v198 = vld [vmem:[%s1 + $0x278] sm:$0xf]
  %v199 = vld [vmem:[%s1 + $0x27c] sm:$0xf]
  %v200 = vld [vmem:[%s1 + $0x280] sm:$0xf]
  %v201 = vld [vmem:[%s1 + $0x284] sm:$0xf]
  %v202 = vld [vmem:[%s1 + $0x288] sm:$0xf]
  %v203 = vld [vmem:[%s1 + $0x28c] sm:$0xf]
  %v204 = vld [vmem:[%s1 + $0x290] sm:$0xf]
  %v205 = vld [vmem:[%s1 + $0x294] sm:$0xf]
  %v206 = vld [vmem:[%s1 + $0x298] sm:$0xf]
  %v207 = vld [vmem:[%s1 + $0x29c] sm:$0xf]
  %v208 = vld [vmem:[%s1 + $0x2a0] sm:$0xf]
  %v209 = vld [vmem:[%s1 + $0x2a4] sm:$0xf]
  %v210 = vld [vmem:[%s1 + $0x2a8] sm:$0xf]
  %v211 = vld [vmem:[%s1 + $0x2ac] sm:$0xf]
  %v212 = vld [vmem:[%s1 + $0x2b0] sm:$0xf]
  %v213 = vld [vmem:[%s1 + $0x2b4] sm:$0xf]
  %v214 = vld [vmem:[%s1 + $0x2b8] sm:$0xf]
  %v215 = vld [vmem:[%s1 + $0x2bc] sm:$0xf]
  %v216 = vld [vmem:[%s1 + $0x2c0] sm:$0xf]
  %v217 = vld [vmem:[%s1 + $0x2c4] sm:$0xf]
  %v218 = vld [vmem:[%s1 + $0x2c8] sm:$0xf]
  %v219 = vld [vmem:[%s1 + $0x2cc] sm:$0xf]
  %v220 = vld [vmem:[%s1 + $0x2d0] sm:$0xf]
  %v221 = vld [vmem:[%s1 + $0x2d4] sm:$0xf]
  %v222 = vld [vmem:[%s1 + $0x2d8] sm:$0xf]
  %v223 = vld [vmem:[%s1 + $0x2dc] sm:$0xf]
  %v224 = vld [vmem:[%s1 + $0x2e0] sm:$0xf]
  %v225 = vld [vmem:[%s1 + $0x2e4] sm:$0xf]
  %v226 = vld [vmem:[%s1 + $0x2e8] sm:$0xf]
  %v227 = vld [vmem:[%s1 + $0x2ec] sm:$0xf]
  %v228 = vld [vmem:[%s1 + $0x2f0] sm:$0xf]
  %v229 = vld [vmem:[%s1 + $0x2f4] sm:$0xf]
  %v230 = vld [vmem:[%s1 + $0x2f8] sm:$0xf]
  %v231 = vld [vmem:[%s1 + $0x2fc] sm:$0xf]
  %v232 = vld [vmem:[%s1 + $0x300] sm:$0xf]
  %v233 = vld [vmem:[%s1 + $0x304] sm:$0xf]
  %v234 = vld [vmem:[%s1 + $0x308] sm:$0xf]
  %v235 = vld [vmem:[%s1 + $0x30c] sm:$0xf]
  %v236 = vld [vmem:[%s1 + $0x310] sm:$0xf]
  %v237 = vld [vmem:[%s1 + $0x314] sm:$0xf]
  %v238 = vld [vmem:[%s1 + $0x318] sm:$0xf]
  %v239 = vld [vmem:[%s1 + $0x31c] sm:$0xf]
  %v240 = vld [vmem:[%s1 + $0x320] sm:$0xf]
  %v241 = vld [vmem:[%s1 + $0x324] sm:$0xf]
  %v242 = vld [vmem:[%s1 + $0x328] sm:$0xf]
  %v243 = vld [vmem:[%s1 + $0x32c] sm:$0xf]
  %v244 = vld [vmem:[%s1 + $0x330] sm:$0xf]
  %v245 = vld [vmem:[%s1 + $0x334] sm:$0xf]
  %v246 = vld [vmem:[%s1 + $0x338] sm:$0xf]
  %v247 = vld [vmem:[%s1 + $0x33c] sm:$0xf]
  %v248 = vld [vmem:[%s1 + $0x340] sm:$0xf]
  %v249 = vld [vmem:[%s1 + $0x344] sm:$0xf]
  %v250 = vld [vmem:[%s1 + $0x348] sm:$0xf]
  %v251 = vld [vmem:[%s1 + $0x34c] sm:$0xf]
  %v252 = vld [vmem:[%s1 + $0x350] sm:$0xf]
  %v253 = vld [vmem:[%s1 + $0x354] sm:$0xf]
  %v254 = vld [vmem:[%s1 + $0x358] sm:$0xf]
  %v255 = vld [vmem:[%s1 + $0x35c] sm:$0xf]
  %v256 = vld [vmem:[%s1 + $0x360] sm:$0xf]
  %v257 = vld [vmem:[%s1 + $0x364] sm:$0xf]
  %v258 = vld [vmem:[%s1 + $0x368] sm:$0xf]
  %v259 = vld [vmem:[%s1 + $0x36c] sm:$0xf]
  %v260 = vld [vmem:[%s1 + $0x370] sm:$0xf]
  %v261 = vld [vmem:[%s1 + $0x374] sm:$0xf]
  %v262 = vld [vmem:[%s1 + $0x378] sm:$0xf]
  %v263 = vld [vmem:[%s1 + $0x37c] sm:$0xf]
  %v264 = vld [vmem:[%s1 + $0x380] sm:$0xf]
  %v265 = vld [vmem:[%s1 + $0x384] sm:$0xf]
  %v266 = vld [vmem:[%s1 + $0x388] sm:$0xf]
  %v267 = vld [vmem:[%s1 + $0x38c] sm:$0xf]
  %v268 = vld [vmem:[%s1 + $0x390] sm:$0xf]
  %v269 = vld [vmem:[%s1 + $0x394] sm:$0xf]
  %v270 = vld [vmem:[%s1 + $0x398] sm:$0xf]
  %v271 = vld [vmem:[%s1 + $0x39c] sm:$0xf]
  %v272 = vld [vmem:[%s1 + $0x3a0] sm:$0xf]
  %v273 = vld [vmem:[%s1 + $0x3a4] sm:$0xf]
  %v274 = vld [vmem:[%s1 + $0x3a8] sm:$0xf]
  %v275 = vld [vmem:[%s1 + $0x3ac] sm:$0xf]
  %v276 = vld [vmem:[%s1 + $0x3b0] sm:$0xf]
  %v277 = vld [vmem:[%s1 + $0x3b4] sm:$0xf]
  %v278 = vld [vmem:[%s1 + $0x3b8] sm:$0xf]
  %v279 = vld [vmem:[%s1 + $0x3bc] sm:$0xf]
  %v280 = vld [vmem:[%s1 + $0x3c0] sm:$0xf]
  %v281 = vld [vmem:[%s1 + $0x3c4] sm:$0xf]
  %v282 = vld [vmem:[%s1 + $0x3c8] sm:$0xf]
  %v283 = vld [vmem:[%s1 + $0x3cc] sm:$0xf]
  %v284 = vld [vmem:[%s1 + $0x3d0] sm:$0xf]
  %v285 = vld [vmem:[%s1 + $0x3d4] sm:$0xf]
  %v286 = vld [vmem:[%s1 + $0x3d8] sm:$0xf]
  %v287 = vld [vmem:[%s1 + $0x3dc] sm:$0xf]
  %v288 = vld [vmem:[%s1 + $0x3e0] sm:$0xf]
  %v289 = vld [vmem:[%s1 + $0x3e4] sm:$0xf]
  %v290 = vld [vmem:[%s1 + $0x3e8] sm:$0xf]
  %v291 = vld [vmem:[%s1 + $0x3ec] sm:$0xf]
  %v292 = vld [vmem:[%s1 + $0x3f0] sm:$0xf]
  %v293 = vld [vmem:[%s1 + $0x3f4] sm:$0xf]
  %v294 = vld [vmem:[%s1 + $0x3f8] sm:$0xf]
  %v295 = vld [vmem:[%s1 + $0x3fc] sm:$0xf]
  %v296 = vld [vmem:[%s1 + $0x400] sm:$0xf]
  %v297 = vld [vmem:[%s1 + $0x404] sm:$0xf]
  %v298 = vld [vmem:[%s1 + $0x408] sm:$0xf]
  %v299 = vld [vmem:[%s1 + $0x40c] sm:$0xf]
  %v300 = vld [vmem:[%s1 + $0x410] sm:$0xf]
  %v301 = vld [vmem:[%s1 + $0x414] sm:$0xf]
  %v302 = vld [vmem:[%s1 + $0x418] sm:$0xf]
  %v303 = vld [vmem:[%s1 + $0x41c] sm:$0xf]
  %v304 = vld [vmem:[%s1 + $0x420] sm:$0xf]
  %v305 = vld [vmem:[%s1 + $0x424] sm:$0xf]
  %v306 = vld [vmem:[%s1 + $0x428] sm:$0xf]
  %v307 = vld [vmem:[%s1 + $0x42c] sm:$0xf]
  %v308 = vld [vmem:[%s1 + $0x430] sm:$0xf]
  %v309 = vld [vmem:[%s1 + $0x434] sm:$0xf]
  %v310 = vld [vmem:[%s1 + $0x438] sm:$0xf]
  %v311 = vld [vmem:[%s1 + $0x43c] sm:$0xf]
  %v312 = vld [vmem:[%s1 + $0x440] sm:$0xf]
  %v313 = vld [vmem:[%s1 + $0x444] sm:$0xf]
  %v314 = vld [vmem:[%s1 + $0x448] sm:$0xf]
  %v315 = vld [vmem:[%s1 + $0x44c] sm:$0xf]
  %v316 = vld [vmem:[%s1 + $0x450] sm:$0xf]
  %v317 = vld [vmem:[%s1 + $0x454] sm:$0xf]
  %v318 = vld [vmem:[%s1 + $0x458] sm:$0xf]
  %v319 = vld [vmem:[%s1 + $0x45c] sm:$0xf]
  %v320 = vld [vmem:[%s1 + $0x460] sm:$0xf]
  %v321 = vld [vmem:[%s1 + $0x464] sm:$0xf]
  %v322 = vld [vmem:[%s1 + $0x468] sm:$0xf]
  %v323 = vld [vmem:[%s1 + $0x46c] sm:$0xf]
  %v324 = vld [vmem:[%s1 + $0x470] sm:$0xf]
  %v325 = vld [vmem:[%s1 + $0x474] sm:$0xf]
  %v326 = vld [vmem:[%s1 + $0x478] sm:$0xf]
  %v327 = vld [vmem:[%s1 + $0x47c] sm:$0xf]
  %v328 = vld [vmem:[%s1 + $0x480] sm:$0xf]
  %v329 = vld [vmem:[%s1 + $0x484] sm:$0xf]
  %v330 = vld [vmem:[%s1 + $0x488] sm:$0xf]
  %v331 = vld [vmem:[%s1 + $0x48c] sm:$0xf]
  %v332 = vld [vmem:[%s1 + $0x490] sm:$0xf]
  %v333 = vld [vmem:[%s1 + $0x494] sm:$0xf]
  %v334 = vld [vmem:[%s1 + $0x498] sm:$0xf]
  %v335 = vld [vmem:[%s1 + $0x49c] sm:$0xf]
  %v336 = vld [vmem:[%s1 + $0x4a0] sm:$0xf]
  %v337 = vld [vmem:[%s1 + $0x4a4] sm:$0xf]
  %v338 = vld [vmem:[%s1 + $0x4a8] sm:$0xf]
  %v339 = vld [vmem:[%s1 + $0x4ac] sm:$0xf]
  %v340 = vld [vmem:[%s1 + $0x4b0] sm:$0xf]
  %v341 = vld [vmem:[%s1 + $0x4b4] sm:$0xf]
  %v342 = vld [vmem:[%s1 + $0x4b8] sm:$0xf]
  %v343 = vld [vmem:[%s1 + $0x4bc] sm:$0xf]
  %v344 = vld [vmem:[%s1 + $0x4c0] sm:$0xf]
  %v345 = vld [vmem:[%s1 + $0x4c4] sm:$0xf]
  %v346 = vld [vmem:[%s1 + $0x4c8] sm:$0xf]
  %v347 = vld [vmem:[%s1 + $0x4cc] sm:$0xf]
  %v348 = vld [vmem:[%s1 + $0x4d0] sm:$0xf]
  %v349 = vld [vmem:[%s1 + $0x4d4] sm:$0xf]
  %v350 = vld [vmem:[%s1 + $0x4d8] sm:$0xf]
  %v351 = vld [vmem:[%s1 + $0x4dc] sm:$0xf]
  %v352 = vld [vmem:[%s1 + $0x4e0] sm:$0xf]
  %v353 = vld [vmem:[%s1 + $0x4e4] sm:$0xf]
  %v354 = vld [vmem:[%s1 + $0x4e8] sm:$0xf]
  %v355 = vld [vmem:[%s1 + $0x4ec] sm:$0xf]
  %v356 = vld [vmem:[%s1 + $0x4f0] sm:$0xf]
  %v357 = vld [vmem:[%s1 + $0x4f4] sm:$0xf]
  %v358 = vld [vmem:[%s1 + $0x4f8] sm:$0xf]
  %v359 = vld [vmem:[%s1 + $0x4fc] sm:$0xf]
  %v360 = vld [vmem:[%s1 + $0x500] sm:$0xf]
  %v361 = vld [vmem:[%s1 + $0x504] sm:$0xf]
  %v362 = vld [vmem:[%s1 + $0x508] sm:$0xf]
  %v363 = vld [vmem:[%s1 + $0x50c] sm:$0xf]
  %v364 = vld [vmem:[%s1 + $0x510] sm:$0xf]
  %v365 = vld [vmem:[%s1 + $0x514] sm:$0xf]
  %v366 = vld [vmem:[%s1 + $0x518] sm:$0xf]
  %v367 = vld [vmem:[%s1 + $0x51c] sm:$0xf]
  %v368 = vld [vmem:[%s1 + $0x520] sm:$0xf]
  %v369 = vld [vmem:[%s1 + $0x524] sm:$0xf]
  %v370 = vld [vmem:[%s1 + $0x528] sm:$0xf]
  %v371 = vld [vmem:[%s1 + $0x52c] sm:$0xf]
  %v372 = vld [vmem:[%s1 + $0x530] sm:$0xf]
  %v373 = vld [vmem:[%s1 + $0x534] sm:$0xf]
  %v374 = vld [vmem:[%s1 + $0x538] sm:$0xf]
  %v375 = vld [vmem:[%s1 + $0x53c] sm:$0xf]
  %v376 = vld [vmem:[%s1 + $0x540] sm:$0xf]
  %v377 = vld [vmem:[%s1 + $0x544] sm:$0xf]
  %v378 = vld [vmem:[%s1 + $0x548] sm:$0xf]
  %v379 = vld [vmem:[%s1 + $0x54c] sm:$0xf]
  %v380 = vld [vmem:[%s1 + $0x550] sm:$0xf]
  %v381 = vld [vmem:[%s1 + $0x554] sm:$0xf]
  %v382 = vld [vmem:[%s1 + $0x558] sm:$0xf]
  %v383 = vld [vmem:[%s1 + $0x55c] sm:$0xf]
  %v384 = vld [vmem:[%s1 + $0x560] sm:$0xf]
  %v385 = vld [vmem:[%s1 + $0x564] sm:$0xf]
  %v386 = vld [vmem:[%s1 + $0x568] sm:$0xf]
  %v387 = vld [vmem:[%s1 + $0x56c] sm:$0xf]
  %v388 = vld [vmem:[%s1 + $0x570] sm:$0xf]
  %v389 = vld [vmem:[%s1 + $0x574] sm:$0xf]
  %v390 = vld [vmem:[%s1 + $0x578] sm:$0xf]
  %v391 = vld [vmem:[%s1 + $0x57c] sm:$0xf]
  %v392 = vld [vmem:[%s1 + $0x580] sm:$0xf]
  %v393 = vld [vmem:[%s1 + $0x584] sm:$0xf]
  %v394 = vld [vmem:[%s1 + $0x588] sm:$0xf]
  %v395 = vld [vmem:[%s1 + $0x58c] sm:$0xf]
  %v396 = vld [vmem:[%s1 + $0x590] sm:$0xf]
  %v397 = vld [vmem:[%s1 + $0x594] sm:$0xf]
  %v398 = vld [vmem:[%s1 + $0x598] sm:$0xf]
  %v399 = vld [vmem:[%s1 + $0x59c] sm:$0xf]
  %v400 = vld [vmem:[%s1 + $0x5a0] sm:$0xf]
  %v401 = vld [vmem:[%s1 + $0x5a4] sm:$0xf]
  %v402 = vld [vmem:[%s1 + $0x5a8] sm:$0xf]
  %v403 = vld [vmem:[%s1 + $0x5ac] sm:$0xf]
  %v404 = vld [vmem:[%s1 + $0x5b0] sm:$0xf]
  %v405 = vld [vmem:[%s1 + $0x5b4] sm:$0xf]
  %v406 = vld [vmem:[%s1 + $0x5b8] sm:$0xf]
  %v407 = vld [vmem:[%s1 + $0x5bc] sm:$0xf]
  %v408 = vld [vmem:[%s1 + $0x5c0] sm:$0xf]
  %v409 = vld [vmem:[%s1 + $0x5c4] sm:$0xf]
  %v410 = vld [vmem:[%s1 + $0x5c8] sm:$0xf]
  %v411 = vld [vmem:[%s1 + $0x5cc] sm:$0xf]
  %v412 = vld [vmem:[%s1 + $0x5d0] sm:$0xf]
  %v413 = vld [vmem:[%s1 + $0x5d4] sm:$0xf]
  %v414 = vld [vmem:[%s1 + $0x5d8] sm:$0xf]
  %v415 = vld [vmem:[%s1 + $0x5dc] sm:$0xf]
  %v416 = vld [vmem:[%s1 + $0x5e0] sm:$0xf]
  %v417 = vld [vmem:[%s1 + $0x5e4] sm:$0xf]
  %v418 = vld [vmem:[%s1 + $0x5e8] sm:$0xf]
  %v419 = vld [vmem:[%s1 + $0x5ec] sm:$0xf]
  %v420 = vld [vmem:[%s1 + $0x5f0] sm:$0xf]
  %v421 = vld [vmem:[%s1 + $0x5f4] sm:$0xf]
  %v422 = vld [vmem:[%s1 + $0x5f8] sm:$0xf]
  %v423 = vld [vmem:[%s1 + $0x5fc] sm:$0xf]
  %v424 = vld [vmem:[%s1 + $0x600] sm:$0xf]
  %v425 = vld [vmem:[%s1 + $0x604] sm:$0xf]
  %v426 = vld [vmem:[%s1 + $0x608] sm:$0xf]
  %v427 = vld [vmem:[%s1 + $0x60c] sm:$0xf]
  %v428 = vld [vmem:[%s1 + $0x610] sm:$0xf]
  %v429 = vld [vmem:[%s1 + $0x614] sm:$0xf]
  %v430 = vld [vmem:[%s1 + $0x618] sm:$0xf]
  %v431 = vld [vmem:[%s1 + $0x61c] sm:$0xf]
  %v432 = vld [vmem:[%s1 + $0x620] sm:$0xf]
  %v433 = vld [vmem:[%s1 + $0x624] sm:$0xf]
  %v434 = vld [vmem:[%s1 + $0x628] sm:$0xf]
  %v435 = vld [vmem:[%s1 + $0x62c] sm:$0xf]
  %v436 = vld [vmem:[%s1 + $0x630] sm:$0xf]
  %v437 = vld [vmem:[%s1 + $0x634] sm:$0xf]
  %v438 = vld [vmem:[%s1 + $0x638] sm:$0xf]
  %v439 = vld [vmem:[%s1 + $0x63c] sm:$0xf]
  %v440 = vld [vmem:[%s2] sm:$0x1]
  %v442 = vlaneseq
  %v443 = vshrl.u32 %v442, 7
  %v444 = vsub.s32 0, %v443
  %v445 = vrot.slane %v440, %v444
  %v460 = vunpack.c.l.b16 %v27
  %v461 = vunpack.c.h.b16 %v27
  %v462 = vunpack.c.l.b16 %v28
  %v463 = vunpack.c.h.b16 %v28
  %v464 = vunpack.c.l.b16 %v29
  %v465 = vunpack.c.h.b16 %v29
  %v466 = vunpack.c.l.b16 %v30
  %v467 = vunpack.c.h.b16 %v30
  %v468 = vunpack.c.l.b16 %v31
  %v469 = vunpack.c.h.b16 %v31
  %v470 = vunpack.c.l.b16 %v32
  %v471 = vunpack.c.h.b16 %v32
  %v472 = vunpack.c.l.b16 %v33
  %v473 = vunpack.c.h.b16 %v33
  %v474 = vunpack.c.l.b16 %v34
  %v475 = vunpack.c.h.b16 %v34
  %v476 = vunpack.c.l.b16 %v35
  %v477 = vunpack.c.h.b16 %v35
  %v478 = vunpack.c.l.b16 %v36
  %v479 = vunpack.c.h.b16 %v36
  %v480 = vunpack.c.l.b16 %v37
  %v481 = vunpack.c.h.b16 %v37
  %v482 = vunpack.c.l.b16 %v38
  %v483 = vunpack.c.h.b16 %v38
  %v484 = vunpack.c.l.b16 %v39
  %v485 = vpack.c.b16 %v460, %v460
  %v486 = vpack.c.b16 %v461, %v461
  %v487 = vpack.c.b16 %v462, %v462
  %v488 = vpack.c.b16 %v463, %v463
  %v489 = vpack.c.b16 %v464, %v464
  %v490 = vpack.c.b16 %v465, %v465
  %v491 = vpack.c.b16 %v466, %v466
  %v492 = vpack.c.b16 %v467, %v467
  %v493 = vpack.c.b16 %v468, %v468
  %v494 = vpack.c.b16 %v469, %v469
  %v495 = vpack.c.b16 %v470, %v470
  %v496 = vpack.c.b16 %v471, %v471
  %v497 = vpack.c.b16 %v472, %v472
  %v498 = vpack.c.b16 %v473, %v473
  %v499 = vpack.c.b16 %v474, %v474
  %v500 = vpack.c.b16 %v475, %v475
  %v501 = vpack.c.b16 %v476, %v476
  %v502 = vpack.c.b16 %v477, %v477
  %v503 = vpack.c.b16 %v478, %v478
  %v504 = vpack.c.b16 %v479, %v479
  %v505 = vpack.c.b16 %v480, %v480
  %v506 = vpack.c.b16 %v481, %v481
  %v507 = vpack.c.b16 %v482, %v482
  %v508 = vpack.c.b16 %v483, %v483
  %v509 = vpack.c.b16 %v484, %v484
  %v935 = vunpack.c.l.b16 %v40
  %v936 = vunpack.c.l.b16 %v41
  %v937 = vunpack.c.l.b16 %v42
  %v938 = vunpack.c.l.b16 %v43
  %v939 = vunpack.c.l.b16 %v44
  %v940 = vunpack.c.l.b16 %v45
  %v941 = vunpack.c.l.b16 %v46
  %v942 = vunpack.c.l.b16 %v47
  %v943 = vunpack.c.l.b16 %v48
  %v944 = vunpack.c.l.b16 %v49
  %v945 = vunpack.c.l.b16 %v50
  %v946 = vunpack.c.l.b16 %v51
  %v947 = vunpack.c.l.b16 %v52
  %v948 = vunpack.c.l.b16 %v53
  %v949 = vunpack.c.l.b16 %v54
  %v950 = vunpack.c.l.b16 %v55
  %v951 = vunpack.c.l.b16 %v56
  %v952 = vunpack.c.l.b16 %v57
  %v953 = vunpack.c.l.b16 %v58
  %v954 = vunpack.c.l.b16 %v59
  %v955 = vunpack.c.l.b16 %v60
  %v956 = vunpack.c.l.b16 %v61
  %v957 = vunpack.c.l.b16 %v62
  %v958 = vunpack.c.l.b16 %v63
  %v959 = vunpack.c.l.b16 %v64
  %v960 = vunpack.c.l.b16 %v65
  %v961 = vunpack.c.l.b16 %v66
  %v962 = vunpack.c.l.b16 %v67
  %v963 = vunpack.c.l.b16 %v68
  %v964 = vunpack.c.l.b16 %v69
  %v965 = vunpack.c.l.b16 %v70
  %v966 = vunpack.c.l.b16 %v71
  %v967 = vunpack.c.l.b16 %v72
  %v968 = vunpack.c.l.b16 %v73
  %v969 = vunpack.c.l.b16 %v74
  %v970 = vunpack.c.l.b16 %v75
  %v971 = vunpack.c.l.b16 %v76
  %v972 = vunpack.c.l.b16 %v77
  %v973 = vunpack.c.l.b16 %v78
  %v974 = vunpack.c.l.b16 %v79
  %v975 = vunpack.c.l.b16 %v80
  %v976 = vunpack.c.l.b16 %v81
  %v977 = vunpack.c.l.b16 %v82
  %v978 = vunpack.c.l.b16 %v83
  %v979 = vunpack.c.l.b16 %v84
  %v980 = vunpack.c.l.b16 %v85
  %v981 = vunpack.c.l.b16 %v86
  %v982 = vunpack.c.l.b16 %v87
  %v983 = vunpack.c.l.b16 %v88
  %v984 = vunpack.c.l.b16 %v89
  %v985 = vunpack.c.l.b16 %v90
  %v986 = vunpack.c.l.b16 %v91
  %v987 = vunpack.c.l.b16 %v92
  %v988 = vunpack.c.l.b16 %v93
  %v989 = vunpack.c.l.b16 %v94
  %v990 = vunpack.c.l.b16 %v95
  %v991 = vunpack.c.l.b16 %v96
  %v992 = vunpack.c.l.b16 %v97
  %v993 = vunpack.c.l.b16 %v98
  %v994 = vunpack.c.l.b16 %v99
  %v995 = vunpack.c.l.b16 %v100
  %v996 = vunpack.c.l.b16 %v101
  %v997 = vunpack.c.l.b16 %v102
  %v998 = vunpack.c.l.b16 %v103
  %v999 = vunpack.c.l.b16 %v104
  %v1000 = vunpack.c.l.b16 %v105
  %v1001 = vunpack.c.l.b16 %v106
  %v1002 = vunpack.c.l.b16 %v107
  %v1003 = vunpack.c.l.b16 %v108
  %v1004 = vunpack.c.l.b16 %v109
  %v1005 = vunpack.c.l.b16 %v110
  %v1006 = vunpack.c.l.b16 %v111
  %v1007 = vunpack.c.l.b16 %v112
  %v1008 = vunpack.c.l.b16 %v113
  %v1009 = vunpack.c.l.b16 %v114
  %v1010 = vunpack.c.l.b16 %v115
  %v1011 = vunpack.c.l.b16 %v116
  %v1012 = vunpack.c.l.b16 %v117
  %v1013 = vunpack.c.l.b16 %v118
  %v1014 = vunpack.c.l.b16 %v119
  %v1015 = vunpack.c.l.b16 %v120
  %v1016 = vunpack.c.l.b16 %v121
  %v1017 = vunpack.c.l.b16 %v122
  %v1018 = vunpack.c.l.b16 %v123
  %v1019 = vunpack.c.l.b16 %v124
  %v1020 = vunpack.c.l.b16 %v125
  %v1021 = vunpack.c.l.b16 %v126
  %v1022 = vunpack.c.l.b16 %v127
  %v1023 = vunpack.c.l.b16 %v128
  %v1024 = vunpack.c.l.b16 %v129
  %v1025 = vunpack.c.l.b16 %v130
  %v1026 = vunpack.c.l.b16 %v131
  %v1027 = vunpack.c.l.b16 %v132
  %v1028 = vunpack.c.l.b16 %v133
  %v1029 = vunpack.c.l.b16 %v134
  %v1030 = vunpack.c.l.b16 %v135
  %v1031 = vunpack.c.l.b16 %v136
  %v1032 = vunpack.c.l.b16 %v137
  %v1033 = vunpack.c.l.b16 %v138
  %v1034 = vunpack.c.l.b16 %v139
  %v1035 = vunpack.c.l.b16 %v140
  %v1036 = vunpack.c.l.b16 %v141
  %v1037 = vunpack.c.l.b16 %v142
  %v1038 = vunpack.c.l.b16 %v143
  %v1039 = vunpack.c.l.b16 %v144
  %v1040 = vunpack.c.l.b16 %v145
  %v1041 = vunpack.c.l.b16 %v146
  %v1042 = vunpack.c.l.b16 %v147
  %v1043 = vunpack.c.l.b16 %v148
  %v1044 = vunpack.c.l.b16 %v149
  %v1045 = vunpack.c.l.b16 %v150
  %v1046 = vunpack.c.l.b16 %v151
  %v1047 = vunpack.c.l.b16 %v152
  %v1048 = vunpack.c.l.b16 %v153
  %v1049 = vunpack.c.l.b16 %v154
  %v1050 = vunpack.c.l.b16 %v155
  %v1051 = vunpack.c.l.b16 %v156
  %v1052 = vunpack.c.l.b16 %v157
  %v1053 = vunpack.c.l.b16 %v158
  %v1054 = vunpack.c.l.b16 %v159
  %v1055 = vunpack.c.l.b16 %v160
  %v1056 = vunpack.c.l.b16 %v161
  %v1057 = vunpack.c.l.b16 %v162
  %v1058 = vunpack.c.l.b16 %v163
  %v1059 = vunpack.c.l.b16 %v164
  %v1060 = vunpack.c.l.b16 %v165
  %v1061 = vunpack.c.l.b16 %v166
  %v1062 = vunpack.c.l.b16 %v167
  %v1063 = vunpack.c.l.b16 %v168
  %v1064 = vunpack.c.l.b16 %v169
  %v1065 = vunpack.c.l.b16 %v170
  %v1066 = vunpack.c.l.b16 %v171
  %v1067 = vunpack.c.l.b16 %v172
  %v1068 = vunpack.c.l.b16 %v173
  %v1069 = vunpack.c.l.b16 %v174
  %v1070 = vunpack.c.l.b16 %v175
  %v1071 = vunpack.c.l.b16 %v176
  %v1072 = vunpack.c.l.b16 %v177
  %v1073 = vunpack.c.l.b16 %v178
  %v1074 = vunpack.c.l.b16 %v179
  %v1075 = vunpack.c.l.b16 %v180
  %v1076 = vunpack.c.l.b16 %v181
  %v1077 = vunpack.c.l.b16 %v182
  %v1078 = vunpack.c.l.b16 %v183
  %v1079 = vunpack.c.l.b16 %v184
  %v1080 = vunpack.c.l.b16 %v185
  %v1081 = vunpack.c.l.b16 %v186
  %v1082 = vunpack.c.l.b16 %v187
  %v1083 = vunpack.c.l.b16 %v188
  %v1084 = vunpack.c.l.b16 %v189
  %v1085 = vunpack.c.l.b16 %v190
  %v1086 = vunpack.c.l.b16 %v191
  %v1087 = vunpack.c.l.b16 %v192
  %v1088 = vunpack.c.l.b16 %v193
  %v1089 = vunpack.c.l.b16 %v194
  %v1090 = vunpack.c.l.b16 %v195
  %v1091 = vunpack.c.l.b16 %v196
  %v1092 = vunpack.c.l.b16 %v197
  %v1093 = vunpack.c.l.b16 %v198
  %v1094 = vunpack.c.l.b16 %v199
  %v1095 = vunpack.c.l.b16 %v200
  %v1096 = vunpack.c.l.b16 %v201
  %v1097 = vunpack.c.l.b16 %v202
  %v1098 = vunpack.c.l.b16 %v203
  %v1099 = vunpack.c.l.b16 %v204
  %v1100 = vunpack.c.l.b16 %v205
  %v1101 = vunpack.c.l.b16 %v206
  %v1102 = vunpack.c.l.b16 %v207
  %v1103 = vunpack.c.l.b16 %v208
  %v1104 = vunpack.c.l.b16 %v209
  %v1105 = vunpack.c.l.b16 %v210
  %v1106 = vunpack.c.l.b16 %v211
  %v1107 = vunpack.c.l.b16 %v212
  %v1108 = vunpack.c.l.b16 %v213
  %v1109 = vunpack.c.l.b16 %v214
  %v1110 = vunpack.c.l.b16 %v215
  %v1111 = vunpack.c.l.b16 %v216
  %v1112 = vunpack.c.l.b16 %v217
  %v1113 = vunpack.c.l.b16 %v218
  %v1114 = vunpack.c.l.b16 %v219
  %v1115 = vunpack.c.l.b16 %v220
  %v1116 = vunpack.c.l.b16 %v221
  %v1117 = vunpack.c.l.b16 %v222
  %v1118 = vunpack.c.l.b16 %v223
  %v1119 = vunpack.c.l.b16 %v224
  %v1120 = vunpack.c.l.b16 %v225
  %v1121 = vunpack.c.l.b16 %v226
  %v1122 = vunpack.c.l.b16 %v227
  %v1123 = vunpack.c.l.b16 %v228
  %v1124 = vunpack.c.l.b16 %v229
  %v1125 = vunpack.c.l.b16 %v230
  %v1126 = vunpack.c.l.b16 %v231
  %v1127 = vunpack.c.l.b16 %v232
  %v1128 = vunpack.c.l.b16 %v233
  %v1129 = vunpack.c.l.b16 %v234
  %v1130 = vunpack.c.l.b16 %v235
  %v1131 = vunpack.c.l.b16 %v236
  %v1132 = vunpack.c.l.b16 %v237
  %v1133 = vunpack.c.l.b16 %v238
  %v1134 = vunpack.c.l.b16 %v239
  %v1135 = vunpack.c.l.b16 %v240
  %v1136 = vunpack.c.l.b16 %v241
  %v1137 = vunpack.c.l.b16 %v242
  %v1138 = vunpack.c.l.b16 %v243
  %v1139 = vunpack.c.l.b16 %v244
  %v1140 = vunpack.c.l.b16 %v245
  %v1141 = vunpack.c.l.b16 %v246
  %v1142 = vunpack.c.l.b16 %v247
  %v1143 = vunpack.c.l.b16 %v248
  %v1144 = vunpack.c.l.b16 %v249
  %v1145 = vunpack.c.l.b16 %v250
  %v1146 = vunpack.c.l.b16 %v251
  %v1147 = vunpack.c.l.b16 %v252
  %v1148 = vunpack.c.l.b16 %v253
  %v1149 = vunpack.c.l.b16 %v254
  %v1150 = vunpack.c.l.b16 %v255
  %v1151 = vunpack.c.l.b16 %v256
  %v1152 = vunpack.c.l.b16 %v257
  %v1153 = vunpack.c.l.b16 %v258
  %v1154 = vunpack.c.l.b16 %v259
  %v1155 = vunpack.c.l.b16 %v260
  %v1156 = vunpack.c.l.b16 %v261
  %v1157 = vunpack.c.l.b16 %v262
  %v1158 = vunpack.c.l.b16 %v263
  %v1159 = vunpack.c.l.b16 %v264
  %v1160 = vunpack.c.l.b16 %v265
  %v1161 = vunpack.c.l.b16 %v266
  %v1162 = vunpack.c.l.b16 %v267
  %v1163 = vunpack.c.l.b16 %v268
  %v1164 = vunpack.c.l.b16 %v269
  %v1165 = vunpack.c.l.b16 %v270
  %v1166 = vunpack.c.l.b16 %v271
  %v1167 = vunpack.c.l.b16 %v272
  %v1168 = vunpack.c.l.b16 %v273
  %v1169 = vunpack.c.l.b16 %v274
  %v1170 = vunpack.c.l.b16 %v275
  %v1171 = vunpack.c.l.b16 %v276
  %v1172 = vunpack.c.l.b16 %v277
  %v1173 = vunpack.c.l.b16 %v278
  %v1174 = vunpack.c.l.b16 %v279
  %v1175 = vunpack.c.l.b16 %v280
  %v1176 = vunpack.c.l.b16 %v281
  %v1177 = vunpack.c.l.b16 %v282
  %v1178 = vunpack.c.l.b16 %v283
  %v1179 = vunpack.c.l.b16 %v284
  %v1180 = vunpack.c.l.b16 %v285
  %v1181 = vunpack.c.l.b16 %v286
  %v1182 = vunpack.c.l.b16 %v287
  %v1183 = vunpack.c.l.b16 %v288
  %v1184 = vunpack.c.l.b16 %v289
  %v1185 = vunpack.c.l.b16 %v290
  %v1186 = vunpack.c.l.b16 %v291
  %v1187 = vunpack.c.l.b16 %v292
  %v1188 = vunpack.c.l.b16 %v293
  %v1189 = vunpack.c.l.b16 %v294
  %v1190 = vunpack.c.l.b16 %v295
  %v1191 = vunpack.c.l.b16 %v296
  %v1192 = vunpack.c.l.b16 %v297
  %v1193 = vunpack.c.l.b16 %v298
  %v1194 = vunpack.c.l.b16 %v299
  %v1195 = vunpack.c.l.b16 %v300
  %v1196 = vunpack.c.l.b16 %v301
  %v1197 = vunpack.c.l.b16 %v302
  %v1198 = vunpack.c.l.b16 %v303
  %v1199 = vunpack.c.l.b16 %v304
  %v1200 = vunpack.c.l.b16 %v305
  %v1201 = vunpack.c.l.b16 %v306
  %v1202 = vunpack.c.l.b16 %v307
  %v1203 = vunpack.c.l.b16 %v308
  %v1204 = vunpack.c.l.b16 %v309
  %v1205 = vunpack.c.l.b16 %v310
  %v1206 = vunpack.c.l.b16 %v311
  %v1207 = vunpack.c.l.b16 %v312
  %v1208 = vunpack.c.l.b16 %v313
  %v1209 = vunpack.c.l.b16 %v314
  %v1210 = vunpack.c.l.b16 %v315
  %v1211 = vunpack.c.l.b16 %v316
  %v1212 = vunpack.c.l.b16 %v317
  %v1213 = vunpack.c.l.b16 %v318
  %v1214 = vunpack.c.l.b16 %v319
  %v1215 = vunpack.c.l.b16 %v320
  %v1216 = vunpack.c.l.b16 %v321
  %v1217 = vunpack.c.l.b16 %v322
  %v1218 = vunpack.c.l.b16 %v323
  %v1219 = vunpack.c.l.b16 %v324
  %v1220 = vunpack.c.l.b16 %v325
  %v1221 = vunpack.c.l.b16 %v326
  %v1222 = vunpack.c.l.b16 %v327
  %v1223 = vunpack.c.l.b16 %v328
  %v1224 = vunpack.c.l.b16 %v329
  %v1225 = vunpack.c.l.b16 %v330
  %v1226 = vunpack.c.l.b16 %v331
  %v1227 = vunpack.c.l.b16 %v332
  %v1228 = vunpack.c.l.b16 %v333
  %v1229 = vunpack.c.l.b16 %v334
  %v1230 = vunpack.c.l.b16 %v335
  %v1231 = vunpack.c.l.b16 %v336
  %v1232 = vunpack.c.l.b16 %v337
  %v1233 = vunpack.c.l.b16 %v338
  %v1234 = vunpack.c.l.b16 %v339
  %v1235 = vunpack.c.l.b16 %v340
  %v1236 = vunpack.c.l.b16 %v341
  %v1237 = vunpack.c.l.b16 %v342
  %v1238 = vunpack.c.l.b16 %v343
  %v1239 = vunpack.c.l.b16 %v344
  %v1240 = vunpack.c.l.b16 %v345
  %v1241 = vunpack.c.l.b16 %v346
  %v1242 = vunpack.c.l.b16 %v347
  %v1243 = vunpack.c.l.b16 %v348
  %v1244 = vunpack.c.l.b16 %v349
  %v1245 = vunpack.c.l.b16 %v350
  %v1246 = vunpack.c.l.b16 %v351
  %v1247 = vunpack.c.l.b16 %v352
  %v1248 = vunpack.c.l.b16 %v353
  %v1249 = vunpack.c.l.b16 %v354
  %v1250 = vunpack.c.l.b16 %v355
  %v1251 = vunpack.c.l.b16 %v356
  %v1252 = vunpack.c.l.b16 %v357
  %v1253 = vunpack.c.l.b16 %v358
  %v1254 = vunpack.c.l.b16 %v359
  %v1255 = vunpack.c.l.b16 %v360
  %v1256 = vunpack.c.l.b16 %v361
  %v1257 = vunpack.c.l.b16 %v362
  %v1258 = vunpack.c.l.b16 %v363
  %v1259 = vunpack.c.l.b16 %v364
  %v1260 = vunpack.c.l.b16 %v365
  %v1261 = vunpack.c.l.b16 %v366
  %v1262 = vunpack.c.l.b16 %v367
  %v1263 = vunpack.c.l.b16 %v368
  %v1264 = vunpack.c.l.b16 %v369
  %v1265 = vunpack.c.l.b16 %v370
  %v1266 = vunpack.c.l.b16 %v371
  %v1267 = vunpack.c.l.b16 %v372
  %v1268 = vunpack.c.l.b16 %v373
  %v1269 = vunpack.c.l.b16 %v374
  %v1270 = vunpack.c.l.b16 %v375
  %v1271 = vunpack.c.l.b16 %v376
  %v1272 = vunpack.c.l.b16 %v377
  %v1273 = vunpack.c.l.b16 %v378
  %v1274 = vunpack.c.l.b16 %v379
  %v1275 = vunpack.c.l.b16 %v380
  %v1276 = vunpack.c.l.b16 %v381
  %v1277 = vunpack.c.l.b16 %v382
  %v1278 = vunpack.c.l.b16 %v383
  %v1279 = vunpack.c.l.b16 %v384
  %v1280 = vunpack.c.l.b16 %v385
  %v1281 = vunpack.c.l.b16 %v386
  %v1282 = vunpack.c.l.b16 %v387
  %v1283 = vunpack.c.l.b16 %v388
  %v1284 = vunpack.c.l.b16 %v389
  %v1285 = vunpack.c.l.b16 %v390
  %v1286 = vunpack.c.l.b16 %v391
  %v1287 = vunpack.c.l.b16 %v392
  %v1288 = vunpack.c.l.b16 %v393
  %v1289 = vunpack.c.l.b16 %v394
  %v1290 = vunpack.c.l.b16 %v395
  %v1291 = vunpack.c.l.b16 %v396
  %v1292 = vunpack.c.l.b16 %v397
  %v1293 = vunpack.c.l.b16 %v398
  %v1294 = vunpack.c.l.b16 %v399
  %v1295 = vunpack.c.l.b16 %v400
  %v1296 = vunpack.c.l.b16 %v401
  %v1297 = vunpack.c.l.b16 %v402
  %v1298 = vunpack.c.l.b16 %v403
  %v1299 = vunpack.c.l.b16 %v404
  %v1300 = vunpack.c.l.b16 %v405
  %v1301 = vunpack.c.l.b16 %v406
  %v1302 = vunpack.c.l.b16 %v407
  %v1303 = vunpack.c.l.b16 %v408
  %v1304 = vunpack.c.l.b16 %v409
  %v1305 = vunpack.c.l.b16 %v410
  %v1306 = vunpack.c.l.b16 %v411
  %v1307 = vunpack.c.l.b16 %v412
  %v1308 = vunpack.c.l.b16 %v413
  %v1309 = vunpack.c.l.b16 %v414
  %v1310 = vunpack.c.l.b16 %v415
  %v1311 = vunpack.c.l.b16 %v416
  %v1312 = vunpack.c.l.b16 %v417
  %v1313 = vunpack.c.l.b16 %v418
  %v1314 = vunpack.c.l.b16 %v419
  %v1315 = vunpack.c.l.b16 %v420
  %v1316 = vunpack.c.l.b16 %v421
  %v1317 = vunpack.c.l.b16 %v422
  %v1318 = vunpack.c.l.b16 %v423
  %v1319 = vunpack.c.l.b16 %v424
  %v1320 = vunpack.c.l.b16 %v425
  %v1321 = vunpack.c.l.b16 %v426
  %v1322 = vunpack.c.l.b16 %v427
  %v1323 = vunpack.c.l.b16 %v428
  %v1324 = vunpack.c.l.b16 %v429
  %v1325 = vunpack.c.l.b16 %v430
  %v1326 = vunpack.c.l.b16 %v431
  %v1327 = vunpack.c.l.b16 %v432
  %v1328 = vunpack.c.l.b16 %v433
  %v1329 = vunpack.c.l.b16 %v434
  %v1330 = vunpack.c.l.b16 %v435
  %v1331 = vunpack.c.l.b16 %v436
  %v1332 = vunpack.c.l.b16 %v437
  %v1333 = vunpack.c.l.b16 %v438
  %v1334 = vunpack.c.l.b16 %v439
  %v1335 = vpack.c.b16 %v936, %v935
  %v1336 = vpack.c.b16 %v938, %v937
  %v1337 = vpack.c.b16 %v940, %v939
  %v1338 = vpack.c.b16 %v942, %v941
  %v1339 = vpack.c.b16 %v944, %v943
  %v1340 = vpack.c.b16 %v946, %v945
  %v1341 = vpack.c.b16 %v948, %v947
  %v1342 = vpack.c.b16 %v950, %v949
  %v1343 = vpack.c.b16 %v952, %v951
  %v1344 = vpack.c.b16 %v954, %v953
  %v1345 = vpack.c.b16 %v956, %v955
  %v1346 = vpack.c.b16 %v958, %v957
  %v1347 = vpack.c.b16 %v960, %v959
  %v1348 = vpack.c.b16 %v962, %v961
  %v1349 = vpack.c.b16 %v964, %v963
  %v1350 = vpack.c.b16 %v966, %v965
  %v1351 = vpack.c.b16 %v968, %v967
  %v1352 = vpack.c.b16 %v970, %v969
  %v1353 = vpack.c.b16 %v972, %v971
  %v1354 = vpack.c.b16 %v974, %v973
  %v1355 = vpack.c.b16 %v976, %v975
  %v1356 = vpack.c.b16 %v978, %v977
  %v1357 = vpack.c.b16 %v980, %v979
  %v1358 = vpack.c.b16 %v982, %v981
  %v1359 = vpack.c.b16 %v984, %v983
  %v1360 = vpack.c.b16 %v986, %v985
  %v1361 = vpack.c.b16 %v988, %v987
  %v1362 = vpack.c.b16 %v990, %v989
  %v1363 = vpack.c.b16 %v992, %v991
  %v1364 = vpack.c.b16 %v994, %v993
  %v1365 = vpack.c.b16 %v996, %v995
  %v1366 = vpack.c.b16 %v998, %v997
  %v1367 = vpack.c.b16 %v1000, %v999
  %v1368 = vpack.c.b16 %v1002, %v1001
  %v1369 = vpack.c.b16 %v1004, %v1003
  %v1370 = vpack.c.b16 %v1006, %v1005
  %v1371 = vpack.c.b16 %v1008, %v1007
  %v1372 = vpack.c.b16 %v1010, %v1009
  %v1373 = vpack.c.b16 %v1012, %v1011
  %v1374 = vpack.c.b16 %v1014, %v1013
  %v1375 = vpack.c.b16 %v1016, %v1015
  %v1376 = vpack.c.b16 %v1018, %v1017
  %v1377 = vpack.c.b16 %v1020, %v1019
  %v1378 = vpack.c.b16 %v1022, %v1021
  %v1379 = vpack.c.b16 %v1024, %v1023
  %v1380 = vpack.c.b16 %v1026, %v1025
  %v1381 = vpack.c.b16 %v1028, %v1027
  %v1382 = vpack.c.b16 %v1030, %v1029
  %v1383 = vpack.c.b16 %v1032, %v1031
  %v1384 = vpack.c.b16 %v1034, %v1033
  %v1385 = vpack.c.b16 %v1036, %v1035
  %v1386 = vpack.c.b16 %v1038, %v1037
  %v1387 = vpack.c.b16 %v1040, %v1039
  %v1388 = vpack.c.b16 %v1042, %v1041
  %v1389 = vpack.c.b16 %v1044, %v1043
  %v1390 = vpack.c.b16 %v1046, %v1045
  %v1391 = vpack.c.b16 %v1048, %v1047
  %v1392 = vpack.c.b16 %v1050, %v1049
  %v1393 = vpack.c.b16 %v1052, %v1051
  %v1394 = vpack.c.b16 %v1054, %v1053
  %v1395 = vpack.c.b16 %v1056, %v1055
  %v1396 = vpack.c.b16 %v1058, %v1057
  %v1397 = vpack.c.b16 %v1060, %v1059
  %v1398 = vpack.c.b16 %v1062, %v1061
  %v1399 = vpack.c.b16 %v1064, %v1063
  %v1400 = vpack.c.b16 %v1066, %v1065
  %v1401 = vpack.c.b16 %v1068, %v1067
  %v1402 = vpack.c.b16 %v1070, %v1069
  %v1403 = vpack.c.b16 %v1072, %v1071
  %v1404 = vpack.c.b16 %v1074, %v1073
  %v1405 = vpack.c.b16 %v1076, %v1075
  %v1406 = vpack.c.b16 %v1078, %v1077
  %v1407 = vpack.c.b16 %v1080, %v1079
  %v1408 = vpack.c.b16 %v1082, %v1081
  %v1409 = vpack.c.b16 %v1084, %v1083
  %v1410 = vpack.c.b16 %v1086, %v1085
  %v1411 = vpack.c.b16 %v1088, %v1087
  %v1412 = vpack.c.b16 %v1090, %v1089
  %v1413 = vpack.c.b16 %v1092, %v1091
  %v1414 = vpack.c.b16 %v1094, %v1093
  %v1415 = vpack.c.b16 %v1096, %v1095
  %v1416 = vpack.c.b16 %v1098, %v1097
  %v1417 = vpack.c.b16 %v1100, %v1099
  %v1418 = vpack.c.b16 %v1102, %v1101
  %v1419 = vpack.c.b16 %v1104, %v1103
  %v1420 = vpack.c.b16 %v1106, %v1105
  %v1421 = vpack.c.b16 %v1108, %v1107
  %v1422 = vpack.c.b16 %v1110, %v1109
  %v1423 = vpack.c.b16 %v1112, %v1111
  %v1424 = vpack.c.b16 %v1114, %v1113
  %v1425 = vpack.c.b16 %v1116, %v1115
  %v1426 = vpack.c.b16 %v1118, %v1117
  %v1427 = vpack.c.b16 %v1120, %v1119
  %v1428 = vpack.c.b16 %v1122, %v1121
  %v1429 = vpack.c.b16 %v1124, %v1123
  %v1430 = vpack.c.b16 %v1126, %v1125
  %v1431 = vpack.c.b16 %v1128, %v1127
  %v1432 = vpack.c.b16 %v1130, %v1129
  %v1433 = vpack.c.b16 %v1132, %v1131
  %v1434 = vpack.c.b16 %v1134, %v1133
  %v1435 = vpack.c.b16 %v1136, %v1135
  %v1436 = vpack.c.b16 %v1138, %v1137
  %v1437 = vpack.c.b16 %v1140, %v1139
  %v1438 = vpack.c.b16 %v1142, %v1141
  %v1439 = vpack.c.b16 %v1144, %v1143
  %v1440 = vpack.c.b16 %v1146, %v1145
  %v1441 = vpack.c.b16 %v1148, %v1147
  %v1442 = vpack.c.b16 %v1150, %v1149
  %v1443 = vpack.c.b16 %v1152, %v1151
  %v1444 = vpack.c.b16 %v1154, %v1153
  %v1445 = vpack.c.b16 %v1156, %v1155
  %v1446 = vpack.c.b16 %v1158, %v1157
  %v1447 = vpack.c.b16 %v1160, %v1159
  %v1448 = vpack.c.b16 %v1162, %v1161
  %v1449 = vpack.c.b16 %v1164, %v1163
  %v1450 = vpack.c.b16 %v1166, %v1165
  %v1451 = vpack.c.b16 %v1168, %v1167
  %v1452 = vpack.c.b16 %v1170, %v1169
  %v1453 = vpack.c.b16 %v1172, %v1171
  %v1454 = vpack.c.b16 %v1174, %v1173
  %v1455 = vpack.c.b16 %v1176, %v1175
  %v1456 = vpack.c.b16 %v1178, %v1177
  %v1457 = vpack.c.b16 %v1180, %v1179
  %v1458 = vpack.c.b16 %v1182, %v1181
  %v1459 = vpack.c.b16 %v1184, %v1183
  %v1460 = vpack.c.b16 %v1186, %v1185
  %v1461 = vpack.c.b16 %v1188, %v1187
  %v1462 = vpack.c.b16 %v1190, %v1189
  %v1463 = vpack.c.b16 %v1192, %v1191
  %v1464 = vpack.c.b16 %v1194, %v1193
  %v1465 = vpack.c.b16 %v1196, %v1195
  %v1466 = vpack.c.b16 %v1198, %v1197
  %v1467 = vpack.c.b16 %v1200, %v1199
  %v1468 = vpack.c.b16 %v1202, %v1201
  %v1469 = vpack.c.b16 %v1204, %v1203
  %v1470 = vpack.c.b16 %v1206, %v1205
  %v1471 = vpack.c.b16 %v1208, %v1207
  %v1472 = vpack.c.b16 %v1210, %v1209
  %v1473 = vpack.c.b16 %v1212, %v1211
  %v1474 = vpack.c.b16 %v1214, %v1213
  %v1475 = vpack.c.b16 %v1216, %v1215
  %v1476 = vpack.c.b16 %v1218, %v1217
  %v1477 = vpack.c.b16 %v1220, %v1219
  %v1478 = vpack.c.b16 %v1222, %v1221
  %v1479 = vpack.c.b16 %v1224, %v1223
  %v1480 = vpack.c.b16 %v1226, %v1225
  %v1481 = vpack.c.b16 %v1228, %v1227
  %v1482 = vpack.c.b16 %v1230, %v1229
  %v1483 = vpack.c.b16 %v1232, %v1231
  %v1484 = vpack.c.b16 %v1234, %v1233
  %v1485 = vpack.c.b16 %v1236, %v1235
  %v1486 = vpack.c.b16 %v1238, %v1237
  %v1487 = vpack.c.b16 %v1240, %v1239
  %v1488 = vpack.c.b16 %v1242, %v1241
  %v1489 = vpack.c.b16 %v1244, %v1243
  %v1490 = vpack.c.b16 %v1246, %v1245
  %v1491 = vpack.c.b16 %v1248, %v1247
  %v1492 = vpack.c.b16 %v1250, %v1249
  %v1493 = vpack.c.b16 %v1252, %v1251
  %v1494 = vpack.c.b16 %v1254, %v1253
  %v1495 = vpack.c.b16 %v1256, %v1255
  %v1496 = vpack.c.b16 %v1258, %v1257
  %v1497 = vpack.c.b16 %v1260, %v1259
  %v1498 = vpack.c.b16 %v1262, %v1261
  %v1499 = vpack.c.b16 %v1264, %v1263
  %v1500 = vpack.c.b16 %v1266, %v1265
  %v1501 = vpack.c.b16 %v1268, %v1267
  %v1502 = vpack.c.b16 %v1270, %v1269
  %v1503 = vpack.c.b16 %v1272, %v1271
  %v1504 = vpack.c.b16 %v1274, %v1273
  %v1505 = vpack.c.b16 %v1276, %v1275
  %v1506 = vpack.c.b16 %v1278, %v1277
  %v1507 = vpack.c.b16 %v1280, %v1279
  %v1508 = vpack.c.b16 %v1282, %v1281
  %v1509 = vpack.c.b16 %v1284, %v1283
  %v1510 = vpack.c.b16 %v1286, %v1285
  %v1511 = vpack.c.b16 %v1288, %v1287
  %v1512 = vpack.c.b16 %v1290, %v1289
  %v1513 = vpack.c.b16 %v1292, %v1291
  %v1514 = vpack.c.b16 %v1294, %v1293
  %v1515 = vpack.c.b16 %v1296, %v1295
  %v1516 = vpack.c.b16 %v1298, %v1297
  %v1517 = vpack.c.b16 %v1300, %v1299
  %v1518 = vpack.c.b16 %v1302, %v1301
  %v1519 = vpack.c.b16 %v1304, %v1303
  %v1520 = vpack.c.b16 %v1306, %v1305
  %v1521 = vpack.c.b16 %v1308, %v1307
  %v1522 = vpack.c.b16 %v1310, %v1309
  %v1523 = vpack.c.b16 %v1312, %v1311
  %v1524 = vpack.c.b16 %v1314, %v1313
  %v1525 = vpack.c.b16 %v1316, %v1315
  %v1526 = vpack.c.b16 %v1318, %v1317
  %v1527 = vpack.c.b16 %v1320, %v1319
  %v1528 = vpack.c.b16 %v1322, %v1321
  %v1529 = vpack.c.b16 %v1324, %v1323
  %v1530 = vpack.c.b16 %v1326, %v1325
  %v1531 = vpack.c.b16 %v1328, %v1327
  %v1532 = vpack.c.b16 %v1330, %v1329
  %v1533 = vpack.c.b16 %v1332, %v1331
  %v1534 = vpack.c.b16 %v1334, %v1333
  %1735 = vmatprep.subr.bf16.mxu0 0
  %1736 = vmatpush1.bf16.msra.mxu0 %v1342
  %1737 = vmatprep.subr.bf16.mxu0 0
  %1738 = vmatpush1.bf16.msra.mxu0 %v1341
  %1739 = vmatprep.subr.bf16.mxu0 0
  %1740 = vmatpush1.bf16.msra.mxu0 %v1340
  %1741 = vmatprep.subr.bf16.mxu0 0
  %1742 = vmatpush1.bf16.msra.mxu0 %v1339
  %1743 = vmatprep.subr.bf16.mxu0 0
  %1744 = vmatpush1.bf16.msra.mxu0 %v1338
  %1745 = vmatprep.subr.bf16.mxu0 0
  %1746 = vmatpush1.bf16.msra.mxu0 %v1337
  %1747 = vmatprep.subr.bf16.mxu0 0
  %1748 = vmatpush1.bf16.msra.mxu0 %v1336
  %1749 = vmatprep.subr.bf16.mxu0 0
  %1750 = vmatpush1.bf16.msra.mxu0 %v1335
  %1751 = vmatprep.subr.bf16.mxu0 0
  %1752 = vmatpush2.bf16.msra.mxu0 %v1350
  %1753 = vmatprep.subr.bf16.mxu0 0
  %1754 = vmatpush2.bf16.msra.mxu0 %v1349
  %1755 = vmatprep.subr.bf16.mxu0 0
  %1756 = vmatpush2.bf16.msra.mxu0 %v1348
  %1757 = vmatprep.subr.bf16.mxu0 0
  %1758 = vmatpush2.bf16.msra.mxu0 %v1347
  %1759 = vmatprep.subr.bf16.mxu0 0
  %1760 = vmatpush2.bf16.msra.mxu0 %v1346
  %1761 = vmatprep.subr.bf16.mxu0 0
  %1762 = vmatpush2.bf16.msra.mxu0 %v1345
  %1763 = vmatprep.subr.bf16.mxu0 0
  %1764 = vmatpush2.bf16.msra.mxu0 %v1344
  %1765 = vmatprep.subr.bf16.mxu0 0
  %1766 = vmatpush2.bf16.msra.mxu0 %v1343
  %1767 = vmatprep.mubr.bf16.mxu0 %v486
  %1768 = vmatmul.mubr.bf16.gmra.mxu0 %v485
  %v1769 = vpop.f32.mrf.mxu0
  %v1770 = vadd.f32 %v445, %v1769
  %v1771 = vpop.f32.mrf.mxu0
  %v1772 = vpop.f32.mrf.mxu0
  %v1773 = vpop.f32.mrf.mxu0
  %1774 = vdwg.mxu0
  %1775 = vmatprep.subr.bf16.mxu0 0
  %1776 = vmatpush1.bf16.msra.mxu0 %v1358
  %1777 = vmatprep.subr.bf16.mxu0 0
  %1778 = vmatpush1.bf16.msra.mxu0 %v1357
  %1779 = vmatprep.subr.bf16.mxu0 0
  %1780 = vmatpush1.bf16.msra.mxu0 %v1356
  %1781 = vmatprep.subr.bf16.mxu0 0
  %1782 = vmatpush1.bf16.msra.mxu0 %v1355
  %1783 = vmatprep.subr.bf16.mxu0 0
  %1784 = vmatpush1.bf16.msra.mxu0 %v1354
  %1785 = vmatprep.subr.bf16.mxu0 0
  %1786 = vmatpush1.bf16.msra.mxu0 %v1353
  %1787 = vmatprep.subr.bf16.mxu0 0
  %1788 = vmatpush1.bf16.msra.mxu0 %v1352
  %1789 = vmatprep.subr.bf16.mxu0 0
  %1790 = vmatpush1.bf16.msra.mxu0 %v1351
  %1791 = vmatprep.subr.bf16.mxu0 0
  %1792 = vmatpush2.bf16.msra.mxu0 %v1366
  %1793 = vmatprep.subr.bf16.mxu0 0
  %1794 = vmatpush2.bf16.msra.mxu0 %v1365
  %1795 = vmatprep.subr.bf16.mxu0 0
  %1796 = vmatpush2.bf16.msra.mxu0 %v1364
  %1797 = vmatprep.subr.bf16.mxu0 0
  %1798 = vmatpush2.bf16.msra.mxu0 %v1363
  %1799 = vmatprep.subr.bf16.mxu0 0
  %1800 = vmatpush2.bf16.msra.mxu0 %v1362
  %1801 = vmatprep.subr.bf16.mxu0 0
  %1802 = vmatpush2.bf16.msra.mxu0 %v1361
  %1803 = vmatprep.subr.bf16.mxu0 0
  %1804 = vmatpush2.bf16.msra.mxu0 %v1360
  %1805 = vmatprep.subr.bf16.mxu0 0
  %1806 = vmatpush2.bf16.msra.mxu0 %v1359
  %1807 = vmatprep.mubr.bf16.mxu0 %v488
  %1808 = vmatmul.mubr.bf16.gmra.mxu0 %v487
  %v1809 = vpop.f32.mrf.mxu0
  %v1810 = vadd.f32 %v1770, %v1809
  %v1811 = vpop.f32.mrf.mxu0
  %v1812 = vpop.f32.mrf.mxu0
  %v1813 = vpop.f32.mrf.mxu0
  %1814 = vdwg.mxu0
  %1815 = vmatprep.subr.bf16.mxu0 0
  %1816 = vmatpush1.bf16.msra.mxu0 %v1374
  %1817 = vmatprep.subr.bf16.mxu0 0
  %1818 = vmatpush1.bf16.msra.mxu0 %v1373
  %1819 = vmatprep.subr.bf16.mxu0 0
  %1820 = vmatpush1.bf16.msra.mxu0 %v1372
  %1821 = vmatprep.subr.bf16.mxu0 0
  %1822 = vmatpush1.bf16.msra.mxu0 %v1371
  %1823 = vmatprep.subr.bf16.mxu0 0
  %1824 = vmatpush1.bf16.msra.mxu0 %v1370
  %1825 = vmatprep.subr.bf16.mxu0 0
  %1826 = vmatpush1.bf16.msra.mxu0 %v1369
  %1827 = vmatprep.subr.bf16.mxu0 0
  %1828 = vmatpush1.bf16.msra.mxu0 %v1368
  %1829 = vmatprep.subr.bf16.mxu0 0
  %1830 = vmatpush1.bf16.msra.mxu0 %v1367
  %1831 = vmatprep.subr.bf16.mxu0 0
  %1832 = vmatpush2.bf16.msra.mxu0 %v1382
  %1833 = vmatprep.subr.bf16.mxu0 0
  %1834 = vmatpush2.bf16.msra.mxu0 %v1381
  %1835 = vmatprep.subr.bf16.mxu0 0
  %1836 = vmatpush2.bf16.msra.mxu0 %v1380
  %1837 = vmatprep.subr.bf16.mxu0 0
  %1838 = vmatpush2.bf16.msra.mxu0 %v1379
  %1839 = vmatprep.subr.bf16.mxu0 0
  %1840 = vmatpush2.bf16.msra.mxu0 %v1378
  %1841 = vmatprep.subr.bf16.mxu0 0
  %1842 = vmatpush2.bf16.msra.mxu0 %v1377
  %1843 = vmatprep.subr.bf16.mxu0 0
  %1844 = vmatpush2.bf16.msra.mxu0 %v1376
  %1845 = vmatprep.subr.bf16.mxu0 0
  %1846 = vmatpush2.bf16.msra.mxu0 %v1375
  %1847 = vmatprep.mubr.bf16.mxu0 %v490
  %1848 = vmatmul.mubr.bf16.gmra.mxu0 %v489
  %v1849 = vpop.f32.mrf.mxu0
  %v1850 = vadd.f32 %v1810, %v1849
  %v1851 = vpop.f32.mrf.mxu0
  %v1852 = vpop.f32.mrf.mxu0
  %v1853 = vpop.f32.mrf.mxu0
  %1854 = vdwg.mxu0
  %1855 = vmatprep.subr.bf16.mxu0 0
  %1856 = vmatpush1.bf16.msra.mxu0 %v1390
  %1857 = vmatprep.subr.bf16.mxu0 0
  %1858 = vmatpush1.bf16.msra.mxu0 %v1389
  %1859 = vmatprep.subr.bf16.mxu0 0
  %1860 = vmatpush1.bf16.msra.mxu0 %v1388
  %1861 = vmatprep.subr.bf16.mxu0 0
  %1862 = vmatpush1.bf16.msra.mxu0 %v1387
  %1863 = vmatprep.subr.bf16.mxu0 0
  %1864 = vmatpush1.bf16.msra.mxu0 %v1386
  %1865 = vmatprep.subr.bf16.mxu0 0
  %1866 = vmatpush1.bf16.msra.mxu0 %v1385
  %1867 = vmatprep.subr.bf16.mxu0 0
  %1868 = vmatpush1.bf16.msra.mxu0 %v1384
  %1869 = vmatprep.subr.bf16.mxu0 0
  %1870 = vmatpush1.bf16.msra.mxu0 %v1383
  %1871 = vmatprep.subr.bf16.mxu0 0
  %1872 = vmatpush2.bf16.msra.mxu0 %v1398
  %1873 = vmatprep.subr.bf16.mxu0 0
  %1874 = vmatpush2.bf16.msra.mxu0 %v1397
  %1875 = vmatprep.subr.bf16.mxu0 0
  %1876 = vmatpush2.bf16.msra.mxu0 %v1396
  %1877 = vmatprep.subr.bf16.mxu0 0
  %1878 = vmatpush2.bf16.msra.mxu0 %v1395
  %1879 = vmatprep.subr.bf16.mxu0 0
  %1880 = vmatpush2.bf16.msra.mxu0 %v1394
  %1881 = vmatprep.subr.bf16.mxu0 0
  %1882 = vmatpush2.bf16.msra.mxu0 %v1393
  %1883 = vmatprep.subr.bf16.mxu0 0
  %1884 = vmatpush2.bf16.msra.mxu0 %v1392
  %1885 = vmatprep.subr.bf16.mxu0 0
  %1886 = vmatpush2.bf16.msra.mxu0 %v1391
  %1887 = vmatprep.mubr.bf16.mxu0 %v492
  %1888 = vmatmul.mubr.bf16.gmra.mxu0 %v491
  %v1889 = vpop.f32.mrf.mxu0
  %v1890 = vadd.f32 %v1850, %v1889
  %v1891 = vpop.f32.mrf.mxu0
  %v1892 = vpop.f32.mrf.mxu0
  %v1893 = vpop.f32.mrf.mxu0
  %1894 = vdwg.mxu0
  %1895 = vmatprep.subr.bf16.mxu0 0
  %1896 = vmatpush1.bf16.msra.mxu0 %v1406
  %1897 = vmatprep.subr.bf16.mxu0 0
  %1898 = vmatpush1.bf16.msra.mxu0 %v1405
  %1899 = vmatprep.subr.bf16.mxu0 0
  %1900 = vmatpush1.bf16.msra.mxu0 %v1404
  %1901 = vmatprep.subr.bf16.mxu0 0
  %1902 = vmatpush1.bf16.msra.mxu0 %v1403
  %1903 = vmatprep.subr.bf16.mxu0 0
  %1904 = vmatpush1.bf16.msra.mxu0 %v1402
  %1905 = vmatprep.subr.bf16.mxu0 0
  %1906 = vmatpush1.bf16.msra.mxu0 %v1401
  %1907 = vmatprep.subr.bf16.mxu0 0
  %1908 = vmatpush1.bf16.msra.mxu0 %v1400
  %1909 = vmatprep.subr.bf16.mxu0 0
  %1910 = vmatpush1.bf16.msra.mxu0 %v1399
  %1911 = vmatprep.subr.bf16.mxu0 0
  %1912 = vmatpush2.bf16.msra.mxu0 %v1414
  %1913 = vmatprep.subr.bf16.mxu0 0
  %1914 = vmatpush2.bf16.msra.mxu0 %v1413
  %1915 = vmatprep.subr.bf16.mxu0 0
  %1916 = vmatpush2.bf16.msra.mxu0 %v1412
  %1917 = vmatprep.subr.bf16.mxu0 0
  %1918 = vmatpush2.bf16.msra.mxu0 %v1411
  %1919 = vmatprep.subr.bf16.mxu0 0
  %1920 = vmatpush2.bf16.msra.mxu0 %v1410
  %1921 = vmatprep.subr.bf16.mxu0 0
  %1922 = vmatpush2.bf16.msra.mxu0 %v1409
  %1923 = vmatprep.subr.bf16.mxu0 0
  %1924 = vmatpush2.bf16.msra.mxu0 %v1408
  %1925 = vmatprep.subr.bf16.mxu0 0
  %1926 = vmatpush2.bf16.msra.mxu0 %v1407
  %1927 = vmatprep.mubr.bf16.mxu0 %v494
  %1928 = vmatmul.mubr.bf16.gmra.mxu0 %v493
  %v1929 = vpop.f32.mrf.mxu0
  %v1930 = vadd.f32 %v1890, %v1929
  %v1931 = vpop.f32.mrf.mxu0
  %v1932 = vpop.f32.mrf.mxu0
  %v1933 = vpop.f32.mrf.mxu0
  %1934 = vdwg.mxu0
  %1935 = vmatprep.subr.bf16.mxu0 0
  %1936 = vmatpush1.bf16.msra.mxu0 %v1422
  %1937 = vmatprep.subr.bf16.mxu0 0
  %1938 = vmatpush1.bf16.msra.mxu0 %v1421
  %1939 = vmatprep.subr.bf16.mxu0 0
  %1940 = vmatpush1.bf16.msra.mxu0 %v1420
  %1941 = vmatprep.subr.bf16.mxu0 0
  %1942 = vmatpush1.bf16.msra.mxu0 %v1419
  %1943 = vmatprep.subr.bf16.mxu0 0
  %1944 = vmatpush1.bf16.msra.mxu0 %v1418
  %1945 = vmatprep.subr.bf16.mxu0 0
  %1946 = vmatpush1.bf16.msra.mxu0 %v1417
  %1947 = vmatprep.subr.bf16.mxu0 0
  %1948 = vmatpush1.bf16.msra.mxu0 %v1416
  %1949 = vmatprep.subr.bf16.mxu0 0
  %1950 = vmatpush1.bf16.msra.mxu0 %v1415
  %1951 = vmatprep.subr.bf16.mxu0 0
  %1952 = vmatpush2.bf16.msra.mxu0 %v1430
  %1953 = vmatprep.subr.bf16.mxu0 0
  %1954 = vmatpush2.bf16.msra.mxu0 %v1429
  %1955 = vmatprep.subr.bf16.mxu0 0
  %1956 = vmatpush2.bf16.msra.mxu0 %v1428
  %1957 = vmatprep.subr.bf16.mxu0 0
  %1958 = vmatpush2.bf16.msra.mxu0 %v1427
  %1959 = vmatprep.subr.bf16.mxu0 0
  %1960 = vmatpush2.bf16.msra.mxu0 %v1426
  %1961 = vmatprep.subr.bf16.mxu0 0
  %1962 = vmatpush2.bf16.msra.mxu0 %v1425
  %1963 = vmatprep.subr.bf16.mxu0 0
  %1964 = vmatpush2.bf16.msra.mxu0 %v1424
  %1965 = vmatprep.subr.bf16.mxu0 0
  %1966 = vmatpush2.bf16.msra.mxu0 %v1423
  %1967 = vmatprep.mubr.bf16.mxu0 %v496
  %1968 = vmatmul.mubr.bf16.gmra.mxu0 %v495
  %v1969 = vpop.f32.mrf.mxu0
  %v1970 = vadd.f32 %v1930, %v1969
  %v1971 = vpop.f32.mrf.mxu0
  %v1972 = vpop.f32.mrf.mxu0
  %v1973 = vpop.f32.mrf.mxu0
  %1974 = vdwg.mxu0
  %1975 = vmatprep.subr.bf16.mxu0 0
  %1976 = vmatpush1.bf16.msra.mxu0 %v1438
  %1977 = vmatprep.subr.bf16.mxu0 0
  %1978 = vmatpush1.bf16.msra.mxu0 %v1437
  %1979 = vmatprep.subr.bf16.mxu0 0
  %1980 = vmatpush1.bf16.msra.mxu0 %v1436
  %1981 = vmatprep.subr.bf16.mxu0 0
  %1982 = vmatpush1.bf16.msra.mxu0 %v1435
  %1983 = vmatprep.subr.bf16.mxu0 0
  %1984 = vmatpush1.bf16.msra.mxu0 %v1434
  %1985 = vmatprep.subr.bf16.mxu0 0
  %1986 = vmatpush1.bf16.msra.mxu0 %v1433
  %1987 = vmatprep.subr.bf16.mxu0 0
  %1988 = vmatpush1.bf16.msra.mxu0 %v1432
  %1989 = vmatprep.subr.bf16.mxu0 0
  %1990 = vmatpush1.bf16.msra.mxu0 %v1431
  %1991 = vmatprep.subr.bf16.mxu0 0
  %1992 = vmatpush2.bf16.msra.mxu0 %v1446
  %1993 = vmatprep.subr.bf16.mxu0 0
  %1994 = vmatpush2.bf16.msra.mxu0 %v1445
  %1995 = vmatprep.subr.bf16.mxu0 0
  %1996 = vmatpush2.bf16.msra.mxu0 %v1444
  %1997 = vmatprep.subr.bf16.mxu0 0
  %1998 = vmatpush2.bf16.msra.mxu0 %v1443
  %1999 = vmatprep.subr.bf16.mxu0 0
  %2000 = vmatpush2.bf16.msra.mxu0 %v1442
  %2001 = vmatprep.subr.bf16.mxu0 0
  %2002 = vmatpush2.bf16.msra.mxu0 %v1441
  %2003 = vmatprep.subr.bf16.mxu0 0
  %2004 = vmatpush2.bf16.msra.mxu0 %v1440
  %2005 = vmatprep.subr.bf16.mxu0 0
  %2006 = vmatpush2.bf16.msra.mxu0 %v1439
  %2007 = vmatprep.mubr.bf16.mxu0 %v498
  %2008 = vmatmul.mubr.bf16.gmra.mxu0 %v497
  %v2009 = vpop.f32.mrf.mxu0
  %v2010 = vadd.f32 %v1970, %v2009
  %v2011 = vpop.f32.mrf.mxu0
  %v2012 = vpop.f32.mrf.mxu0
  %v2013 = vpop.f32.mrf.mxu0
  %2014 = vdwg.mxu0
  %2015 = vmatprep.subr.bf16.mxu0 0
  %2016 = vmatpush1.bf16.msra.mxu0 %v1454
  %2017 = vmatprep.subr.bf16.mxu0 0
  %2018 = vmatpush1.bf16.msra.mxu0 %v1453
  %2019 = vmatprep.subr.bf16.mxu0 0
  %2020 = vmatpush1.bf16.msra.mxu0 %v1452
  %2021 = vmatprep.subr.bf16.mxu0 0
  %2022 = vmatpush1.bf16.msra.mxu0 %v1451
  %2023 = vmatprep.subr.bf16.mxu0 0
  %2024 = vmatpush1.bf16.msra.mxu0 %v1450
  %2025 = vmatprep.subr.bf16.mxu0 0
  %2026 = vmatpush1.bf16.msra.mxu0 %v1449
  %2027 = vmatprep.subr.bf16.mxu0 0
  %2028 = vmatpush1.bf16.msra.mxu0 %v1448
  %2029 = vmatprep.subr.bf16.mxu0 0
  %2030 = vmatpush1.bf16.msra.mxu0 %v1447
  %2031 = vmatprep.subr.bf16.mxu0 0
  %2032 = vmatpush2.bf16.msra.mxu0 %v1462
  %2033 = vmatprep.subr.bf16.mxu0 0
  %2034 = vmatpush2.bf16.msra.mxu0 %v1461
  %2035 = vmatprep.subr.bf16.mxu0 0
  %2036 = vmatpush2.bf16.msra.mxu0 %v1460
  %2037 = vmatprep.subr.bf16.mxu0 0
  %2038 = vmatpush2.bf16.msra.mxu0 %v1459
  %2039 = vmatprep.subr.bf16.mxu0 0
  %2040 = vmatpush2.bf16.msra.mxu0 %v1458
  %2041 = vmatprep.subr.bf16.mxu0 0
  %2042 = vmatpush2.bf16.msra.mxu0 %v1457
  %2043 = vmatprep.subr.bf16.mxu0 0
  %2044 = vmatpush2.bf16.msra.mxu0 %v1456
  %2045 = vmatprep.subr.bf16.mxu0 0
  %2046 = vmatpush2.bf16.msra.mxu0 %v1455
  %2047 = vmatprep.mubr.bf16.mxu0 %v500
  %2048 = vmatmul.mubr.bf16.gmra.mxu0 %v499
  %v2049 = vpop.f32.mrf.mxu0
  %v2050 = vadd.f32 %v2010, %v2049
  %v2051 = vpop.f32.mrf.mxu0
  %v2052 = vpop.f32.mrf.mxu0
  %v2053 = vpop.f32.mrf.mxu0
  %2054 = vdwg.mxu0
  %2055 = vmatprep.subr.bf16.mxu0 0
  %2056 = vmatpush1.bf16.msra.mxu0 %v1470
  %2057 = vmatprep.subr.bf16.mxu0 0
  %2058 = vmatpush1.bf16.msra.mxu0 %v1469
  %2059 = vmatprep.subr.bf16.mxu0 0
  %2060 = vmatpush1.bf16.msra.mxu0 %v1468
  %2061 = vmatprep.subr.bf16.mxu0 0
  %2062 = vmatpush1.bf16.msra.mxu0 %v1467
  %2063 = vmatprep.subr.bf16.mxu0 0
  %2064 = vmatpush1.bf16.msra.mxu0 %v1466
  %2065 = vmatprep.subr.bf16.mxu0 0
  %2066 = vmatpush1.bf16.msra.mxu0 %v1465
  %2067 = vmatprep.subr.bf16.mxu0 0
  %2068 = vmatpush1.bf16.msra.mxu0 %v1464
  %2069 = vmatprep.subr.bf16.mxu0 0
  %2070 = vmatpush1.bf16.msra.mxu0 %v1463
  %2071 = vmatprep.subr.bf16.mxu0 0
  %2072 = vmatpush2.bf16.msra.mxu0 %v1478
  %2073 = vmatprep.subr.bf16.mxu0 0
  %2074 = vmatpush2.bf16.msra.mxu0 %v1477
  %2075 = vmatprep.subr.bf16.mxu0 0
  %2076 = vmatpush2.bf16.msra.mxu0 %v1476
  %2077 = vmatprep.subr.bf16.mxu0 0
  %2078 = vmatpush2.bf16.msra.mxu0 %v1475
  %2079 = vmatprep.subr.bf16.mxu0 0
  %2080 = vmatpush2.bf16.msra.mxu0 %v1474
  %2081 = vmatprep.subr.bf16.mxu0 0
  %2082 = vmatpush2.bf16.msra.mxu0 %v1473
  %2083 = vmatprep.subr.bf16.mxu0 0
  %2084 = vmatpush2.bf16.msra.mxu0 %v1472
  %2085 = vmatprep.subr.bf16.mxu0 0
  %2086 = vmatpush2.bf16.msra.mxu0 %v1471
  %2087 = vmatprep.mubr.bf16.mxu0 %v502
  %2088 = vmatmul.mubr.bf16.gmra.mxu0 %v501
  %v2089 = vpop.f32.mrf.mxu0
  %v2090 = vadd.f32 %v2050, %v2089
  %v2091 = vpop.f32.mrf.mxu0
  %v2092 = vpop.f32.mrf.mxu0
  %v2093 = vpop.f32.mrf.mxu0
  %2094 = vdwg.mxu0
  %2095 = vmatprep.subr.bf16.mxu0 0
  %2096 = vmatpush1.bf16.msra.mxu0 %v1486
  %2097 = vmatprep.subr.bf16.mxu0 0
  %2098 = vmatpush1.bf16.msra.mxu0 %v1485
  %2099 = vmatprep.subr.bf16.mxu0 0
  %2100 = vmatpush1.bf16.msra.mxu0 %v1484
  %2101 = vmatprep.subr.bf16.mxu0 0
  %2102 = vmatpush1.bf16.msra.mxu0 %v1483
  %2103 = vmatprep.subr.bf16.mxu0 0
  %2104 = vmatpush1.bf16.msra.mxu0 %v1482
  %2105 = vmatprep.subr.bf16.mxu0 0
  %2106 = vmatpush1.bf16.msra.mxu0 %v1481
  %2107 = vmatprep.subr.bf16.mxu0 0
  %2108 = vmatpush1.bf16.msra.mxu0 %v1480
  %2109 = vmatprep.subr.bf16.mxu0 0
  %2110 = vmatpush1.bf16.msra.mxu0 %v1479
  %2111 = vmatprep.subr.bf16.mxu0 0
  %2112 = vmatpush2.bf16.msra.mxu0 %v1494
  %2113 = vmatprep.subr.bf16.mxu0 0
  %2114 = vmatpush2.bf16.msra.mxu0 %v1493
  %2115 = vmatprep.subr.bf16.mxu0 0
  %2116 = vmatpush2.bf16.msra.mxu0 %v1492
  %2117 = vmatprep.subr.bf16.mxu0 0
  %2118 = vmatpush2.bf16.msra.mxu0 %v1491
  %2119 = vmatprep.subr.bf16.mxu0 0
  %2120 = vmatpush2.bf16.msra.mxu0 %v1490
  %2121 = vmatprep.subr.bf16.mxu0 0
  %2122 = vmatpush2.bf16.msra.mxu0 %v1489
  %2123 = vmatprep.subr.bf16.mxu0 0
  %2124 = vmatpush2.bf16.msra.mxu0 %v1488
  %2125 = vmatprep.subr.bf16.mxu0 0
  %2126 = vmatpush2.bf16.msra.mxu0 %v1487
  %2127 = vmatprep.mubr.bf16.mxu0 %v504
  %2128 = vmatmul.mubr.bf16.gmra.mxu0 %v503
  %v2129 = vpop.f32.mrf.mxu0
  %v2130 = vadd.f32 %v2090, %v2129
  %v2131 = vpop.f32.mrf.mxu0
  %v2132 = vpop.f32.mrf.mxu0
  %v2133 = vpop.f32.mrf.mxu0
  %2134 = vdwg.mxu0
  %2135 = vmatprep.subr.bf16.mxu0 0
  %2136 = vmatpush1.bf16.msra.mxu0 %v1502
  %2137 = vmatprep.subr.bf16.mxu0 0
  %2138 = vmatpush1.bf16.msra.mxu0 %v1501
  %2139 = vmatprep.subr.bf16.mxu0 0
  %2140 = vmatpush1.bf16.msra.mxu0 %v1500
  %2141 = vmatprep.subr.bf16.mxu0 0
  %2142 = vmatpush1.bf16.msra.mxu0 %v1499
  %2143 = vmatprep.subr.bf16.mxu0 0
  %2144 = vmatpush1.bf16.msra.mxu0 %v1498
  %2145 = vmatprep.subr.bf16.mxu0 0
  %2146 = vmatpush1.bf16.msra.mxu0 %v1497
  %2147 = vmatprep.subr.bf16.mxu0 0
  %2148 = vmatpush1.bf16.msra.mxu0 %v1496
  %2149 = vmatprep.subr.bf16.mxu0 0
  %2150 = vmatpush1.bf16.msra.mxu0 %v1495
  %2151 = vmatprep.subr.bf16.mxu0 0
  %2152 = vmatpush2.bf16.msra.mxu0 %v1510
  %2153 = vmatprep.subr.bf16.mxu0 0
  %2154 = vmatpush2.bf16.msra.mxu0 %v1509
  %2155 = vmatprep.subr.bf16.mxu0 0
  %2156 = vmatpush2.bf16.msra.mxu0 %v1508
  %2157 = vmatprep.subr.bf16.mxu0 0
  %2158 = vmatpush2.bf16.msra.mxu0 %v1507
  %2159 = vmatprep.subr.bf16.mxu0 0
  %2160 = vmatpush2.bf16.msra.mxu0 %v1506
  %2161 = vmatprep.subr.bf16.mxu0 0
  %2162 = vmatpush2.bf16.msra.mxu0 %v1505
  %2163 = vmatprep.subr.bf16.mxu0 0
  %2164 = vmatpush2.bf16.msra.mxu0 %v1504
  %2165 = vmatprep.subr.bf16.mxu0 0
  %2166 = vmatpush2.bf16.msra.mxu0 %v1503
  %2167 = vmatprep.mubr.bf16.mxu0 %v506
  %2168 = vmatmul.mubr.bf16.gmra.mxu0 %v505
  %v2169 = vpop.f32.mrf.mxu0
  %v2170 = vadd.f32 %v2130, %v2169
  %v2171 = vpop.f32.mrf.mxu0
  %v2172 = vpop.f32.mrf.mxu0
  %v2173 = vpop.f32.mrf.mxu0
  %2174 = vdwg.mxu0
  %2175 = vmatprep.subr.bf16.mxu0 0
  %2176 = vmatpush1.bf16.msra.mxu0 %v1518
  %2177 = vmatprep.subr.bf16.mxu0 0
  %2178 = vmatpush1.bf16.msra.mxu0 %v1517
  %2179 = vmatprep.subr.bf16.mxu0 0
  %2180 = vmatpush1.bf16.msra.mxu0 %v1516
  %2181 = vmatprep.subr.bf16.mxu0 0
  %2182 = vmatpush1.bf16.msra.mxu0 %v1515
  %2183 = vmatprep.subr.bf16.mxu0 0
  %2184 = vmatpush1.bf16.msra.mxu0 %v1514
  %2185 = vmatprep.subr.bf16.mxu0 0
  %2186 = vmatpush1.bf16.msra.mxu0 %v1513
  %2187 = vmatprep.subr.bf16.mxu0 0
  %2188 = vmatpush1.bf16.msra.mxu0 %v1512
  %2189 = vmatprep.subr.bf16.mxu0 0
  %2190 = vmatpush1.bf16.msra.mxu0 %v1511
  %2191 = vmatprep.subr.bf16.mxu0 0
  %2192 = vmatpush2.bf16.msra.mxu0 %v1526
  %2193 = vmatprep.subr.bf16.mxu0 0
  %2194 = vmatpush2.bf16.msra.mxu0 %v1525
  %2195 = vmatprep.subr.bf16.mxu0 0
  %2196 = vmatpush2.bf16.msra.mxu0 %v1524
  %2197 = vmatprep.subr.bf16.mxu0 0
  %2198 = vmatpush2.bf16.msra.mxu0 %v1523
  %2199 = vmatprep.subr.bf16.mxu0 0
  %2200 = vmatpush2.bf16.msra.mxu0 %v1522
  %2201 = vmatprep.subr.bf16.mxu0 0
  %2202 = vmatpush2.bf16.msra.mxu0 %v1521
  %2203 = vmatprep.subr.bf16.mxu0 0
  %2204 = vmatpush2.bf16.msra.mxu0 %v1520
  %2205 = vmatprep.subr.bf16.mxu0 0
  %2206 = vmatpush2.bf16.msra.mxu0 %v1519
  %2207 = vmatprep.mubr.bf16.mxu0 %v508
  %2208 = vmatmul.mubr.bf16.gmra.mxu0 %v507
  %v2209 = vpop.f32.mrf.mxu0
  %v2210 = vadd.f32 %v2170, %v2209
  %v2211 = vpop.f32.mrf.mxu0
  %v2212 = vpop.f32.mrf.mxu0
  %v2213 = vpop.f32.mrf.mxu0
  %2214 = vdwg.mxu0
  %2215 = vmatprep.subr.bf16.mxu0 0
  %2216 = vmatpush1.bf16.msra.mxu0 %v1534
  %2217 = vmatprep.subr.bf16.mxu0 0
  %2218 = vmatpush1.bf16.msra.mxu0 %v1533
  %2219 = vmatprep.subr.bf16.mxu0 0
  %2220 = vmatpush1.bf16.msra.mxu0 %v1532
  %2221 = vmatprep.subr.bf16.mxu0 0
  %2222 = vmatpush1.bf16.msra.mxu0 %v1531
  %2223 = vmatprep.subr.bf16.mxu0 0
  %2224 = vmatpush1.bf16.msra.mxu0 %v1530
  %2225 = vmatprep.subr.bf16.mxu0 0
  %2226 = vmatpush1.bf16.msra.mxu0 %v1529
  %2227 = vmatprep.subr.bf16.mxu0 0
  %2228 = vmatpush1.bf16.msra.mxu0 %v1528
  %2229 = vmatprep.subr.bf16.mxu0 0
  %2230 = vmatpush1.bf16.msra.mxu0 %v1527
  %2231 = vmatprep.subr.bf16.mxu0 0
  %2232 = vmatpush2.bf16.msra.mxu0 0
  %2233 = vmatprep.subr.bf16.mxu0 0
  %2234 = vmatpush2.bf16.msra.mxu0 0
  %2235 = vmatprep.subr.bf16.mxu0 0
  %2236 = vmatpush2.bf16.msra.mxu0 0
  %2237 = vmatprep.subr.bf16.mxu0 0
  %2238 = vmatpush2.bf16.msra.mxu0 0
  %2239 = vmatprep.subr.bf16.mxu0 0
  %2240 = vmatpush2.bf16.msra.mxu0 0
  %2241 = vmatprep.subr.bf16.mxu0 0
  %2242 = vmatpush2.bf16.msra.mxu0 0
  %2243 = vmatprep.subr.bf16.mxu0 0
  %2244 = vmatpush2.bf16.msra.mxu0 0
  %2245 = vmatprep.subr.bf16.mxu0 0
  %2246 = vmatpush2.bf16.msra.mxu0 0
  %2247 = vmatprep.mubr.bf16.mxu0 0
  %2248 = vmatmul.mubr.bf16.gmra.mxu0 %v509
  %v2249 = vpop.f32.mrf.mxu0
  %v2250 = vadd.f32 %v2210, %v2249
  %v2251 = vpop.f32.mrf.mxu0
  %v2252 = vpop.f32.mrf.mxu0
  %v2253 = vpop.f32.mrf.mxu0
  %2254 = vdwg.mxu0
  %v2255 = vmax.f32 %v2250, 0.0
  %v2256 = vpack.c.bf16 %v2255, %v2255
  %v2257 = vld [vmem:[%s3] sm:$0xf]
  %v2258 = vld [vmem:[%s3 + $0x4] sm:$0xf]
  %v2259 = vld [vmem:[%s3 + $0x8] sm:$0xf]
  %v2260 = vld [vmem:[%s3 + $0xc] sm:$0xf]
  %v2261 = vld [vmem:[%s3 + $0x10] sm:$0xf]
  %v2262 = vld [vmem:[%s3 + $0x14] sm:$0xf]
  %v2263 = vld [vmem:[%s3 + $0x18] sm:$0xf]
  %v2264 = vld [vmem:[%s3 + $0x1c] sm:$0xf]
  %v2265 = vld [vmem:[%s3 + $0x20] sm:$0xf]
  %v2266 = vld [vmem:[%s3 + $0x24] sm:$0xf]
  %v2267 = vld [vmem:[%s3 + $0x28] sm:$0xf]
  %v2268 = vld [vmem:[%s3 + $0x2c] sm:$0xf]
  %v2269 = vld [vmem:[%s3 + $0x30] sm:$0xf]
  %v2270 = vld [vmem:[%s3 + $0x34] sm:$0xf]
  %v2271 = vld [vmem:[%s3 + $0x38] sm:$0xf]
  %v2272 = vld [vmem:[%s3 + $0x3c] sm:$0xf]
  %v2273 = vld [vmem:[%s4] sm:$0x1]
  %v2275 = vlaneseq
  %v2276 = vshrl.u32 %v2275, 7
  %v2277 = vsub.s32 0, %v2276
  %v2278 = vrot.slane %v2273, %v2277
  %v2296 = vunpack.c.l.b16 %v2257
  %v2297 = vunpack.c.l.b16 %v2258
  %v2298 = vunpack.c.l.b16 %v2259
  %v2299 = vunpack.c.l.b16 %v2260
  %v2300 = vunpack.c.l.b16 %v2261
  %v2301 = vunpack.c.l.b16 %v2262
  %v2302 = vunpack.c.l.b16 %v2263
  %v2303 = vunpack.c.l.b16 %v2264
  %v2304 = vunpack.c.l.b16 %v2265
  %v2305 = vunpack.c.l.b16 %v2266
  %v2306 = vunpack.c.l.b16 %v2267
  %v2307 = vunpack.c.l.b16 %v2268
  %v2308 = vunpack.c.l.b16 %v2269
  %v2309 = vunpack.c.l.b16 %v2270
  %v2310 = vunpack.c.l.b16 %v2271
  %v2311 = vunpack.c.l.b16 %v2272
  %v2312 = vpack.c.b16 %v2297, %v2296
  %v2313 = vpack.c.b16 %v2299, %v2298
  %v2314 = vpack.c.b16 %v2301, %v2300
  %v2315 = vpack.c.b16 %v2303, %v2302
  %v2316 = vpack.c.b16 %v2305, %v2304
  %v2317 = vpack.c.b16 %v2307, %v2306
  %v2318 = vpack.c.b16 %v2309, %v2308
  %v2319 = vpack.c.b16 %v2311, %v2310
  %2328 = vmatprep.subr.bf16.mxu0 0
  %2329 = vmatpush1.bf16.msra.mxu0 %v2319
  %2330 = vmatprep.subr.bf16.mxu0 0
  %2331 = vmatpush1.bf16.msra.mxu0 %v2318
  %2332 = vmatprep.subr.bf16.mxu0 0
  %2333 = vmatpush1.bf16.msra.mxu0 %v2317
  %2334 = vmatprep.subr.bf16.mxu0 0
  %2335 = vmatpush1.bf16.msra.mxu0 %v2316
  %2336 = vmatprep.subr.bf16.mxu0 0
  %2337 = vmatpush1.bf16.msra.mxu0 %v2315
  %2338 = vmatprep.subr.bf16.mxu0 0
  %2339 = vmatpush1.bf16.msra.mxu0 %v2314
  %2340 = vmatprep.subr.bf16.mxu0 0
  %2341 = vmatpush1.bf16.msra.mxu0 %v2313
  %2342 = vmatprep.subr.bf16.mxu0 0
  %2343 = vmatpush1.bf16.msra.mxu0 %v2312
  %2344 = vmatprep.subr.bf16.mxu0 0
  %2345 = vmatpush2.bf16.msra.mxu0 0
  %2346 = vmatprep.subr.bf16.mxu0 0
  %2347 = vmatpush2.bf16.msra.mxu0 0
  %2348 = vmatprep.subr.bf16.mxu0 0
  %2349 = vmatpush2.bf16.msra.mxu0 0
  %2350 = vmatprep.subr.bf16.mxu0 0
  %2351 = vmatpush2.bf16.msra.mxu0 0
  %2352 = vmatprep.subr.bf16.mxu0 0
  %2353 = vmatpush2.bf16.msra.mxu0 0
  %2354 = vmatprep.subr.bf16.mxu0 0
  %2355 = vmatpush2.bf16.msra.mxu0 0
  %2356 = vmatprep.subr.bf16.mxu0 0
  %2357 = vmatpush2.bf16.msra.mxu0 0
  %2358 = vmatprep.subr.bf16.mxu0 0
  %2359 = vmatpush2.bf16.msra.mxu0 0
  %2360 = vmatprep.mubr.bf16.mxu0 0
  %2361 = vmatmul.mubr.bf16.gmra.mxu0 %v2256
  %v2362 = vpop.f32.mrf.mxu0
  %v2363 = vadd.f32 %v2278, %v2362
  %v2364 = vpop.f32.mrf.mxu0
  %v2365 = vpop.f32.mrf.mxu0
  %v2366 = vpop.f32.mrf.mxu0
  %2367 = vdwg.mxu0
  %v2368 = vmax.f32 %v2363, 0.0
  %v2369 = vpack.c.bf16 %v2368, %v2368
  %v2370 = vld [vmem:[%s5] sm:$0xf]
  %v2371 = vld [vmem:[%s5 + $0x4] sm:$0xf]
  %v2372 = vld [vmem:[%s5 + $0x8] sm:$0xf]
  %v2373 = vld [vmem:[%s5 + $0xc] sm:$0xf]
  %v2374 = vld [vmem:[%s5 + $0x10] sm:$0xf]
  %v2375 = vld [vmem:[%s5 + $0x14] sm:$0xf]
  %v2376 = vld [vmem:[%s5 + $0x18] sm:$0xf]
  %v2377 = vld [vmem:[%s5 + $0x1c] sm:$0xf]
  %v2378 = vld [vmem:[%s5 + $0x20] sm:$0xf]
  %v2379 = vld [vmem:[%s5 + $0x24] sm:$0xf]
  %v2380 = vld [vmem:[%s5 + $0x28] sm:$0xf]
  %v2381 = vld [vmem:[%s5 + $0x2c] sm:$0xf]
  %v2382 = vld [vmem:[%s5 + $0x30] sm:$0xf]
  %v2383 = vld [vmem:[%s5 + $0x34] sm:$0xf]
  %v2384 = vld [vmem:[%s5 + $0x38] sm:$0xf]
  %v2385 = vld [vmem:[%s5 + $0x3c] sm:$0xf]
  %v2386 = vld [vmem:[%s6] sm:$0x1]
  %v2388 = vlaneseq
  %v2389 = vshrl.u32 %v2388, 7
  %v2390 = vsub.s32 0, %v2389
  %v2391 = vrot.slane %v2386, %v2390
  %v2409 = vunpack.c.l.b16 %v2370
  %v2410 = vunpack.c.l.b16 %v2371
  %v2411 = vunpack.c.l.b16 %v2372
  %v2412 = vunpack.c.l.b16 %v2373
  %v2413 = vunpack.c.l.b16 %v2374
  %v2414 = vunpack.c.l.b16 %v2375
  %v2415 = vunpack.c.l.b16 %v2376
  %v2416 = vunpack.c.l.b16 %v2377
  %v2417 = vunpack.c.l.b16 %v2378
  %v2418 = vunpack.c.l.b16 %v2379
  %v2419 = vunpack.c.l.b16 %v2380
  %v2420 = vunpack.c.l.b16 %v2381
  %v2421 = vunpack.c.l.b16 %v2382
  %v2422 = vunpack.c.l.b16 %v2383
  %v2423 = vunpack.c.l.b16 %v2384
  %v2424 = vunpack.c.l.b16 %v2385
  %v2425 = vpack.c.b16 %v2410, %v2409
  %v2426 = vpack.c.b16 %v2412, %v2411
  %v2427 = vpack.c.b16 %v2414, %v2413
  %v2428 = vpack.c.b16 %v2416, %v2415
  %v2429 = vpack.c.b16 %v2418, %v2417
  %v2430 = vpack.c.b16 %v2420, %v2419
  %v2431 = vpack.c.b16 %v2422, %v2421
  %v2432 = vpack.c.b16 %v2424, %v2423
  %2441 = vmatprep.subr.bf16.mxu0 0
  %2442 = vmatpush1.bf16.msra.mxu0 %v2432
  %2443 = vmatprep.subr.bf16.mxu0 0
  %2444 = vmatpush1.bf16.msra.mxu0 %v2431
  %2445 = vmatprep.subr.bf16.mxu0 0
  %2446 = vmatpush1.bf16.msra.mxu0 %v2430
  %2447 = vmatprep.subr.bf16.mxu0 0
  %2448 = vmatpush1.bf16.msra.mxu0 %v2429
  %2449 = vmatprep.subr.bf16.mxu0 0
  %2450 = vmatpush1.bf16.msra.mxu0 %v2428
  %2451 = vmatprep.subr.bf16.mxu0 0
  %2452 = vmatpush1.bf16.msra.mxu0 %v2427
  %2453 = vmatprep.subr.bf16.mxu0 0
  %2454 = vmatpush1.bf16.msra.mxu0 %v2426
  %2455 = vmatprep.subr.bf16.mxu0 0
  %2456 = vmatpush1.bf16.msra.mxu0 %v2425
  %2457 = vmatprep.subr.bf16.mxu0 0
  %2458 = vmatpush2.bf16.msra.mxu0 0
  %2459 = vmatprep.subr.bf16.mxu0 0
  %2460 = vmatpush2.bf16.msra.mxu0 0
  %2461 = vmatprep.subr.bf16.mxu0 0
  %2462 = vmatpush2.bf16.msra.mxu0 0
  %2463 = vmatprep.subr.bf16.mxu0 0
  %2464 = vmatpush2.bf16.msra.mxu0 0
  %2465 = vmatprep.subr.bf16.mxu0 0
  %2466 = vmatpush2.bf16.msra.mxu0 0
  %2467 = vmatprep.subr.bf16.mxu0 0
  %2468 = vmatpush2.bf16.msra.mxu0 0
  %2469 = vmatprep.subr.bf16.mxu0 0
  %2470 = vmatpush2.bf16.msra.mxu0 0
  %2471 = vmatprep.subr.bf16.mxu0 0
  %2472 = vmatpush2.bf16.msra.mxu0 0
  %2473 = vmatprep.mubr.bf16.mxu0 0
  %2474 = vmatmul.mubr.bf16.gmra.mxu0 %v2369
  %v2475 = vpop.f32.mrf.mxu0
  %v2476 = vadd.f32 %v2391, %v2475
  %v2477 = vpop.f32.mrf.mxu0
  %v2478 = vpop.f32.mrf.mxu0
  %v2479 = vpop.f32.mrf.mxu0
  %2480 = vdwg.mxu0
  %2481 = vst [vmem:[%s7] sm:$0xff] %v2476
  // Predicated region
  $region30: #{lenet5_forward.5} parent=0 // pred_check
    _
  $region31: #{lenet5_forward.5} parent=0 // pred_check_branch
    %2483 = sbr.rel (0) target = $region33
  $region32: #{lenet5_forward.5} parent=0 // pred_region
    _
  $region33: #{lenet5_forward.5} parent=0 // pred_fallthru
    _
  // Predicated region
  $region34: #{lenet5_forward.5} parent=0 // pred_check
    _
  $region35: #{lenet5_forward.5} parent=0 // pred_check_branch
    %2485 = sbr.rel (0) target = $region37
  $region36: #{lenet5_forward.5} parent=0 // pred_region
    _
  $region37: #{lenet5_forward.5} parent=0 // pred_fallthru
    _

</llo_original>
